<compile_context>
chip_gen: v7x
topology: tpu7x:2x2x1
jax: 0.10.0
libtpu: 0.0.40
codegen_flags: <defaults>
</compile_context>

<pallas_src>
import functools

import jax
import jax.numpy as jnp
import numpy as np
from jax import lax
from jax.experimental import pallas as pl
from jax.experimental.pallas import tpu as pltpu

EPS = 1e-5
_PAD = 8  # sublane-aligned front padding of the flat o1 scratch


def _round_up(x, m):
    return (x + m - 1) // m * m


# ----------------------------------------------------------------------------
# Fused Bottleneck kernel
# ----------------------------------------------------------------------------
def _bottleneck_kernel(x_ref, w1_ref, b1_ref, w2_ref, b2_ref, w3_ref, b3_ref,
                       o_ref, a_ref, *, H, W, RH):
    """Grid: (batch, row_strip); both axes are independent ("parallel").

    x_ref : (1, H, W, C)  bf16 full image of this batch element (block index
                          constant over strips -> DMA'd once per element).
    o_ref : (1, RH, W, C) output row strip.
    a_ref : (ASZ, planes) f32 scratch: conv1 output for rows
                          [row0-1, row0+RH] flattened to (rows*W, planes),
                          stored at sublane offset _PAD so every 3x3 tap is a
                          non-negative static sublane-offset slice.
    """
    planes = w1_ref.shape[1]
    C = w3_ref.shape[1]
    s = pl.program_id(1)
    row0 = pl.multiple_of(s * RH, RH)

    # ---- stage 1: 1x1 conv + bias + ReLU for rows [row0-1, row0+RH] (halo).
    rt = row0 - 1        # top halo image row (may be -1 -> zero padding)
    rb = row0 + RH       # bottom halo image row (may be H -> zero padding)
    x_top = x_ref[0, pl.ds(jnp.maximum(rt, 0), 1), :, :]        # (1, W, C)
    x_mid = x_ref[0, pl.ds(row0, RH), :, :]                     # (RH, W, C)
    x_bot = x_ref[0, pl.ds(jnp.minimum(rb, H - 1), 1), :, :]    # (1, W, C)
    xh = jnp.concatenate([x_top, x_mid, x_bot], axis=0)         # (RH+2, W, C)
    xh = xh.reshape((RH + 2) * W, C)

    o1 = jnp.dot(xh, w1_ref[...], preferred_element_type=jnp.float32)
    o1 = jnp.maximum(o1 + b1_ref[...], 0.0)
    # conv2's zero padding pads o1: halo rows outside the image must be 0.
    ridx = lax.broadcasted_iota(jnp.int32, ((RH + 2) * W, 1), 0)
    in_img = ((ridx >= W) | (rt >= 0)) & ((ridx < (RH + 1) * W) | (rb < H))
    o1 = jnp.where(in_img, o1, 0.0)
    a_ref[pl.ds(_PAD, (RH + 2) * W), :] = o1.astype(a_ref.dtype)

    # ---- stage 2: 3x3 conv (stride 1, pad 1) as ONE im2col matmul, K=9*planes.
    col = lax.broadcasted_iota(jnp.int32, (RH * W, 1), 0) % W
    taps = []
    for ky in range(3):
        for kx in range(3):
            off = _PAD - 1 + ky * W + kx          # static, >= 0
            t = a_ref[pl.ds(off, RH * W), :]      # (RH*W, planes)
            if kx == 0:                            # left zero-column padding
                t = jnp.where(col >= 1, t, jnp.zeros_like(t))
            elif kx == 2:                          # right zero-column padding
                t = jnp.where(col <= W - 2, t, jnp.zeros_like(t))
            taps.append(t)
    patch = jnp.concatenate(taps, axis=1).astype(jnp.bfloat16)  # (RH*W, 9*planes)
    o2 = jnp.dot(patch, w2_ref[...], preferred_element_type=jnp.float32)
    o2 = jnp.maximum(o2 + b2_ref[...], 0.0)

    # ---- stage 3: 1x1 conv + bias + residual (re-uses resident x) + ReLU.
    y = jnp.dot(o2.astype(jnp.bfloat16), w3_ref[...],
                preferred_element_type=jnp.float32)             # (RH*W, C)
    res = x_mid.reshape(RH * W, C).astype(jnp.float32)
    y = jnp.maximum(y + b3_ref[...] + res, 0.0)
    o_ref[0] = y.reshape(RH, W, C).astype(o_ref.dtype)


def _choose_row_strip(H, W, target_m=256):
    # Smallest divisor of H whose strip gives a matmul M dim (RH*W) >= 256,
    # so the MXU pass setup/drain is amortized; fall back to the whole image.
    for rh in range(1, H + 1):
        if H % rh == 0 and rh * W >= target_m:
            return rh
    return H


def bottleneck_forward_nhwc(x_nhwc, params):
    N, H, W, C = x_nhwc.shape
    planes = params["w1"].shape[1]
    assert C == planes * 4, "identity residual requires inplanes == 4 * planes"
    RH = _choose_row_strip(H, W)
    n_strips = H // RH
    asz = _PAD + _round_up((RH + 2) * W + 8, 8)   # flat o1 scratch rows (+ slack)

    kernel = functools.partial(_bottleneck_kernel, H=H, W=W, RH=RH)
    x_bf = x_nhwc.astype(jnp.bfloat16)            # bf16 MXU operand / half DMA bytes
    const2 = lambda n, s: (0, 0)

    return pl.pallas_call(
        kernel,
        out_shape=jax.ShapeDtypeStruct((N, H, W, C), x_nhwc.dtype),
        grid_spec=pltpu.PrefetchScalarGridSpec(
            num_scalar_prefetch=0,
            grid=(N, n_strips),
            in_specs=[
                pl.BlockSpec((1, H, W, C), lambda n, s: (n, 0, 0, 0)),  # x
                pl.BlockSpec((C, planes), const2),                      # w1*s1
                pl.BlockSpec((1, planes), const2),                      # b1
                pl.BlockSpec((9 * planes, planes), const2),             # w2*s2 (im2col)
                pl.BlockSpec((1, planes), const2),                      # b2
                pl.BlockSpec((planes, C), const2),                      # w3*s3
                pl.BlockSpec((1, C), const2),                           # b3
            ],
            out_specs=pl.BlockSpec((1, RH, W, C), lambda n, s: (n, s, 0, 0)),
            scratch_shapes=[pltpu.VMEM((asz, planes), jnp.float32)],
        ),
        compiler_params=pltpu.CompilerParams(
            dimension_semantics=("parallel", "parallel"),
            vmem_limit_bytes=32 * 1024 * 1024),
    )(x_bf, params["w1"], params["b1"], params["w2"], params["b2"],
      params["w3"], params["b3"])


def bottleneck_forward(x_nchw, params):
    # NCHW boundary to match the PyTorch module; in a full NHWC network call
    # bottleneck_forward_nhwc directly to avoid per-block layout conversions.
    x = jnp.transpose(x_nchw, (0, 2, 3, 1))
    out = bottleneck_forward_nhwc(x, params)
    return jnp.transpose(out, (0, 3, 1, 2))


# ----------------------------------------------------------------------------
# Deterministic parameters (BN scale folded into weights) + pure-JAX reference
# ----------------------------------------------------------------------------
def make_params(key, inplanes, planes):
    ks = jax.random.split(key, 8)
    expansion = 4
    # torch layout (O, I, kh, kw)
    w1_t = jax.random.normal(ks[0], (planes, inplanes, 1, 1), jnp.float32) * 0.1
    w2_t = jax.random.normal(ks[1], (planes, planes, 3, 3), jnp.float32) * 0.1
    w3_t = (jax.random.normal(ks[2], (planes * expansion, planes, 1, 1),
                              jnp.float32) * 0.1)

    def bn_params(k, c):
        k1, k2, k3, k4 = jax.random.split(k, 4)
        gamma = jax.random.uniform(k1, (c,), jnp.float32, 0.5, 1.5)
        beta = jax.random.normal(k2, (c,), jnp.float32) * 0.1
        mean = jax.random.normal(k3, (c,), jnp.float32) * 0.1
        var = jax.random.uniform(k4, (c,), jnp.float32, 0.5, 1.5)
        return gamma, beta, mean, var

    bn1 = bn_params(ks[3], planes)
    bn2 = bn_params(ks[4], planes)
    bn3 = bn_params(ks[5], planes * expansion)

    def fold(gamma, beta, mean, var):
        scale = gamma / jnp.sqrt(var + EPS)
        return scale, beta - mean * scale

    s1, b1 = fold(*bn1)
    s2, b2 = fold(*bn2)
    s3, b3 = fold(*bn3)

    # BN scale folded into the conv weights along the output-channel axis;
    # only the per-channel bias is applied in-kernel.  MXU operands are bf16.
    w1 = jnp.transpose(w1_t[:, :, 0, 0], (1, 0)) * s1[None, :]        # (Cin, planes)
    w2 = jnp.transpose(w2_t, (2, 3, 1, 0)) * s2[None, None, None, :]  # (3,3,Cin,Cout)
    w2 = w2.reshape(9 * planes, planes)      # im2col order: (ky, kx, cin) major
    w3 = jnp.transpose(w3_t[:, :, 0, 0], (1, 0)) * s3[None, :]        # (planes, 4p)

    params = {
        "w1": w1.astype(jnp.bfloat16), "b1": b1.reshape(1, -1).astype(jnp.float32),
        "w2": w2.astype(jnp.bfloat16), "b2": b2.reshape(1, -1).astype(jnp.float32),
        "w3": w3.astype(jnp.bfloat16), "b3": b3.reshape(1, -1).astype(jnp.float32),
    }
    torch_weights = {"w1_t": w1_t, "w2_t": w2_t, "w3_t": w3_t,
                     "bn1": bn1, "bn2": bn2, "bn3": bn3}
    return params, torch_weights


def reference_forward(x_nchw, tw):
    def conv(x, w, padding):
        return jax.lax.conv_general_dilated(
            x, w, window_strides=(1, 1), padding=padding,
            dimension_numbers=("NCHW", "OIHW", "NCHW"))

    def bn(x, p):
        gamma, beta, mean, var = p
        inv = gamma / jnp.sqrt(var + EPS)
        return x * inv[None, :, None, None] + (beta - mean * inv)[None, :, None, None]

    out = jax.nn.relu(bn(conv(x_nchw, tw["w1_t"], "VALID"), tw["bn1"]))
    out = jax.nn.relu(bn(conv(out, tw["w2_t"], [(1, 1), (1, 1)]), tw["bn2"]))
    out = bn(conv(out, tw["w3_t"], "VALID"), tw["bn3"])
    return jax.nn.relu(out + x_nchw)


if __name__ == "__main__":
    key = jax.random.PRNGKey(0)
    k_x, k_p = jax.random.split(key)

    # identity residual: inplanes == planes * expansion; C=128 keeps the
    # input/output channel (lane) axis dense.
    inplanes, planes = 128, 32
    N, H, W = 2, 32, 16
    x = jax.random.normal(k_x, (N, inplanes, H, W), jnp.float32)

    params, torch_w = make_params(k_p, inplanes, planes)

    out = jax.block_until_ready(bottleneck_forward(x, params))
    ref = jax.block_until_ready(reference_forward(x, torch_w))

    # bf16 MXU operands -> loosened tolerance vs. the f32 reference.
    np.testing.assert_allclose(np.asarray(out), np.asarray(ref),
                               rtol=5e-2, atol=5e-2)
    print("KERNEL_OK")
</pallas_src>

<mosaic_0001>
module attributes {stable_mosaic.version = 11 : i64} {
  func.func @_bottleneck_kernel(%arg0: i32, %arg1: i32, %arg2: memref<1x32x16x128xbf16, #tpu.memory_space<vmem>>, %arg3: memref<128x32xbf16, #tpu.memory_space<vmem>>, %arg4: memref<1x32xf32, #tpu.memory_space<vmem>>, %arg5: memref<288x32xbf16, #tpu.memory_space<vmem>>, %arg6: memref<1x32xf32, #tpu.memory_space<vmem>>, %arg7: memref<32x128xbf16, #tpu.memory_space<vmem>>, %arg8: memref<1x128xf32, #tpu.memory_space<vmem>>, %arg9: memref<1x16x16x128xf32, #tpu.memory_space<vmem>>, %arg10: memref<304x32xf32, #tpu.memory_space<vmem>>) attributes {dimension_semantics = [#tpu.dimension_semantics<parallel>, #tpu.dimension_semantics<parallel>], iteration_bounds = array<i64: 2, 2>, scalar_prefetch = 0 : i64, scratch_operands = 1 : i64, tpu.core_type = #tpu.core_type<tc>, window_params = [{transform_indices = @transform_0, window_bounds = array<i64: 1, 32, 16, 128>}, {pipeline_mode = #tpu.pipeline_mode<synchronous>, transform_indices = @transform_1, window_bounds = array<i64: 128, 32>}, {pipeline_mode = #tpu.pipeline_mode<synchronous>, transform_indices = @transform_2, window_bounds = array<i64: 1, 32>}, {pipeline_mode = #tpu.pipeline_mode<synchronous>, transform_indices = @transform_3, window_bounds = array<i64: 288, 32>}, {pipeline_mode = #tpu.pipeline_mode<synchronous>, transform_indices = @transform_4, window_bounds = array<i64: 1, 32>}, {pipeline_mode = #tpu.pipeline_mode<synchronous>, transform_indices = @transform_5, window_bounds = array<i64: 32, 128>}, {pipeline_mode = #tpu.pipeline_mode<synchronous>, transform_indices = @transform_6, window_bounds = array<i64: 1, 128>}, {transform_indices = @transform_7, window_bounds = array<i64: 1, 16, 16, 128>}]} {
    %c16_i32 = arith.constant 16 : i32
    %0 = arith.muli %arg1, %c16_i32 : i32
    %1 = tpu.assume_multiple %0, 16 : i32
    %c1_i32 = arith.constant 1 : i32
    %2 = arith.subi %1, %c1_i32 : i32
    %c16_i32_0 = arith.constant 16 : i32
    %3 = arith.addi %1, %c16_i32_0 : i32
    %c0_i32 = arith.constant 0 : i32
    %4 = arith.maxsi %2, %c0_i32 : i32
    %c0 = arith.constant 0 : index
    %5 = arith.index_cast %4 : i32 to index
    %c0_1 = arith.constant 0 : index
    %c0_2 = arith.constant 0 : index
    %6 = vector.load %arg2[%c0, %5, %c0_1, %c0_2] : memref<1x32x16x128xbf16, #tpu.memory_space<vmem>>, vector<1x1x16x128xbf16>
    %7 = vector.shape_cast %6 : vector<1x1x16x128xbf16> to vector<1x16x128xbf16>
    %c0_3 = arith.constant 0 : index
    %8 = arith.index_cast %1 : i32 to index
    %c0_4 = arith.constant 0 : index
    %c0_5 = arith.constant 0 : index
    %9 = vector.load %arg2[%c0_3, %8, %c0_4, %c0_5] : memref<1x32x16x128xbf16, #tpu.memory_space<vmem>>, vector<1x16x16x128xbf16>
    %10 = vector.shape_cast %9 : vector<1x16x16x128xbf16> to vector<16x16x128xbf16>
    %c31_i32 = arith.constant 31 : i32
    %11 = arith.minsi %3, %c31_i32 : i32
    %c0_6 = arith.constant 0 : index
    %12 = arith.index_cast %11 : i32 to index
    %c0_7 = arith.constant 0 : index
    %c0_8 = arith.constant 0 : index
    %13 = vector.load %arg2[%c0_6, %12, %c0_7, %c0_8] : memref<1x32x16x128xbf16, #tpu.memory_space<vmem>>, vector<1x1x16x128xbf16>
    %14 = vector.shape_cast %13 : vector<1x1x16x128xbf16> to vector<1x16x128xbf16>
    %15 = tpu.concatenate %7, %10, %14 in 0 : vector<1x16x128xbf16>, vector<16x16x128xbf16>, vector<1x16x128xbf16> -> vector<18x16x128xbf16>
    %16 = vector.shape_cast %15 : vector<18x16x128xbf16> to vector<288x128xbf16>
    %c0_9 = arith.constant 0 : index
    %c0_10 = arith.constant 0 : index
    %17 = vector.load %arg3[%c0_9, %c0_10] : memref<128x32xbf16, #tpu.memory_space<vmem>>, vector<128x32xbf16>
    %cst = arith.constant dense<0.000000e+00> : vector<288x32xf32>
    %18 = tpu.matmul %16, %17, %cst {dimension_numbers = #tpu.dot_dimension_numbers<[1], [0], [0], [1], [0, 0, 1, 1], [], []>} : vector<288x128xbf16>, vector<128x32xbf16>, vector<288x32xf32> -> vector<288x32xf32>
    %c0_11 = arith.constant 0 : index
    %c0_12 = arith.constant 0 : index
    %19 = vector.load %arg4[%c0_11, %c0_12] : memref<1x32xf32, #tpu.memory_space<vmem>>, vector<1x32xf32>
    %20 = vector.broadcast %19 : vector<1x32xf32> to vector<288x32xf32>
    %21 = arith.addf %18, %20 : vector<288x32xf32>
    %cst_13 = arith.constant 0.000000e+00 : f32
    %22 = vector.broadcast %cst_13 : f32 to vector<288x32xf32>
    %23 = arith.maximumf %21, %22 : vector<288x32xf32>
    %24 = tpu.iota {dimensions = array<i32: 0>} : vector<288x1xi32>
    %c16_i32_14 = arith.constant 16 : i32
    %25 = vector.broadcast %c16_i32_14 : i32 to vector<288x1xi32>
    %26 = arith.cmpi sge, %24, %25 : vector<288x1xi32>
    %c0_i32_15 = arith.constant 0 : i32
    %27 = arith.cmpi sge, %2, %c0_i32_15 : i32
    %28 = vector.broadcast %27 : i1 to vector<288x1xi1>
    %29 = arith.ori %26, %28 : vector<288x1xi1>
    %c272_i32 = arith.constant 272 : i32
    %30 = vector.broadcast %c272_i32 : i32 to vector<288x1xi32>
    %31 = arith.cmpi slt, %24, %30 : vector<288x1xi32>
    %c32_i32 = arith.constant 32 : i32
    %32 = arith.cmpi slt, %3, %c32_i32 : i32
    %33 = vector.broadcast %32 : i1 to vector<288x1xi1>
    %34 = arith.ori %31, %33 : vector<288x1xi1>
    %35 = arith.andi %29, %34 : vector<288x1xi1>
    %cst_16 = arith.constant 0.000000e+00 : f32
    %36 = vector.shape_cast %35 : vector<288x1xi1> to vector<288x1xi1>
    %37 = vector.broadcast %36 : vector<288x1xi1> to vector<288x32xi1>
    %38 = vector.broadcast %cst_16 : f32 to vector<288x32xf32>
    %39 = arith.select %37, %23, %38 : vector<288x32xi1>, vector<288x32xf32>
    %c8 = arith.constant 8 : index
    %c0_17 = arith.constant 0 : index
    %40 = vector.load %arg10[%c8, %c0_17] : memref<304x32xf32, #tpu.memory_space<vmem>>, vector<288x32xf32>
    tpu.vector_store %arg10[%c8, %c0_17], %39 {strides = array<i32>} : memref<304x32xf32, #tpu.memory_space<vmem>>, vector<288x32xf32>,
    %41 = tpu.iota {dimensions = array<i32: 0>} : vector<256x1xi32>
    %c16_i32_18 = arith.constant 16 : i32
    %c0_i32_19 = arith.constant 0 : i32
    %42 = arith.cmpi eq, %c16_i32_18, %c0_i32_19 : i32
    %c1_i32_20 = arith.constant 1 : i32
    %43 = arith.select %42, %c1_i32_20, %c16_i32_18 : i32
    %44 = vector.broadcast %43 : i32 to vector<256x1xi32>
    %45 = arith.remsi %41, %44 : vector<256x1xi32>
    %c0_i32_21 = arith.constant 0 : i32
    %46 = vector.broadcast %c0_i32_21 : i32 to vector<256x1xi32>
    %47 = arith.cmpi ne, %45, %46 : vector<256x1xi32>
    %c0_i32_22 = arith.constant 0 : i32
    %48 = vector.broadcast %c0_i32_22 : i32 to vector<256x1xi32>
    %49 = arith.cmpi slt, %45, %48 : vector<256x1xi32>
    %c0_i32_23 = arith.constant 0 : i32
    %50 = arith.cmpi slt, %43, %c0_i32_23 : i32
    %51 = vector.broadcast %50 : i1 to vector<256x1xi1>
    %52 = vector.broadcast %51 : vector<256x1xi1> to vector<256x1xi1>
    %53 = arith.xori %49, %52 : vector<256x1xi1>
    %54 = arith.andi %53, %47 : vector<256x1xi1>
    %55 = vector.broadcast %43 : i32 to vector<256x1xi32>
    %56 = arith.addi %45, %55 : vector<256x1xi32>
    %57 = arith.select %54, %56, %45 : vector<256x1xi1>, vector<256x1xi32>
    %c7 = arith.constant 7 : index
    %c0_24 = arith.constant 0 : index
    %58 = vector.load %arg10[%c7, %c0_24] : memref<304x32xf32, #tpu.memory_space<vmem>>, vector<256x32xf32>
    %c1_i32_25 = arith.constant 1 : i32
    %59 = vector.broadcast %c1_i32_25 : i32 to vector<256x1xi32>
    %60 = arith.cmpi sge, %57, %59 : vector<256x1xi32>
    %cst_26 = arith.constant 0.000000e+00 : f32
    %61 = vector.broadcast %cst_26 : f32 to vector<256x32xf32>
    %62 = vector.shape_cast %60 : vector<256x1xi1> to vector<256x1xi1>
    %63 = vector.broadcast %62 : vector<256x1xi1> to vector<256x32xi1>
    %64 = arith.select %63, %58, %61 : vector<256x32xi1>, vector<256x32xf32>
    %c8_27 = arith.constant 8 : index
    %c0_28 = arith.constant 0 : index
    %65 = vector.load %arg10[%c8_27, %c0_28] : memref<304x32xf32, #tpu.memory_space<vmem>>, vector<256x32xf32>
    %c9 = arith.constant 9 : index
    %c0_29 = arith.constant 0 : index
    %66 = vector.load %arg10[%c9, %c0_29] : memref<304x32xf32, #tpu.memory_space<vmem>>, vector<256x32xf32>
    %c14_i32 = arith.constant 14 : i32
    %67 = vector.broadcast %c14_i32 : i32 to vector<256x1xi32>
    %68 = arith.cmpi sle, %57, %67 : vector<256x1xi32>
    %cst_30 = arith.constant 0.000000e+00 : f32
    %69 = vector.broadcast %cst_30 : f32 to vector<256x32xf32>
    %70 = vector.shape_cast %68 : vector<256x1xi1> to vector<256x1xi1>
    %71 = vector.broadcast %70 : vector<256x1xi1> to vector<256x32xi1>
    %72 = arith.select %71, %66, %69 : vector<256x32xi1>, vector<256x32xf32>
    %c23 = arith.constant 23 : index
    %c0_31 = arith.constant 0 : index
    %73 = vector.load %arg10[%c23, %c0_31] : memref<304x32xf32, #tpu.memory_space<vmem>>, vector<256x32xf32>
    %c1_i32_32 = arith.constant 1 : i32
    %74 = vector.broadcast %c1_i32_32 : i32 to vector<256x1xi32>
    %75 = arith.cmpi sge, %57, %74 : vector<256x1xi32>
    %cst_33 = arith.constant 0.000000e+00 : f32
    %76 = vector.broadcast %cst_33 : f32 to vector<256x32xf32>
    %77 = vector.shape_cast %75 : vector<256x1xi1> to vector<256x1xi1>
    %78 = vector.broadcast %77 : vector<256x1xi1> to vector<256x32xi1>
    %79 = arith.select %78, %73, %76 : vector<256x32xi1>, vector<256x32xf32>
    %c24 = arith.constant 24 : index
    %c0_34 = arith.constant 0 : index
    %80 = vector.load %arg10[%c24, %c0_34] : memref<304x32xf32, #tpu.memory_space<vmem>>, vector<256x32xf32>
    %c25 = arith.constant 25 : index
    %c0_35 = arith.constant 0 : index
    %81 = vector.load %arg10[%c25, %c0_35] : memref<304x32xf32, #tpu.memory_space<vmem>>, vector<256x32xf32>
    %c14_i32_36 = arith.constant 14 : i32
    %82 = vector.broadcast %c14_i32_36 : i32 to vector<256x1xi32>
    %83 = arith.cmpi sle, %57, %82 : vector<256x1xi32>
    %cst_37 = arith.constant 0.000000e+00 : f32
    %84 = vector.broadcast %cst_37 : f32 to vector<256x32xf32>
    %85 = vector.shape_cast %83 : vector<256x1xi1> to vector<256x1xi1>
    %86 = vector.broadcast %85 : vector<256x1xi1> to vector<256x32xi1>
    %87 = arith.select %86, %81, %84 : vector<256x32xi1>, vector<256x32xf32>
    %c39 = arith.constant 39 : index
    %c0_38 = arith.constant 0 : index
    %88 = vector.load %arg10[%c39, %c0_38] : memref<304x32xf32, #tpu.memory_space<vmem>>, vector<256x32xf32>
    %c1_i32_39 = arith.constant 1 : i32
    %89 = vector.broadcast %c1_i32_39 : i32 to vector<256x1xi32>
    %90 = arith.cmpi sge, %57, %89 : vector<256x1xi32>
    %cst_40 = arith.constant 0.000000e+00 : f32
    %91 = vector.broadcast %cst_40 : f32 to vector<256x32xf32>
    %92 = vector.shape_cast %90 : vector<256x1xi1> to vector<256x1xi1>
    %93 = vector.broadcast %92 : vector<256x1xi1> to vector<256x32xi1>
    %94 = arith.select %93, %88, %91 : vector<256x32xi1>, vector<256x32xf32>
    %c40 = arith.constant 40 : index
    %c0_41 = arith.constant 0 : index
    %95 = vector.load %arg10[%c40, %c0_41] : memref<304x32xf32, #tpu.memory_space<vmem>>, vector<256x32xf32>
    %c41 = arith.constant 41 : index
    %c0_42 = arith.constant 0 : index
    %96 = vector.load %arg10[%c41, %c0_42] : memref<304x32xf32, #tpu.memory_space<vmem>>, vector<256x32xf32>
    %c14_i32_43 = arith.constant 14 : i32
    %97 = vector.broadcast %c14_i32_43 : i32 to vector<256x1xi32>
    %98 = arith.cmpi sle, %57, %97 : vector<256x1xi32>
    %cst_44 = arith.constant 0.000000e+00 : f32
    %99 = vector.broadcast %cst_44 : f32 to vector<256x32xf32>
    %100 = vector.shape_cast %98 : vector<256x1xi1> to vector<256x1xi1>
    %101 = vector.broadcast %100 : vector<256x1xi1> to vector<256x32xi1>
    %102 = arith.select %101, %96, %99 : vector<256x32xi1>, vector<256x32xf32>
    %103 = tpu.concatenate %64, %65, %72, %79, %80, %87, %94, %95, %102 in 1 : vector<256x32xf32>, vector<256x32xf32>, vector<256x32xf32>, vector<256x32xf32>, vector<256x32xf32>, vector<256x32xf32>, vector<256x32xf32>, vector<256x32xf32>, vector<256x32xf32> -> vector<256x288xf32>
    %104 = arith.truncf %103 : vector<256x288xf32> to vector<256x288xbf16>
    %c0_45 = arith.constant 0 : index
    %c0_46 = arith.constant 0 : index
    %105 = vector.load %arg5[%c0_45, %c0_46] : memref<288x32xbf16, #tpu.memory_space<vmem>>, vector<288x32xbf16>
    %cst_47 = arith.constant dense<0.000000e+00> : vector<256x32xf32>
    %106 = tpu.matmul %104, %105, %cst_47 {dimension_numbers = #tpu.dot_dimension_numbers<[1], [0], [0], [1], [0, 0, 1, 1], [], []>} : vector<256x288xbf16>, vector<288x32xbf16>, vector<256x32xf32> -> vector<256x32xf32>
    %c0_48 = arith.constant 0 : index
    %c0_49 = arith.constant 0 : index
    %107 = vector.load %arg6[%c0_48, %c0_49] : memref<1x32xf32, #tpu.memory_space<vmem>>, vector<1x32xf32>
    %108 = vector.broadcast %107 : vector<1x32xf32> to vector<256x32xf32>
    %109 = arith.addf %106, %108 : vector<256x32xf32>
    %cst_50 = arith.constant 0.000000e+00 : f32
    %110 = vector.broadcast %cst_50 : f32 to vector<256x32xf32>
    %111 = arith.maximumf %109, %110 : vector<256x32xf32>
    %112 = arith.truncf %111 : vector<256x32xf32> to vector<256x32xbf16>
    %c0_51 = arith.constant 0 : index
    %c0_52 = arith.constant 0 : index
    %113 = vector.load %arg7[%c0_51, %c0_52] : memref<32x128xbf16, #tpu.memory_space<vmem>>, vector<32x128xbf16>
    %cst_53 = arith.constant dense<0.000000e+00> : vector<256x128xf32>
    %114 = tpu.matmul %112, %113, %cst_53 {dimension_numbers = #tpu.dot_dimension_numbers<[1], [0], [0], [1], [0, 0, 1, 1], [], []>} : vector<256x32xbf16>, vector<32x128xbf16>, vector<256x128xf32> -> vector<256x128xf32>
    %115 = vector.shape_cast %10 : vector<16x16x128xbf16> to vector<256x128xbf16>
    %116 = arith.extf %115 : vector<256x128xbf16> to vector<256x128xf32>
    %c0_54 = arith.constant 0 : index
    %c0_55 = arith.constant 0 : index
    %117 = vector.load %arg8[%c0_54, %c0_55] : memref<1x128xf32, #tpu.memory_space<vmem>>, vector<1x128xf32>
    %118 = vector.broadcast %117 : vector<1x128xf32> to vector<256x128xf32>
    %119 = arith.addf %114, %118 : vector<256x128xf32>
    %120 = arith.addf %119, %116 : vector<256x128xf32>
    %cst_56 = arith.constant 0.000000e+00 : f32
    %121 = vector.broadcast %cst_56 : f32 to vector<256x128xf32>
    %122 = arith.maximumf %120, %121 : vector<256x128xf32>
    %123 = vector.shape_cast %122 : vector<256x128xf32> to vector<16x16x128xf32>
    %c0_57 = arith.constant 0 : index
    %c0_58 = arith.constant 0 : index
    %c0_59 = arith.constant 0 : index
    %c0_60 = arith.constant 0 : index
    %124 = vector.load %arg9[%c0_57, %c0_58, %c0_59, %c0_60] : memref<1x16x16x128xf32, #tpu.memory_space<vmem>>, vector<1x16x16x128xf32>
    %125 = vector.shape_cast %124 : vector<1x16x16x128xf32> to vector<16x16x128xf32>
    %126 = vector.shape_cast %123 : vector<16x16x128xf32> to vector<1x16x16x128xf32>
    tpu.vector_store %arg9[%c0_57, %c0_58, %c0_59, %c0_60], %126 {strides = array<i32>} : memref<1x16x16x128xf32, #tpu.memory_space<vmem>>, vector<1x16x16x128xf32>,
    return
  }
  func.func @transform_0(%arg0: i32, %arg1: i32) -> (i32, i32, i32, i32) {
    %c0_i32 = arith.constant 0 : i32
    %c0_i32_0 = arith.constant 0 : i32
    %c0_i32_1 = arith.constant 0 : i32
    %c0_i32_2 = arith.constant 0 : i32
    return %arg0, %c0_i32, %c0_i32_0, %c0_i32_1 : i32, i32, i32, i32
  }
  func.func @transform_1(%arg0: i32, %arg1: i32) -> (i32, i32) {
    %c0_i32 = arith.constant 0 : i32
    %c0_i32_0 = arith.constant 0 : i32
    %c0_i32_1 = arith.constant 0 : i32
    return %c0_i32, %c0_i32_0 : i32, i32
  }
  func.func @transform_2(%arg0: i32, %arg1: i32) -> (i32, i32) {
    %c0_i32 = arith.constant 0 : i32
    %c0_i32_0 = arith.constant 0 : i32
    %c0_i32_1 = arith.constant 0 : i32
    return %c0_i32, %c0_i32_0 : i32, i32
  }
  func.func @transform_3(%arg0: i32, %arg1: i32) -> (i32, i32) {
    %c0_i32 = arith.constant 0 : i32
    %c0_i32_0 = arith.constant 0 : i32
    %c0_i32_1 = arith.constant 0 : i32
    return %c0_i32, %c0_i32_0 : i32, i32
  }
  func.func @transform_4(%arg0: i32, %arg1: i32) -> (i32, i32) {
    %c0_i32 = arith.constant 0 : i32
    %c0_i32_0 = arith.constant 0 : i32
    %c0_i32_1 = arith.constant 0 : i32
    return %c0_i32, %c0_i32_0 : i32, i32
  }
  func.func @transform_5(%arg0: i32, %arg1: i32) -> (i32, i32) {
    %c0_i32 = arith.constant 0 : i32
    %c0_i32_0 = arith.constant 0 : i32
    %c0_i32_1 = arith.constant 0 : i32
    return %c0_i32, %c0_i32_0 : i32, i32
  }
  func.func @transform_6(%arg0: i32, %arg1: i32) -> (i32, i32) {
    %c0_i32 = arith.constant 0 : i32
    %c0_i32_0 = arith.constant 0 : i32
    %c0_i32_1 = arith.constant 0 : i32
    return %c0_i32, %c0_i32_0 : i32, i32
  }
  func.func @transform_7(%arg0: i32, %arg1: i32) -> (i32, i32, i32, i32) {
    %c0_i32 = arith.constant 0 : i32
    %c0_i32_0 = arith.constant 0 : i32
    %c0_i32_1 = arith.constant 0 : i32
    return %arg0, %arg1, %c0_i32, %c0_i32_0 : i32, i32, i32, i32
  }
}

</mosaic_0001>

<llo_original>
// kernel: tpu_custom_call.1
$region0: #{tpu_custom_call.1}
  #allocation0 [shape = 'u32[]', space=smem, size = 0x4, offset = 0x4, fixed_abs, tag = 'smem constant byte address 0x4 - core index']
  #allocation1 [shape = 'u32[144,128]{1,0:T(1,128)}', space=vmem, size = 0x12000, scoped, tag = 'internal scratch']
  #allocation2 [shape = 'f32[304,32]{1,0:T(8,128)}', space=vmem, size = 0x26000, scoped, tag = 'scratch operand']
  %s0 = inlined_call_operand.hbm [shape: bf16[2,32,16,128], index: 0, kind: input, shape index: {}]
  %s1 = inlined_call_operand.vmem [shape: bf16[128,32], index: 1, kind: input, shape index: {}]
  %s2 = inlined_call_operand.vmem [shape: f32[1,32], index: 2, kind: input, shape index: {}]
  %s3 = inlined_call_operand.vmem [shape: bf16[288,32], index: 3, kind: input, shape index: {}]
  %s4 = inlined_call_operand.vmem [shape: f32[1,32], index: 4, kind: input, shape index: {}]
  %s5 = inlined_call_operand.vmem [shape: bf16[32,128], index: 5, kind: input, shape index: {}]
  %s6 = inlined_call_operand.vmem [shape: f32[1,128], index: 6, kind: input, shape index: {}]
  %s7 = inlined_call_operand.hbm [shape: f32[2,32,16,128], index: 7, kind: output, shape index: {}]
  %s8 = sld [smem:[#allocation0]]
  $region65: #{tpu_custom_call.1} parent=0
    _
  %s10 = ssub.s32 1, %s8
  %s11 = scalar_select 0, %s10, %s8
  $region1: #{tpu_custom_call.1} parent=0
    #allocation3 [shape = 'u8[262144]{0}', space=vmem, size = 0x40000, scoped, tag = 'input window, operand 0']
    #allocation4 [shape = 's32[2]{0}', space=sflag, size = 0x8, scoped, tag = 'scoped memory for tpu_custom_call.1']
    #allocation5 [shape = 's32[2]{0}', space=sflag, size = 0x8, scoped, tag = 'scoped memory for tpu_custom_call.1']
    #allocation6 [shape = 'u8[262144]{0}', space=vmem, size = 0x40000, scoped, tag = 'output window, operand 0']
    %12 = vsyncpa [#allocation4], 0
    %s13 = scalar_lea.sflag [#allocation4], 1
    %14 = vsyncpa %s13, 0
    %15 = vsyncpa [#allocation5], 0
    %s16 = scalar_lea.sflag [#allocation5], 1
    %17 = vsyncpa %s16, 0
    loop: start=0, step=1, limit=6
    $region2: #{tpu_custom_call.1} parent=1 // loop_pre_header
      _
    $region3: #{tpu_custom_call.1} parent=1 // loop_header
      %s19 = sphi 0, %s23
      %p20 = scmp.ge.s32.totalorder %s19, 6
      %s26 = sphi 0, %s38
      %s27 = sphi 0, %s34
      %s28 = sphi 0, %s26
      %s29 = sphi 0, %s27
      %s30 = sphi 0, %s28
      %s31 = sphi 0, %s29
      %s41 = sphi 0, %s43
      %s44 = sphi 0, %s41
      %s45 = sphi 0, %s44
      %s61 = sphi 0, %s45
      %s65 = sphi 0, %s65
      %s67 = sphi 0, %s65
      %s68 = sphi 0, %s67
      %s82 = sphi 0, %s68
      %s86 = sphi 0, %s86
      %s88 = sphi 0, %s86
      %s89 = sphi 0, %s88
      %s103 = sphi 0, %s89
      %s107 = sphi 0, %s107
      %s109 = sphi 0, %s107
      %s110 = sphi 0, %s109
      %s124 = sphi 0, %s110
      %s128 = sphi 0, %s128
      %s130 = sphi 0, %s128
      %s131 = sphi 0, %s130
      %s145 = sphi 0, %s131
      %s149 = sphi 0, %s149
      %s151 = sphi 0, %s149
      %s152 = sphi 0, %s151
      %s166 = sphi 0, %s152
      %s170 = sphi 0, %s170
      %s172 = sphi 0, %s170
      %s173 = sphi 0, %s172
      %s187 = sphi 0, %s173
      %s195 = sphi 0, %s197
      %s198 = sphi 0, %s195
      %s199 = sphi 0, %s198
      %s215 = sphi 0, %s199
    $region4: #{tpu_custom_call.1} parent=1 // loop_header_branch
      %22 = sbr.rel (%p20) target = $region8
    $region5: #{tpu_custom_call.1} parent=1 // loop_body
      %s24 = ssub.s32 %s19, 1
      %s25 = ssub.s32 %s19, 2
      %s32 = sadd.s32 1, %s27
      %p33 = scmp.ge.s32.totalorder %s32, 2
      %s34 = scalar_select %p33, 0, %s32
      %s35 = sadd.s32 1, %s26
      %s36 = scalar_select %p33, %s35, %s26
      %p37 = scmp.ge.s32.totalorder %s36, 2
      %s38 = scalar_select %p37, 0, %s36
      %s39 = ssub.s32 %s26, %s38
      %p40 = scmp.eq.s32.totalorder %s39, 0
      %s42 = sadd.s32 %s41, 1
      %s43 = scalar_select %p40, %s41, %s42
      %p46 = pneg %p40
      %p47 = scmp.eq.s32.totalorder %s19, 3
      %p48 = por %p46, %p47
      %p49 = scmp.ne.s32.totalorder %s41, %s44
      %p50 = scmp.eq.s32.totalorder %s19, 0
      %p51 = por %p49, %p50
      %p52 = scmp.ne.s32.totalorder %s41, %s44
      %p53 = scmp.eq.s32.totalorder %s24, 3
      %p54 = por %p52, %p53
      %p55 = scmp.ne.s32.totalorder %s44, %s45
      %p56 = scmp.eq.s32.totalorder %s24, 0
      %p57 = por %p55, %p56
      %p58 = scmp.ne.s32.totalorder %s44, %s45
      %p59 = scmp.eq.s32.totalorder %s25, 3
      %p60 = por %p58, %p59
      %p62 = scmp.ne.s32.totalorder %s45, %s61
      %p63 = scmp.eq.s32.totalorder %s25, 0
      %p64 = por %p62, %p63
      %s66 = sadd.s32 %s65, 1
      %p69 = scmp.eq.s32.totalorder %s19, 3
      %p70 = scmp.ne.s32.totalorder %s65, %s67
      %p71 = scmp.eq.s32.totalorder %s19, 0
      %p72 = por %p70, %p71
      %p73 = scmp.ne.s32.totalorder %s65, %s67
      %p74 = scmp.eq.s32.totalorder %s24, 3
      %p75 = por %p73, %p74
      %p76 = scmp.ne.s32.totalorder %s67, %s68
      %p77 = scmp.eq.s32.totalorder %s24, 0
      %p78 = por %p76, %p77
      %p79 = scmp.ne.s32.totalorder %s67, %s68
      %p80 = scmp.eq.s32.totalorder %s25, 3
      %p81 = por %p79, %p80
      %p83 = scmp.ne.s32.totalorder %s68, %s82
      %p84 = scmp.eq.s32.totalorder %s25, 0
      %p85 = por %p83, %p84
      %s87 = sadd.s32 %s86, 1
      %p90 = scmp.eq.s32.totalorder %s19, 3
      %p91 = scmp.ne.s32.totalorder %s86, %s88
      %p92 = scmp.eq.s32.totalorder %s19, 0
      %p93 = por %p91, %p92
      %p94 = scmp.ne.s32.totalorder %s86, %s88
      %p95 = scmp.eq.s32.totalorder %s24, 3
      %p96 = por %p94, %p95
      %p97 = scmp.ne.s32.totalorder %s88, %s89
      %p98 = scmp.eq.s32.totalorder %s24, 0
      %p99 = por %p97, %p98
      %p100 = scmp.ne.s32.totalorder %s88, %s89
      %p101 = scmp.eq.s32.totalorder %s25, 3
      %p102 = por %p100, %p101
      %p104 = scmp.ne.s32.totalorder %s89, %s103
      %p105 = scmp.eq.s32.totalorder %s25, 0
      %p106 = por %p104, %p105
      %s108 = sadd.s32 %s107, 1
      %p111 = scmp.eq.s32.totalorder %s19, 3
      %p112 = scmp.ne.s32.totalorder %s107, %s109
      %p113 = scmp.eq.s32.totalorder %s19, 0
      %p114 = por %p112, %p113
      %p115 = scmp.ne.s32.totalorder %s107, %s109
      %p116 = scmp.eq.s32.totalorder %s24, 3
      %p117 = por %p115, %p116
      %p118 = scmp.ne.s32.totalorder %s109, %s110
      %p119 = scmp.eq.s32.totalorder %s24, 0
      %p120 = por %p118, %p119
      %p121 = scmp.ne.s32.totalorder %s109, %s110
      %p122 = scmp.eq.s32.totalorder %s25, 3
      %p123 = por %p121, %p122
      %p125 = scmp.ne.s32.totalorder %s110, %s124
      %p126 = scmp.eq.s32.totalorder %s25, 0
      %p127 = por %p125, %p126
      %s129 = sadd.s32 %s128, 1
      %p132 = scmp.eq.s32.totalorder %s19, 3
      %p133 = scmp.ne.s32.totalorder %s128, %s130
      %p134 = scmp.eq.s32.totalorder %s19, 0
      %p135 = por %p133, %p134
      %p136 = scmp.ne.s32.totalorder %s128, %s130
      %p137 = scmp.eq.s32.totalorder %s24, 3
      %p138 = por %p136, %p137
      %p139 = scmp.ne.s32.totalorder %s130, %s131
      %p140 = scmp.eq.s32.totalorder %s24, 0
      %p141 = por %p139, %p140
      %p142 = scmp.ne.s32.totalorder %s130, %s131
      %p143 = scmp.eq.s32.totalorder %s25, 3
      %p144 = por %p142, %p143
      %p146 = scmp.ne.s32.totalorder %s131, %s145
      %p147 = scmp.eq.s32.totalorder %s25, 0
      %p148 = por %p146, %p147
      %s150 = sadd.s32 %s149, 1
      %p153 = scmp.eq.s32.totalorder %s19, 3
      %p154 = scmp.ne.s32.totalorder %s149, %s151
      %p155 = scmp.eq.s32.totalorder %s19, 0
      %p156 = por %p154, %p155
      %p157 = scmp.ne.s32.totalorder %s149, %s151
      %p158 = scmp.eq.s32.totalorder %s24, 3
      %p159 = por %p157, %p158
      %p160 = scmp.ne.s32.totalorder %s151, %s152
      %p161 = scmp.eq.s32.totalorder %s24, 0
      %p162 = por %p160, %p161
      %p163 = scmp.ne.s32.totalorder %s151, %s152
      %p164 = scmp.eq.s32.totalorder %s25, 3
      %p165 = por %p163, %p164
      %p167 = scmp.ne.s32.totalorder %s152, %s166
      %p168 = scmp.eq.s32.totalorder %s25, 0
      %p169 = por %p167, %p168
      %s171 = sadd.s32 %s170, 1
      %p174 = scmp.eq.s32.totalorder %s19, 3
      %p175 = scmp.ne.s32.totalorder %s170, %s172
      %p176 = scmp.eq.s32.totalorder %s19, 0
      %p177 = por %p175, %p176
      %p178 = scmp.ne.s32.totalorder %s170, %s172
      %p179 = scmp.eq.s32.totalorder %s24, 3
      %p180 = por %p178, %p179
      %p181 = scmp.ne.s32.totalorder %s172, %s173
      %p182 = scmp.eq.s32.totalorder %s24, 0
      %p183 = por %p181, %p182
      %p184 = scmp.ne.s32.totalorder %s172, %s173
      %p185 = scmp.eq.s32.totalorder %s25, 3
      %p186 = por %p184, %p185
      %p188 = scmp.ne.s32.totalorder %s173, %s187
      %p189 = scmp.eq.s32.totalorder %s25, 0
      %p190 = por %p188, %p189
      %s191 = ssub.s32 %s26, %s38
      %s192 = ssub.s32 %s27, %s34
      %s193 = sor.u32 %s191, %s192
      %p194 = scmp.eq.s32.totalorder %s193, 0
      %s196 = sadd.s32 %s195, 1
      %s197 = scalar_select %p194, %s195, %s196
      %p200 = pneg %p194
      %p201 = scmp.eq.s32.totalorder %s19, 3
      %p202 = por %p200, %p201
      %p203 = scmp.ne.s32.totalorder %s195, %s198
      %p204 = scmp.eq.s32.totalorder %s19, 0
      %p205 = por %p203, %p204
      %p206 = scmp.ne.s32.totalorder %s195, %s198
      %p207 = scmp.eq.s32.totalorder %s24, 3
      %p208 = por %p206, %p207
      %p209 = scmp.ne.s32.totalorder %s198, %s199
      %p210 = scmp.eq.s32.totalorder %s24, 0
      %p211 = por %p209, %p210
      %p212 = scmp.ne.s32.totalorder %s198, %s199
      %p213 = scmp.eq.s32.totalorder %s25, 3
      %p214 = por %p212, %p213
      %p216 = scmp.ne.s32.totalorder %s199, %s215
      %p217 = scmp.eq.s32.totalorder %s25, 0
      %p218 = por %p216, %p217
      %p219 = scmp.le.s32.totalorder 1, %s19
      %p220 = scmp.lt.s32.totalorder %s19, 5
      %p221 = pnand %p219, %p220
      %p222 = pneg %p221
      // Predicated region
      $region9: #{tpu_custom_call.1} parent=5 // pred_check
        _
      $region10: #{tpu_custom_call.1} parent=5 // pred_check_branch
        %224 = sbr.rel (%p221) target = $region12
      $region11: #{tpu_custom_call.1} parent=5 // pred_region
        %s225 = ssub.s32 %s19, 1
        // Predicated region
        $region13: #{tpu_custom_call.1} parent=11 // pred_check
          %p226 = pneg %p78
        $region14: #{tpu_custom_call.1} parent=11 // pred_check_branch
          %228 = sbr.rel (%p226) target = $region16
        $region15: #{tpu_custom_call.1} parent=11 // pred_region
          _
        $region16: #{tpu_custom_call.1} parent=11 // pred_fallthru
          _
        // Predicated region
        $region17: #{tpu_custom_call.1} parent=11 // pred_check
          %p229 = pneg %p99
        $region18: #{tpu_custom_call.1} parent=11 // pred_check_branch
          %231 = sbr.rel (%p229) target = $region20
        $region19: #{tpu_custom_call.1} parent=11 // pred_region
          _
        $region20: #{tpu_custom_call.1} parent=11 // pred_fallthru
          _
        // Predicated region
        $region21: #{tpu_custom_call.1} parent=11 // pred_check
          %p232 = pneg %p120
        $region22: #{tpu_custom_call.1} parent=11 // pred_check_branch
          %234 = sbr.rel (%p232) target = $region24
        $region23: #{tpu_custom_call.1} parent=11 // pred_region
          _
        $region24: #{tpu_custom_call.1} parent=11 // pred_fallthru
          _
        // Predicated region
        $region25: #{tpu_custom_call.1} parent=11 // pred_check
          %p235 = pneg %p141
        $region26: #{tpu_custom_call.1} parent=11 // pred_check_branch
          %237 = sbr.rel (%p235) target = $region28
        $region27: #{tpu_custom_call.1} parent=11 // pred_region
          _
        $region28: #{tpu_custom_call.1} parent=11 // pred_fallthru
          _
        // Predicated region
        $region29: #{tpu_custom_call.1} parent=11 // pred_check
          %p238 = pneg %p162
        $region30: #{tpu_custom_call.1} parent=11 // pred_check_branch
          %240 = sbr.rel (%p238) target = $region32
        $region31: #{tpu_custom_call.1} parent=11 // pred_region
          _
        $region32: #{tpu_custom_call.1} parent=11 // pred_fallthru
          _
        // Predicated region
        $region33: #{tpu_custom_call.1} parent=11 // pred_check
          %p241 = pneg %p183
        $region34: #{tpu_custom_call.1} parent=11 // pred_check_branch
          %243 = sbr.rel (%p241) target = $region36
        $region35: #{tpu_custom_call.1} parent=11 // pred_region
          _
        $region36: #{tpu_custom_call.1} parent=11 // pred_fallthru
          _
      $region12: #{tpu_custom_call.1} parent=5 // pred_fallthru
        _
      %p244 = scmp.lt.s32.totalorder %s19, 4
      // Predicated region
      $region37: #{tpu_custom_call.1} parent=5 // pred_check
        %p245 = pneg %p244
      $region38: #{tpu_custom_call.1} parent=5 // pred_check_branch
        %247 = sbr.rel (%p245) target = $region40
      $region39: #{tpu_custom_call.1} parent=5 // pred_region
        // Predicated region
        $region41: #{tpu_custom_call.1} parent=39 // pred_check
          %p248 = pneg %p51
        $region42: #{tpu_custom_call.1} parent=39 // pred_check_branch
          %250 = sbr.rel (%p248) target = $region44
        $region43: #{tpu_custom_call.1} parent=39 // pred_region
          %s251 = sand.u32 %s41, 1
          %s252 = scalar_lea.sflag [#allocation4], %s251
          %s253 = sand.u32 %s41, 1
          %s254 = smul.addr %s253, 256
          %s255 = scalar_lea.vmem [#allocation3], %s254
          %s257 = ssub.s32 4096, 4096
          %258 = vsyncadd %s252, %s257
          %s259 = smul.addr %s26, 64
          %s260 = smul.addr %s259, 64
          %s261 = scalar_lea.hbm %s0, %s260
          %s262 = sshll.u32 %s255, 4
          %s263 = int_to_ptr.vmem [resolvable:$true] %s262
          %268 = dma.hbm_to_vmem [thread:$0]  %s261, 4096, %s263, %s252, 64, 64, 4
        $region44: #{tpu_custom_call.1} parent=39 // pred_fallthru
          _
      $region40: #{tpu_custom_call.1} parent=5 // pred_fallthru
        _
      %p269 = scmp.le.s32.totalorder 1, %s19
      %p270 = scmp.lt.s32.totalorder %s19, 5
      %p271 = pnand %p269, %p270
      %p272 = pneg %p271
      // Predicated region
      $region45: #{tpu_custom_call.1} parent=5 // pred_check
        _
      $region46: #{tpu_custom_call.1} parent=5 // pred_check_branch
        %274 = sbr.rel (%p271) target = $region48
      $region47: #{tpu_custom_call.1} parent=5 // pred_region
        %s275 = ssub.s32 %s19, 1
        %s276 = sand.u32 %s44, 1
        %s277 = scalar_lea.sflag [#allocation4], %s276
        %s278 = sand.u32 %s44, 1
        %s279 = smul.addr %s278, 256
        %s280 = scalar_lea.vmem [#allocation3], %s279
        // Predicated region
        $region49: #{tpu_custom_call.1} parent=47 // pred_check
          %p281 = pneg %p57
        $region50: #{tpu_custom_call.1} parent=47 // pred_check_branch
          %283 = sbr.rel (%p281) target = $region52
        $region51: #{tpu_custom_call.1} parent=47 // pred_region
          %284 = dma.done %s277, 4096
        $region52: #{tpu_custom_call.1} parent=47 // pred_fallthru
          _
        %s285 = sand.u32 %s44, 1
        %s286 = scalar_lea.sflag [#allocation4], %s285
        %s287 = sand.u32 %s44, 1
        %s288 = smul.addr %s287, 256
        %s289 = scalar_lea.vmem [#allocation3], %s288
        %p290 = pneg %p57
        %p291 = pneg %p54
        %p292 = pneg %p78
        %p293 = pneg %p75
        %p294 = pneg %p99
        %p295 = pneg %p96
        %p296 = pneg %p120
        %p297 = pneg %p117
        %p298 = pneg %p141
        %p299 = pneg %p138
        %p300 = pneg %p162
        %p301 = pneg %p159
        %p302 = pneg %p183
        %p303 = pneg %p180
        %p304 = pneg %p211
        %p305 = pneg %p208
        %s306 = sand.u32 %s198, 1
        %s307 = scalar_lea.sflag [#allocation5], %s306
        %s308 = sand.u32 %s198, 1
        %s309 = smul.addr %s308, 256
        %s310 = scalar_lea.vmem [#allocation6], %s309
        %s311 = smul.u32 16, %s29
        %s313 = smul.u32 %s29, 16
        %s314 = ssub.s32 %s313, 1
        %s315 = sadd.s32 %s313, 16
        %p316 = scmp.gt.s32.totalorder %s314, 0
        %s317 = scalar_select %p316, %s314, 0
        %s318 = smul.u32 %s317, 2
        %s319 = smul.addr %s318, 4
        %s320 = scalar_lea.vmem %s280, %s319 [#allocation3]
        %v321 = vld [vmem:[%s320] sm:$0xf]
        %v322 = vld [vmem:[%s320 + $0x4] sm:$0xf]
        %s323 = smul.u32 %s313, 2
        %s324 = smul.addr %s323, 4
        %s325 = scalar_lea.vmem %s280, %s324 [#allocation3]
        %v326 = vld [vmem:[%s325] sm:$0xf]
        %v327 = vld [vmem:[%s325 + $0x4] sm:$0xf]
        %v328 = vld [vmem:[%s325 + $0x8] sm:$0xf]
        %v329 = vld [vmem:[%s325 + $0xc] sm:$0xf]
        %v330 = vld [vmem:[%s325 + $0x10] sm:$0xf]
        %v331 = vld [vmem:[%s325 + $0x14] sm:$0xf]
        %v332 = vld [vmem:[%s325 + $0x18] sm:$0xf]
        %v333 = vld [vmem:[%s325 + $0x1c] sm:$0xf]
        %v334 = vld [vmem:[%s325 + $0x20] sm:$0xf]
        %v335 = vld [vmem:[%s325 + $0x24] sm:$0xf]
        %v336 = vld [vmem:[%s325 + $0x28] sm:$0xf]
        %v337 = vld [vmem:[%s325 + $0x2c] sm:$0xf]
        %v338 = vld [vmem:[%s325 + $0x30] sm:$0xf]
        %v339 = vld [vmem:[%s325 + $0x34] sm:$0xf]
        %v340 = vld [vmem:[%s325 + $0x38] sm:$0xf]
        %v341 = vld [vmem:[%s325 + $0x3c] sm:$0xf]
        %v342 = vld [vmem:[%s325 + $0x40] sm:$0xf]
        %v343 = vld [vmem:[%s325 + $0x44] sm:$0xf]
        %v344 = vld [vmem:[%s325 + $0x48] sm:$0xf]
        %v345 = vld [vmem:[%s325 + $0x4c] sm:$0xf]
        %v346 = vld [vmem:[%s325 + $0x50] sm:$0xf]
        %v347 = vld [vmem:[%s325 + $0x54] sm:$0xf]
        %v348 = vld [vmem:[%s325 + $0x58] sm:$0xf]
        %v349 = vld [vmem:[%s325 + $0x5c] sm:$0xf]
        %v350 = vld [vmem:[%s325 + $0x60] sm:$0xf]
        %v351 = vld [vmem:[%s325 + $0x64] sm:$0xf]
        %v352 = vld [vmem:[%s325 + $0x68] sm:$0xf]
        %v353 = vld [vmem:[%s325 + $0x6c] sm:$0xf]
        %v354 = vld [vmem:[%s325 + $0x70] sm:$0xf]
        %v355 = vld [vmem:[%s325 + $0x74] sm:$0xf]
        %v356 = vld [vmem:[%s325 + $0x78] sm:$0xf]
        %v357 = vld [vmem:[%s325 + $0x7c] sm:$0xf]
        %p358 = scmp.lt.s32.totalorder %s315, 31
        %s359 = scalar_select %p358, %s315, 31
        %s360 = smul.u32 %s359, 2
        %s361 = smul.addr %s360, 4
        %s362 = scalar_lea.vmem %s280, %s361 [#allocation3]
        %v363 = vld [vmem:[%s362] sm:$0xf]
        %v364 = vld [vmem:[%s362 + $0x4] sm:$0xf]
        %v365 = vld [vmem:[%s1] sm:$0xf]
        %v366 = vld [vmem:[%s1 + $0x4] sm:$0xf]
        %v367 = vld [vmem:[%s1 + $0x8] sm:$0xf]
        %v368 = vld [vmem:[%s1 + $0xc] sm:$0xf]
        %v369 = vld [vmem:[%s1 + $0x10] sm:$0xf]
        %v370 = vld [vmem:[%s1 + $0x14] sm:$0xf]
        %v371 = vld [vmem:[%s1 + $0x18] sm:$0xf]
        %v372 = vld [vmem:[%s1 + $0x1c] sm:$0xf]
        %v373 = vld [vmem:[%s1 + $0x20] sm:$0xf]
        %v374 = vld [vmem:[%s1 + $0x24] sm:$0xf]
        %v375 = vld [vmem:[%s1 + $0x28] sm:$0xf]
        %v376 = vld [vmem:[%s1 + $0x2c] sm:$0xf]
        %v377 = vld [vmem:[%s1 + $0x30] sm:$0xf]
        %v378 = vld [vmem:[%s1 + $0x34] sm:$0xf]
        %v379 = vld [vmem:[%s1 + $0x38] sm:$0xf]
        %v380 = vld [vmem:[%s1 + $0x3c] sm:$0xf]
        %v381 = vld [vmem:[%s2] sm:$0x1]
        %v383 = vlaneseq
        %v384 = vshrl.u32 %v383, 7
        %v385 = vsub.s32 0, %v384
        %v386 = vrot.slane %v381, %v385
        %v424 = vunpack.c.l.b16 %v321
        %v425 = vunpack.c.l.b16 %v322
        %v426 = vunpack.c.l.b16 %v326
        %v427 = vunpack.c.l.b16 %v327
        %v428 = vunpack.c.l.b16 %v328
        %v429 = vunpack.c.l.b16 %v329
        %v430 = vunpack.c.l.b16 %v330
        %v431 = vunpack.c.l.b16 %v331
        %v432 = vunpack.c.l.b16 %v332
        %v433 = vunpack.c.l.b16 %v333
        %v434 = vunpack.c.l.b16 %v334
        %v435 = vunpack.c.l.b16 %v335
        %v436 = vunpack.c.l.b16 %v336
        %v437 = vunpack.c.l.b16 %v337
        %v438 = vunpack.c.l.b16 %v338
        %v439 = vunpack.c.l.b16 %v339
        %v440 = vunpack.c.l.b16 %v340
        %v441 = vunpack.c.l.b16 %v341
        %v442 = vunpack.c.l.b16 %v342
        %v443 = vunpack.c.l.b16 %v343
        %v444 = vunpack.c.l.b16 %v344
        %v445 = vunpack.c.l.b16 %v345
        %v446 = vunpack.c.l.b16 %v346
        %v447 = vunpack.c.l.b16 %v347
        %v448 = vunpack.c.l.b16 %v348
        %v449 = vunpack.c.l.b16 %v349
        %v450 = vunpack.c.l.b16 %v350
        %v451 = vunpack.c.l.b16 %v351
        %v452 = vunpack.c.l.b16 %v352
        %v453 = vunpack.c.l.b16 %v353
        %v454 = vunpack.c.l.b16 %v354
        %v455 = vunpack.c.l.b16 %v355
        %v456 = vunpack.c.l.b16 %v356
        %v457 = vunpack.c.l.b16 %v357
        %v458 = vunpack.c.l.b16 %v363
        %v459 = vunpack.c.l.b16 %v364
        %v460 = vpack.c.b16 %v425, %v424
        %v461 = vpack.c.b16 %v427, %v426
        %v462 = vpack.c.b16 %v429, %v428
        %v463 = vpack.c.b16 %v431, %v430
        %v464 = vpack.c.b16 %v433, %v432
        %v465 = vpack.c.b16 %v435, %v434
        %v466 = vpack.c.b16 %v437, %v436
        %v467 = vpack.c.b16 %v439, %v438
        %v468 = vpack.c.b16 %v441, %v440
        %v469 = vpack.c.b16 %v443, %v442
        %v470 = vpack.c.b16 %v445, %v444
        %v471 = vpack.c.b16 %v447, %v446
        %v472 = vpack.c.b16 %v449, %v448
        %v473 = vpack.c.b16 %v451, %v450
        %v474 = vpack.c.b16 %v453, %v452
        %v475 = vpack.c.b16 %v455, %v454
        %v476 = vpack.c.b16 %v457, %v456
        %v477 = vpack.c.b16 %v459, %v458
        %v512 = vunpack.c.l.b16 %v365
        %v513 = vunpack.c.l.b16 %v366
        %v514 = vunpack.c.l.b16 %v367
        %v515 = vunpack.c.l.b16 %v368
        %v516 = vunpack.c.l.b16 %v369
        %v517 = vunpack.c.l.b16 %v370
        %v518 = vunpack.c.l.b16 %v371
        %v519 = vunpack.c.l.b16 %v372
        %v520 = vunpack.c.l.b16 %v373
        %v521 = vunpack.c.l.b16 %v374
        %v522 = vunpack.c.l.b16 %v375
        %v523 = vunpack.c.l.b16 %v376
        %v524 = vunpack.c.l.b16 %v377
        %v525 = vunpack.c.l.b16 %v378
        %v526 = vunpack.c.l.b16 %v379
        %v527 = vunpack.c.l.b16 %v380
        %v528 = vpack.c.b16 %v513, %v512
        %v529 = vpack.c.b16 %v515, %v514
        %v530 = vpack.c.b16 %v517, %v516
        %v531 = vpack.c.b16 %v519, %v518
        %v532 = vpack.c.b16 %v521, %v520
        %v533 = vpack.c.b16 %v523, %v522
        %v534 = vpack.c.b16 %v525, %v524
        %v535 = vpack.c.b16 %v527, %v526
        %544 = vmatprep.subr.bf16.mxu0 0
        %545 = vmatpush1.bf16.msra.mxu0 %v528
        %546 = vmatprep.subr.bf16.mxu0 0
        %547 = vmatpush1.bf16.msra.mxu0 %v529
        %548 = vmatprep.subr.bf16.mxu0 0
        %549 = vmatpush1.bf16.msra.mxu0 %v530
        %550 = vmatprep.subr.bf16.mxu0 0
        %551 = vmatpush1.bf16.msra.mxu0 %v531
        %552 = vmatprep.subr.bf16.mxu0 0
        %553 = vmatpush1.bf16.msra.mxu0 %v532
        %554 = vmatprep.subr.bf16.mxu0 0
        %555 = vmatpush1.bf16.msra.mxu0 %v533
        %556 = vmatprep.subr.bf16.mxu0 0
        %557 = vmatpush1.bf16.msra.mxu0 %v534
        %558 = vmatprep.subr.bf16.mxu0 0
        %559 = vmatpush1.bf16.msra.mxu0 %v535
        %560 = vmatprep.subr.bf16.mxu0 0
        %561 = vmatpush1.bf16.msra.mxu0 0
        %562 = vmatprep.subr.bf16.mxu0 0
        %563 = vmatpush1.bf16.msra.mxu0 0
        %564 = vmatprep.subr.bf16.mxu0 0
        %565 = vmatpush1.bf16.msra.mxu0 0
        %566 = vmatprep.subr.bf16.mxu0 0
        %567 = vmatpush1.bf16.msra.mxu0 0
        %568 = vmatprep.subr.bf16.mxu0 0
        %569 = vmatpush1.bf16.msra.mxu0 0
        %570 = vmatprep.subr.bf16.mxu0 0
        %571 = vmatpush1.bf16.msra.mxu0 0
        %572 = vmatprep.subr.bf16.mxu0 0
        %573 = vmatpush1.bf16.msra.mxu0 0
        %574 = vmatprep.subr.bf16.mxu0 0
        %575 = vmatpush1.bf16.msra.mxu0 0
        %576 = vmatprep.mubr.bf16.mxu0 0
        %577 = vmatmul.mubr.bf16.gmra.mrb[0].mxu0 %v460
        %v578 = vpop.f32.mrb[0].mxu0
        %v579 = vadd.f32 %v386, %v578
        %v580 = vpop.f32.mrb[0].mxu0
        %v581 = vpop.f32.mrb[0].mxu0
        %v582 = vadd.f32 %v386, %v581
        %v583 = vpop.f32.mrb[0].mxu0
        %584 = vmatprep.mubr.bf16.mxu0 0
        %585 = vmatmul.mubr.bf16.gmra.mrb[0].mxu0 %v461
        %v586 = vpop.f32.mrb[0].mxu0
        %v587 = vadd.f32 %v386, %v586
        %v588 = vpop.f32.mrb[0].mxu0
        %v589 = vpop.f32.mrb[0].mxu0
        %v590 = vadd.f32 %v386, %v589
        %v591 = vpop.f32.mrb[0].mxu0
        %592 = vmatprep.mubr.bf16.mxu0 0
        %593 = vmatmul.mubr.bf16.gmra.mrb[0].mxu0 %v462
        %v594 = vpop.f32.mrb[0].mxu0
        %v595 = vadd.f32 %v386, %v594
        %v596 = vpop.f32.mrb[0].mxu0
        %v597 = vpop.f32.mrb[0].mxu0
        %v598 = vadd.f32 %v386, %v597
        %v599 = vpop.f32.mrb[0].mxu0
        %600 = vmatprep.mubr.bf16.mxu0 0
        %601 = vmatmul.mubr.bf16.gmra.mrb[0].mxu0 %v463
        %v602 = vpop.f32.mrb[0].mxu0
        %v603 = vadd.f32 %v386, %v602
        %v604 = vpop.f32.mrb[0].mxu0
        %v605 = vpop.f32.mrb[0].mxu0
        %v606 = vadd.f32 %v386, %v605
        %v607 = vpop.f32.mrb[0].mxu0
        %608 = vmatprep.mubr.bf16.mxu0 0
        %609 = vmatmul.mubr.bf16.gmra.mrb[0].mxu0 %v464
        %v610 = vpop.f32.mrb[0].mxu0
        %v611 = vadd.f32 %v386, %v610
        %v612 = vpop.f32.mrb[0].mxu0
        %v613 = vpop.f32.mrb[0].mxu0
        %v614 = vadd.f32 %v386, %v613
        %v615 = vpop.f32.mrb[0].mxu0
        %616 = vmatprep.mubr.bf16.mxu0 0
        %617 = vmatmul.mubr.bf16.gmra.mrb[0].mxu0 %v465
        %v618 = vpop.f32.mrb[0].mxu0
        %v619 = vadd.f32 %v386, %v618
        %v620 = vpop.f32.mrb[0].mxu0
        %v621 = vpop.f32.mrb[0].mxu0
        %v622 = vadd.f32 %v386, %v621
        %v623 = vpop.f32.mrb[0].mxu0
        %624 = vmatprep.mubr.bf16.mxu0 0
        %625 = vmatmul.mubr.bf16.gmra.mrb[0].mxu0 %v466
        %v626 = vpop.f32.mrb[0].mxu0
        %v627 = vadd.f32 %v386, %v626
        %v628 = vpop.f32.mrb[0].mxu0
        %v629 = vpop.f32.mrb[0].mxu0
        %v630 = vadd.f32 %v386, %v629
        %v631 = vpop.f32.mrb[0].mxu0
        %632 = vmatprep.mubr.bf16.mxu0 0
        %633 = vmatmul.mubr.bf16.gmra.mrb[0].mxu0 %v467
        %v634 = vpop.f32.mrb[0].mxu0
        %v635 = vadd.f32 %v386, %v634
        %v636 = vpop.f32.mrb[0].mxu0
        %v637 = vpop.f32.mrb[0].mxu0
        %v638 = vadd.f32 %v386, %v637
        %v639 = vpop.f32.mrb[0].mxu0
        %640 = vmatprep.mubr.bf16.mxu0 0
        %641 = vmatmul.mubr.bf16.gmra.mrb[0].mxu0 %v468
        %v642 = vpop.f32.mrb[0].mxu0
        %v643 = vadd.f32 %v386, %v642
        %v644 = vpop.f32.mrb[0].mxu0
        %v645 = vpop.f32.mrb[0].mxu0
        %v646 = vadd.f32 %v386, %v645
        %v647 = vpop.f32.mrb[0].mxu0
        %648 = vmatprep.mubr.bf16.mxu0 0
        %649 = vmatmul.mubr.bf16.gmra.mrb[0].mxu0 %v469
        %v650 = vpop.f32.mrb[0].mxu0
        %v651 = vadd.f32 %v386, %v650
        %v652 = vpop.f32.mrb[0].mxu0
        %v653 = vpop.f32.mrb[0].mxu0
        %v654 = vadd.f32 %v386, %v653
        %v655 = vpop.f32.mrb[0].mxu0
        %656 = vmatprep.mubr.bf16.mxu0 0
        %657 = vmatmul.mubr.bf16.gmra.mrb[0].mxu0 %v470
        %v658 = vpop.f32.mrb[0].mxu0
        %v659 = vadd.f32 %v386, %v658
        %v660 = vpop.f32.mrb[0].mxu0
        %v661 = vpop.f32.mrb[0].mxu0
        %v662 = vadd.f32 %v386, %v661
        %v663 = vpop.f32.mrb[0].mxu0
        %664 = vmatprep.mubr.bf16.mxu0 0
        %665 = vmatmul.mubr.bf16.gmra.mrb[0].mxu0 %v471
        %v666 = vpop.f32.mrb[0].mxu0
        %v667 = vadd.f32 %v386, %v666
        %v668 = vpop.f32.mrb[0].mxu0
        %v669 = vpop.f32.mrb[0].mxu0
        %v670 = vadd.f32 %v386, %v669
        %v671 = vpop.f32.mrb[0].mxu0
        %672 = vmatprep.mubr.bf16.mxu0 0
        %673 = vmatmul.mubr.bf16.gmra.mrb[0].mxu0 %v472
        %v674 = vpop.f32.mrb[0].mxu0
        %v675 = vadd.f32 %v386, %v674
        %v676 = vpop.f32.mrb[0].mxu0
        %v677 = vpop.f32.mrb[0].mxu0
        %v678 = vadd.f32 %v386, %v677
        %v679 = vpop.f32.mrb[0].mxu0
        %680 = vmatprep.mubr.bf16.mxu0 0
        %681 = vmatmul.mubr.bf16.gmra.mrb[0].mxu0 %v473
        %v682 = vpop.f32.mrb[0].mxu0
        %v683 = vadd.f32 %v386, %v682
        %v684 = vpop.f32.mrb[0].mxu0
        %v685 = vpop.f32.mrb[0].mxu0
        %v686 = vadd.f32 %v386, %v685
        %v687 = vpop.f32.mrb[0].mxu0
        %688 = vmatprep.mubr.bf16.mxu0 0
        %689 = vmatmul.mubr.bf16.gmra.mrb[0].mxu0 %v474
        %v690 = vpop.f32.mrb[0].mxu0
        %v691 = vadd.f32 %v386, %v690
        %v692 = vpop.f32.mrb[0].mxu0
        %v693 = vpop.f32.mrb[0].mxu0
        %v694 = vadd.f32 %v386, %v693
        %v695 = vpop.f32.mrb[0].mxu0
        %696 = vmatprep.mubr.bf16.mxu0 0
        %697 = vmatmul.mubr.bf16.gmra.mrb[0].mxu0 %v475
        %v698 = vpop.f32.mrb[0].mxu0
        %v699 = vadd.f32 %v386, %v698
        %v700 = vpop.f32.mrb[0].mxu0
        %v701 = vpop.f32.mrb[0].mxu0
        %v702 = vadd.f32 %v386, %v701
        %v703 = vpop.f32.mrb[0].mxu0
        %704 = vmatprep.mubr.bf16.mxu0 0
        %705 = vmatmul.mubr.bf16.gmra.mrb[0].mxu0 %v476
        %v706 = vpop.f32.mrb[0].mxu0
        %v707 = vadd.f32 %v386, %v706
        %v708 = vpop.f32.mrb[0].mxu0
        %v709 = vpop.f32.mrb[0].mxu0
        %v710 = vadd.f32 %v386, %v709
        %v711 = vpop.f32.mrb[0].mxu0
        %712 = vmatprep.mubr.bf16.mxu0 0
        %713 = vmatmul.mubr.bf16.gmra.mrb[0].mxu0 %v477
        %v714 = vpop.f32.mrb[0].mxu0
        %v715 = vadd.f32 %v386, %v714
        %v716 = vpop.f32.mrb[0].mxu0
        %v717 = vpop.f32.mrb[0].mxu0
        %v718 = vadd.f32 %v386, %v717
        %v719 = vpop.f32.mrb[0].mxu0
        %720 = vdwg.mxu0
        %v721 = vmax.f32 %v579, 0.0
        %v722 = vmax.f32 %v582, 0.0
        %v723 = vmax.f32 %v587, 0.0
        %v724 = vmax.f32 %v590, 0.0
        %v725 = vmax.f32 %v595, 0.0
        %v726 = vmax.f32 %v598, 0.0
        %v727 = vmax.f32 %v603, 0.0
        %v728 = vmax.f32 %v606, 0.0
        %v729 = vmax.f32 %v611, 0.0
        %v730 = vmax.f32 %v614, 0.0
        %v731 = vmax.f32 %v619, 0.0
        %v732 = vmax.f32 %v622, 0.0
        %v733 = vmax.f32 %v627, 0.0
        %v734 = vmax.f32 %v630, 0.0
        %v735 = vmax.f32 %v635, 0.0
        %v736 = vmax.f32 %v638, 0.0
        %v737 = vmax.f32 %v643, 0.0
        %v738 = vmax.f32 %v646, 0.0
        %v739 = vmax.f32 %v651, 0.0
        %v740 = vmax.f32 %v654, 0.0
        %v741 = vmax.f32 %v659, 0.0
        %v742 = vmax.f32 %v662, 0.0
        %v743 = vmax.f32 %v667, 0.0
        %v744 = vmax.f32 %v670, 0.0
        %v745 = vmax.f32 %v675, 0.0
        %v746 = vmax.f32 %v678, 0.0
        %v747 = vmax.f32 %v683, 0.0
        %v748 = vmax.f32 %v686, 0.0
        %v749 = vmax.f32 %v691, 0.0
        %v750 = vmax.f32 %v694, 0.0
        %v751 = vmax.f32 %v699, 0.0
        %v752 = vmax.f32 %v702, 0.0
        %v753 = vmax.f32 %v707, 0.0
        %v754 = vmax.f32 %v710, 0.0
        %v755 = vmax.f32 %v715, 0.0
        %v756 = vmax.f32 %v718, 0.0
        %v757 = vlaneseq
        %v758 = vshrl.u32 %v757, 7
        %v759 = vadd.s32 %v758, 8
        %v760 = vadd.s32 %v758, 16
        %v761 = vadd.s32 %v758, 24
        %v762 = vadd.s32 %v758, 32
        %v763 = vadd.s32 %v758, 40
        %v764 = vadd.s32 %v758, 48
        %v765 = vadd.s32 %v758, 56
        %v766 = vadd.s32 %v758, 64
        %v767 = vadd.s32 %v758, 72
        %v768 = vadd.s32 %v758, 80
        %v769 = vadd.s32 %v758, 88
        %v770 = vadd.s32 %v758, 96
        %v771 = vadd.s32 %v758, 104
        %v772 = vadd.s32 %v758, 112
        %v773 = vadd.s32 %v758, 120
        %v774 = vadd.s32 %v758, 128
        %v775 = vadd.s32 %v758, 136
        %v776 = vadd.s32 %v758, 144
        %v777 = vadd.s32 %v758, 152
        %v778 = vadd.s32 %v758, 160
        %v779 = vadd.s32 %v758, 168
        %v780 = vadd.s32 %v758, 176
        %v781 = vadd.s32 %v758, 184
        %v782 = vadd.s32 %v758, 192
        %v783 = vadd.s32 %v758, 200
        %v784 = vadd.s32 %v758, 208
        %v785 = vadd.s32 %v758, 216
        %v786 = vadd.s32 %v758, 224
        %v787 = vadd.s32 %v758, 232
        %v788 = vadd.s32 %v758, 240
        %v789 = vadd.s32 %v758, 248
        %v790 = vadd.s32 %v758, 256
        %v791 = vadd.s32 %v758, 264
        %v792 = vadd.s32 %v758, 272
        %v793 = vadd.s32 %v758, 280
        %vm794 = vcmp.ge.s32.totalorder %v758, 16
        %vm795 = vcmp.ge.s32.totalorder %v759, 16
        %vm796 = vcmp.ge.s32.totalorder %v760, 16
        %vm797 = vcmp.ge.s32.totalorder %v761, 16
        %vm798 = vcmp.ge.s32.totalorder %v762, 16
        %vm799 = vcmp.ge.s32.totalorder %v763, 16
        %vm800 = vcmp.ge.s32.totalorder %v764, 16
        %vm801 = vcmp.ge.s32.totalorder %v765, 16
        %vm802 = vcmp.ge.s32.totalorder %v766, 16
        %vm803 = vcmp.ge.s32.totalorder %v767, 16
        %vm804 = vcmp.ge.s32.totalorder %v768, 16
        %vm805 = vcmp.ge.s32.totalorder %v769, 16
        %vm806 = vcmp.ge.s32.totalorder %v770, 16
        %vm807 = vcmp.ge.s32.totalorder %v771, 16
        %vm808 = vcmp.ge.s32.totalorder %v772, 16
        %vm809 = vcmp.ge.s32.totalorder %v773, 16
        %vm810 = vcmp.ge.s32.totalorder %v774, 16
        %vm811 = vcmp.ge.s32.totalorder %v775, 16
        %vm812 = vcmp.ge.s32.totalorder %v776, 16
        %vm813 = vcmp.ge.s32.totalorder %v777, 16
        %vm814 = vcmp.ge.s32.totalorder %v778, 16
        %vm815 = vcmp.ge.s32.totalorder %v779, 16
        %vm816 = vcmp.ge.s32.totalorder %v780, 16
        %vm817 = vcmp.ge.s32.totalorder %v781, 16
        %vm818 = vcmp.ge.s32.totalorder %v782, 16
        %vm819 = vcmp.ge.s32.totalorder %v783, 16
        %vm820 = vcmp.ge.s32.totalorder %v784, 16
        %vm821 = vcmp.ge.s32.totalorder %v785, 16
        %vm822 = vcmp.ge.s32.totalorder %v786, 16
        %vm823 = vcmp.ge.s32.totalorder %v787, 16
        %vm824 = vcmp.ge.s32.totalorder %v788, 16
        %vm825 = vcmp.ge.s32.totalorder %v789, 16
        %vm826 = vcmp.ge.s32.totalorder %v790, 16
        %vm827 = vcmp.ge.s32.totalorder %v791, 16
        %vm828 = vcmp.ge.s32.totalorder %v792, 16
        %vm829 = vcmp.ge.s32.totalorder %v793, 16
        %p830 = scmp.ge.s32.totalorder %s314, 0
        %s831 = scalar_select %p830, 1, 0
        %v832 = vstv %s831
        %vm833 = vcmp.eq.s32.totalorder %v832, 1
        %vm834 = vmor %vm794, %vm833
        %vm835 = vmor %vm795, %vm833
        %vm836 = vmor %vm796, %vm833
        %vm837 = vmor %vm797, %vm833
        %vm838 = vmor %vm798, %vm833
        %vm839 = vmor %vm799, %vm833
        %vm840 = vmor %vm800, %vm833
        %vm841 = vmor %vm801, %vm833
        %vm842 = vmor %vm802, %vm833
        %vm843 = vmor %vm803, %vm833
        %vm844 = vmor %vm804, %vm833
        %vm845 = vmor %vm805, %vm833
        %vm846 = vmor %vm806, %vm833
        %vm847 = vmor %vm807, %vm833
        %vm848 = vmor %vm808, %vm833
        %vm849 = vmor %vm809, %vm833
        %vm850 = vmor %vm810, %vm833
        %vm851 = vmor %vm811, %vm833
        %vm852 = vmor %vm812, %vm833
        %vm853 = vmor %vm813, %vm833
        %vm854 = vmor %vm814, %vm833
        %vm855 = vmor %vm815, %vm833
        %vm856 = vmor %vm816, %vm833
        %vm857 = vmor %vm817, %vm833
        %vm858 = vmor %vm818, %vm833
        %vm859 = vmor %vm819, %vm833
        %vm860 = vmor %vm820, %vm833
        %vm861 = vmor %vm821, %vm833
        %vm862 = vmor %vm822, %vm833
        %vm863 = vmor %vm823, %vm833
        %vm864 = vmor %vm824, %vm833
        %vm865 = vmor %vm825, %vm833
        %vm866 = vmor %vm826, %vm833
        %vm867 = vmor %vm827, %vm833
        %vm868 = vmor %vm828, %vm833
        %vm869 = vmor %vm829, %vm833
        %vm870 = vcmp.lt.s32.totalorder %v758, 272
        %vm871 = vcmp.lt.s32.totalorder %v759, 272
        %vm872 = vcmp.lt.s32.totalorder %v760, 272
        %vm873 = vcmp.lt.s32.totalorder %v761, 272
        %vm874 = vcmp.lt.s32.totalorder %v762, 272
        %vm875 = vcmp.lt.s32.totalorder %v763, 272
        %vm876 = vcmp.lt.s32.totalorder %v764, 272
        %vm877 = vcmp.lt.s32.totalorder %v765, 272
        %vm878 = vcmp.lt.s32.totalorder %v766, 272
        %vm879 = vcmp.lt.s32.totalorder %v767, 272
        %vm880 = vcmp.lt.s32.totalorder %v768, 272
        %vm881 = vcmp.lt.s32.totalorder %v769, 272
        %vm882 = vcmp.lt.s32.totalorder %v770, 272
        %vm883 = vcmp.lt.s32.totalorder %v771, 272
        %vm884 = vcmp.lt.s32.totalorder %v772, 272
        %vm885 = vcmp.lt.s32.totalorder %v773, 272
        %vm886 = vcmp.lt.s32.totalorder %v774, 272
        %vm887 = vcmp.lt.s32.totalorder %v775, 272
        %vm888 = vcmp.lt.s32.totalorder %v776, 272
        %vm889 = vcmp.lt.s32.totalorder %v777, 272
        %vm890 = vcmp.lt.s32.totalorder %v778, 272
        %vm891 = vcmp.lt.s32.totalorder %v779, 272
        %vm892 = vcmp.lt.s32.totalorder %v780, 272
        %vm893 = vcmp.lt.s32.totalorder %v781, 272
        %vm894 = vcmp.lt.s32.totalorder %v782, 272
        %vm895 = vcmp.lt.s32.totalorder %v783, 272
        %vm896 = vcmp.lt.s32.totalorder %v784, 272
        %vm897 = vcmp.lt.s32.totalorder %v785, 272
        %vm898 = vcmp.lt.s32.totalorder %v786, 272
        %vm899 = vcmp.lt.s32.totalorder %v787, 272
        %vm900 = vcmp.lt.s32.totalorder %v788, 272
        %vm901 = vcmp.lt.s32.totalorder %v789, 272
        %vm902 = vcmp.lt.s32.totalorder %v790, 272
        %vm903 = vcmp.lt.s32.totalorder %v791, 272
        %vm904 = vcmp.lt.s32.totalorder %v792, 272
        %vm905 = vcmp.lt.s32.totalorder %v793, 272
        %p906 = scmp.lt.s32.totalorder %s315, 32
        %s907 = scalar_select %p906, 1, 0
        %v908 = vstv %s907
        %vm909 = vcmp.eq.s32.totalorder %v908, 1
        %vm910 = vmor %vm870, %vm909
        %vm911 = vmor %vm871, %vm909
        %vm912 = vmor %vm872, %vm909
        %vm913 = vmor %vm873, %vm909
        %vm914 = vmor %vm874, %vm909
        %vm915 = vmor %vm875, %vm909
        %vm916 = vmor %vm876, %vm909
        %vm917 = vmor %vm877, %vm909
        %vm918 = vmor %vm878, %vm909
        %vm919 = vmor %vm879, %vm909
        %vm920 = vmor %vm880, %vm909
        %vm921 = vmor %vm881, %vm909
        %vm922 = vmor %vm882, %vm909
        %vm923 = vmor %vm883, %vm909
        %vm924 = vmor %vm884, %vm909
        %vm925 = vmor %vm885, %vm909
        %vm926 = vmor %vm886, %vm909
        %vm927 = vmor %vm887, %vm909
        %vm928 = vmor %vm888, %vm909
        %vm929 = vmor %vm889, %vm909
        %vm930 = vmor %vm890, %vm909
        %vm931 = vmor %vm891, %vm909
        %vm932 = vmor %vm892, %vm909
        %vm933 = vmor %vm893, %vm909
        %vm934 = vmor %vm894, %vm909
        %vm935 = vmor %vm895, %vm909
        %vm936 = vmor %vm896, %vm909
        %vm937 = vmor %vm897, %vm909
        %vm938 = vmor %vm898, %vm909
        %vm939 = vmor %vm899, %vm909
        %vm940 = vmor %vm900, %vm909
        %vm941 = vmor %vm901, %vm909
        %vm942 = vmor %vm902, %vm909
        %vm943 = vmor %vm903, %vm909
        %vm944 = vmor %vm904, %vm909
        %vm945 = vmor %vm905, %vm909
        %vm946 = vmand %vm834, %vm910
        %vm947 = vmand %vm835, %vm911
        %vm948 = vmand %vm836, %vm912
        %vm949 = vmand %vm837, %vm913
        %vm950 = vmand %vm838, %vm914
        %vm951 = vmand %vm839, %vm915
        %vm952 = vmand %vm840, %vm916
        %vm953 = vmand %vm841, %vm917
        %vm954 = vmand %vm842, %vm918
        %vm955 = vmand %vm843, %vm919
        %vm956 = vmand %vm844, %vm920
        %vm957 = vmand %vm845, %vm921
        %vm958 = vmand %vm846, %vm922
        %vm959 = vmand %vm847, %vm923
        %vm960 = vmand %vm848, %vm924
        %vm961 = vmand %vm849, %vm925
        %vm962 = vmand %vm850, %vm926
        %vm963 = vmand %vm851, %vm927
        %vm964 = vmand %vm852, %vm928
        %vm965 = vmand %vm853, %vm929
        %vm966 = vmand %vm854, %vm930
        %vm967 = vmand %vm855, %vm931
        %vm968 = vmand %vm856, %vm932
        %vm969 = vmand %vm857, %vm933
        %vm970 = vmand %vm858, %vm934
        %vm971 = vmand %vm859, %vm935
        %vm972 = vmand %vm860, %vm936
        %vm973 = vmand %vm861, %vm937
        %vm974 = vmand %vm862, %vm938
        %vm975 = vmand %vm863, %vm939
        %vm976 = vmand %vm864, %vm940
        %vm977 = vmand %vm865, %vm941
        %vm978 = vmand %vm866, %vm942
        %vm979 = vmand %vm867, %vm943
        %vm980 = vmand %vm868, %vm944
        %vm981 = vmand %vm869, %vm945
        %v982 = vsel %vm946, 1, 0
        %v983 = vsel %vm947, 1, 0
        %v984 = vsel %vm948, 1, 0
        %v985 = vsel %vm949, 1, 0
        %v986 = vsel %vm950, 1, 0
        %v987 = vsel %vm951, 1, 0
        %v988 = vsel %vm952, 1, 0
        %v989 = vsel %vm953, 1, 0
        %v990 = vsel %vm954, 1, 0
        %v991 = vsel %vm955, 1, 0
        %v992 = vsel %vm956, 1, 0
        %v993 = vsel %vm957, 1, 0
        %v994 = vsel %vm958, 1, 0
        %v995 = vsel %vm959, 1, 0
        %v996 = vsel %vm960, 1, 0
        %v997 = vsel %vm961, 1, 0
        %v998 = vsel %vm962, 1, 0
        %v999 = vsel %vm963, 1, 0
        %v1000 = vsel %vm964, 1, 0
        %v1001 = vsel %vm965, 1, 0
        %v1002 = vsel %vm966, 1, 0
        %v1003 = vsel %vm967, 1, 0
        %v1004 = vsel %vm968, 1, 0
        %v1005 = vsel %vm969, 1, 0
        %v1006 = vsel %vm970, 1, 0
        %v1007 = vsel %vm971, 1, 0
        %v1008 = vsel %vm972, 1, 0
        %v1009 = vsel %vm973, 1, 0
        %v1010 = vsel %vm974, 1, 0
        %v1011 = vsel %vm975, 1, 0
        %v1012 = vsel %vm976, 1, 0
        %v1013 = vsel %vm977, 1, 0
        %v1014 = vsel %vm978, 1, 0
        %v1015 = vsel %vm979, 1, 0
        %v1016 = vsel %vm980, 1, 0
        %v1017 = vsel %vm981, 1, 0
        %vm1018 = vcmp.eq.s32.totalorder %v982, 1
        %vm1019 = vcmp.eq.s32.totalorder %v983, 1
        %vm1020 = vcmp.eq.s32.totalorder %v984, 1
        %vm1021 = vcmp.eq.s32.totalorder %v985, 1
        %vm1022 = vcmp.eq.s32.totalorder %v986, 1
        %vm1023 = vcmp.eq.s32.totalorder %v987, 1
        %vm1024 = vcmp.eq.s32.totalorder %v988, 1
        %vm1025 = vcmp.eq.s32.totalorder %v989, 1
        %vm1026 = vcmp.eq.s32.totalorder %v990, 1
        %vm1027 = vcmp.eq.s32.totalorder %v991, 1
        %vm1028 = vcmp.eq.s32.totalorder %v992, 1
        %vm1029 = vcmp.eq.s32.totalorder %v993, 1
        %vm1030 = vcmp.eq.s32.totalorder %v994, 1
        %vm1031 = vcmp.eq.s32.totalorder %v995, 1
        %vm1032 = vcmp.eq.s32.totalorder %v996, 1
        %vm1033 = vcmp.eq.s32.totalorder %v997, 1
        %vm1034 = vcmp.eq.s32.totalorder %v998, 1
        %vm1035 = vcmp.eq.s32.totalorder %v999, 1
        %vm1036 = vcmp.eq.s32.totalorder %v1000, 1
        %vm1037 = vcmp.eq.s32.totalorder %v1001, 1
        %vm1038 = vcmp.eq.s32.totalorder %v1002, 1
        %vm1039 = vcmp.eq.s32.totalorder %v1003, 1
        %vm1040 = vcmp.eq.s32.totalorder %v1004, 1
        %vm1041 = vcmp.eq.s32.totalorder %v1005, 1
        %vm1042 = vcmp.eq.s32.totalorder %v1006, 1
        %vm1043 = vcmp.eq.s32.totalorder %v1007, 1
        %vm1044 = vcmp.eq.s32.totalorder %v1008, 1
        %vm1045 = vcmp.eq.s32.totalorder %v1009, 1
        %vm1046 = vcmp.eq.s32.totalorder %v1010, 1
        %vm1047 = vcmp.eq.s32.totalorder %v1011, 1
        %vm1048 = vcmp.eq.s32.totalorder %v1012, 1
        %vm1049 = vcmp.eq.s32.totalorder %v1013, 1
        %vm1050 = vcmp.eq.s32.totalorder %v1014, 1
        %vm1051 = vcmp.eq.s32.totalorder %v1015, 1
        %vm1052 = vcmp.eq.s32.totalorder %v1016, 1
        %vm1053 = vcmp.eq.s32.totalorder %v1017, 1
        %v1054 = vsel %vm1018, %v721, 0.0
        %v1055 = vsel %vm1019, %v722, 0.0
        %v1056 = vsel %vm1020, %v723, 0.0
        %v1057 = vsel %vm1021, %v724, 0.0
        %v1058 = vsel %vm1022, %v725, 0.0
        %v1059 = vsel %vm1023, %v726, 0.0
        %v1060 = vsel %vm1024, %v727, 0.0
        %v1061 = vsel %vm1025, %v728, 0.0
        %v1062 = vsel %vm1026, %v729, 0.0
        %v1063 = vsel %vm1027, %v730, 0.0
        %v1064 = vsel %vm1028, %v731, 0.0
        %v1065 = vsel %vm1029, %v732, 0.0
        %v1066 = vsel %vm1030, %v733, 0.0
        %v1067 = vsel %vm1031, %v734, 0.0
        %v1068 = vsel %vm1032, %v735, 0.0
        %v1069 = vsel %vm1033, %v736, 0.0
        %v1070 = vsel %vm1034, %v737, 0.0
        %v1071 = vsel %vm1035, %v738, 0.0
        %v1072 = vsel %vm1036, %v739, 0.0
        %v1073 = vsel %vm1037, %v740, 0.0
        %v1074 = vsel %vm1038, %v741, 0.0
        %v1075 = vsel %vm1039, %v742, 0.0
        %v1076 = vsel %vm1040, %v743, 0.0
        %v1077 = vsel %vm1041, %v744, 0.0
        %v1078 = vsel %vm1042, %v745, 0.0
        %v1079 = vsel %vm1043, %v746, 0.0
        %v1080 = vsel %vm1044, %v747, 0.0
        %v1081 = vsel %vm1045, %v748, 0.0
        %v1082 = vsel %vm1046, %v749, 0.0
        %v1083 = vsel %vm1047, %v750, 0.0
        %v1084 = vsel %vm1048, %v751, 0.0
        %v1085 = vsel %vm1049, %v752, 0.0
        %v1086 = vsel %vm1050, %v753, 0.0
        %v1087 = vsel %vm1051, %v754, 0.0
        %v1088 = vsel %vm1052, %v755, 0.0
        %v1089 = vsel %vm1053, %v756, 0.0
        %vm1090 = vcmask 261120
        %1091 = vst.msk [vmem:[#allocation2 + $0x8] sm:$0xff] %vm1090, %v1054
        %1092 = vst.msk [vmem:[#allocation2 + $0x10] sm:$0xff] %vm1090, %v1055
        %1093 = vst.msk [vmem:[#allocation2 + $0x18] sm:$0xff] %vm1090, %v1056
        %1094 = vst.msk [vmem:[#allocation2 + $0x20] sm:$0xff] %vm1090, %v1057
        %1095 = vst.msk [vmem:[#allocation2 + $0x28] sm:$0xff] %vm1090, %v1058
        %1096 = vst.msk [vmem:[#allocation2 + $0x30] sm:$0xff] %vm1090, %v1059
        %1097 = vst.msk [vmem:[#allocation2 + $0x38] sm:$0xff] %vm1090, %v1060
        %1098 = vst.msk [vmem:[#allocation2 + $0x40] sm:$0xff] %vm1090, %v1061
        %1099 = vst.msk [vmem:[#allocation2 + $0x48] sm:$0xff] %vm1090, %v1062
        %1100 = vst.msk [vmem:[#allocation2 + $0x50] sm:$0xff] %vm1090, %v1063
        %1101 = vst.msk [vmem:[#allocation2 + $0x58] sm:$0xff] %vm1090, %v1064
        %1102 = vst.msk [vmem:[#allocation2 + $0x60] sm:$0xff] %vm1090, %v1065
        %1103 = vst.msk [vmem:[#allocation2 + $0x68] sm:$0xff] %vm1090, %v1066
        %1104 = vst.msk [vmem:[#allocation2 + $0x70] sm:$0xff] %vm1090, %v1067
        %1105 = vst.msk [vmem:[#allocation2 + $0x78] sm:$0xff] %vm1090, %v1068
        %1106 = vst.msk [vmem:[#allocation2 + $0x80] sm:$0xff] %vm1090, %v1069
        %1107 = vst.msk [vmem:[#allocation2 + $0x88] sm:$0xff] %vm1090, %v1070
        %1108 = vst.msk [vmem:[#allocation2 + $0x90] sm:$0xff] %vm1090, %v1071
        %1109 = vst.msk [vmem:[#allocation2 + $0x98] sm:$0xff] %vm1090, %v1072
        %1110 = vst.msk [vmem:[#allocation2 + $0xa0] sm:$0xff] %vm1090, %v1073
        %1111 = vst.msk [vmem:[#allocation2 + $0xa8] sm:$0xff] %vm1090, %v1074
        %1112 = vst.msk [vmem:[#allocation2 + $0xb0] sm:$0xff] %vm1090, %v1075
        %1113 = vst.msk [vmem:[#allocation2 + $0xb8] sm:$0xff] %vm1090, %v1076
        %1114 = vst.msk [vmem:[#allocation2 + $0xc0] sm:$0xff] %vm1090, %v1077
        %1115 = vst.msk [vmem:[#allocation2 + $0xc8] sm:$0xff] %vm1090, %v1078
        %1116 = vst.msk [vmem:[#allocation2 + $0xd0] sm:$0xff] %vm1090, %v1079
        %1117 = vst.msk [vmem:[#allocation2 + $0xd8] sm:$0xff] %vm1090, %v1080
        %1118 = vst.msk [vmem:[#allocation2 + $0xe0] sm:$0xff] %vm1090, %v1081
        %1119 = vst.msk [vmem:[#allocation2 + $0xe8] sm:$0xff] %vm1090, %v1082
        %1120 = vst.msk [vmem:[#allocation2 + $0xf0] sm:$0xff] %vm1090, %v1083
        %1121 = vst.msk [vmem:[#allocation2 + $0xf8] sm:$0xff] %vm1090, %v1084
        %1122 = vst.msk [vmem:[#allocation2 + $0x100] sm:$0xff] %vm1090, %v1085
        %1123 = vst.msk [vmem:[#allocation2 + $0x108] sm:$0xff] %vm1090, %v1086
        %1124 = vst.msk [vmem:[#allocation2 + $0x110] sm:$0xff] %vm1090, %v1087
        %1125 = vst.msk [vmem:[#allocation2 + $0x118] sm:$0xff] %vm1090, %v1088
        %1126 = vst.msk [vmem:[#allocation2 + $0x120] sm:$0xff] %vm1090, %v1089
        %vm1127 = vcmp.lt.s32.totalorder %v758, 0
        %v1128 = vsub.s32 0, %v758
        %v1129 = vsel %vm1127, %v1128, %v758
        %v1130 = vshrl.u32 %v1129, 4
        %v1131 = vand.u32 %v1129, 15
        %v1132 = vsub.s32 0, %v1131
        %v1133 = vsel %vm1127, %v1132, %v1131
        %vm1134 = vcmp.lt.s32.totalorder %v759, 0
        %v1135 = vsub.s32 0, %v759
        %v1136 = vsel %vm1134, %v1135, %v759
        %v1137 = vshrl.u32 %v1136, 4
        %v1138 = vand.u32 %v1136, 15
        %v1139 = vsub.s32 0, %v1138
        %v1140 = vsel %vm1134, %v1139, %v1138
        %vm1141 = vcmp.lt.s32.totalorder %v760, 0
        %v1142 = vsub.s32 0, %v760
        %v1143 = vsel %vm1141, %v1142, %v760
        %v1144 = vshrl.u32 %v1143, 4
        %v1145 = vand.u32 %v1143, 15
        %v1146 = vsub.s32 0, %v1145
        %v1147 = vsel %vm1141, %v1146, %v1145
        %vm1148 = vcmp.lt.s32.totalorder %v761, 0
        %v1149 = vsub.s32 0, %v761
        %v1150 = vsel %vm1148, %v1149, %v761
        %v1151 = vshrl.u32 %v1150, 4
        %v1152 = vand.u32 %v1150, 15
        %v1153 = vsub.s32 0, %v1152
        %v1154 = vsel %vm1148, %v1153, %v1152
        %vm1155 = vcmp.lt.s32.totalorder %v762, 0
        %v1156 = vsub.s32 0, %v762
        %v1157 = vsel %vm1155, %v1156, %v762
        %v1158 = vshrl.u32 %v1157, 4
        %v1159 = vand.u32 %v1157, 15
        %v1160 = vsub.s32 0, %v1159
        %v1161 = vsel %vm1155, %v1160, %v1159
        %vm1162 = vcmp.lt.s32.totalorder %v763, 0
        %v1163 = vsub.s32 0, %v763
        %v1164 = vsel %vm1162, %v1163, %v763
        %v1165 = vshrl.u32 %v1164, 4
        %v1166 = vand.u32 %v1164, 15
        %v1167 = vsub.s32 0, %v1166
        %v1168 = vsel %vm1162, %v1167, %v1166
        %vm1169 = vcmp.lt.s32.totalorder %v764, 0
        %v1170 = vsub.s32 0, %v764
        %v1171 = vsel %vm1169, %v1170, %v764
        %v1172 = vshrl.u32 %v1171, 4
        %v1173 = vand.u32 %v1171, 15
        %v1174 = vsub.s32 0, %v1173
        %v1175 = vsel %vm1169, %v1174, %v1173
        %vm1176 = vcmp.lt.s32.totalorder %v765, 0
        %v1177 = vsub.s32 0, %v765
        %v1178 = vsel %vm1176, %v1177, %v765
        %v1179 = vshrl.u32 %v1178, 4
        %v1180 = vand.u32 %v1178, 15
        %v1181 = vsub.s32 0, %v1180
        %v1182 = vsel %vm1176, %v1181, %v1180
        %vm1183 = vcmp.lt.s32.totalorder %v766, 0
        %v1184 = vsub.s32 0, %v766
        %v1185 = vsel %vm1183, %v1184, %v766
        %v1186 = vshrl.u32 %v1185, 4
        %v1187 = vand.u32 %v1185, 15
        %v1188 = vsub.s32 0, %v1187
        %v1189 = vsel %vm1183, %v1188, %v1187
        %vm1190 = vcmp.lt.s32.totalorder %v767, 0
        %v1191 = vsub.s32 0, %v767
        %v1192 = vsel %vm1190, %v1191, %v767
        %v1193 = vshrl.u32 %v1192, 4
        %v1194 = vand.u32 %v1192, 15
        %v1195 = vsub.s32 0, %v1194
        %v1196 = vsel %vm1190, %v1195, %v1194
        %vm1197 = vcmp.lt.s32.totalorder %v768, 0
        %v1198 = vsub.s32 0, %v768
        %v1199 = vsel %vm1197, %v1198, %v768
        %v1200 = vshrl.u32 %v1199, 4
        %v1201 = vand.u32 %v1199, 15
        %v1202 = vsub.s32 0, %v1201
        %v1203 = vsel %vm1197, %v1202, %v1201
        %vm1204 = vcmp.lt.s32.totalorder %v769, 0
        %v1205 = vsub.s32 0, %v769
        %v1206 = vsel %vm1204, %v1205, %v769
        %v1207 = vshrl.u32 %v1206, 4
        %v1208 = vand.u32 %v1206, 15
        %v1209 = vsub.s32 0, %v1208
        %v1210 = vsel %vm1204, %v1209, %v1208
        %vm1211 = vcmp.lt.s32.totalorder %v770, 0
        %v1212 = vsub.s32 0, %v770
        %v1213 = vsel %vm1211, %v1212, %v770
        %v1214 = vshrl.u32 %v1213, 4
        %v1215 = vand.u32 %v1213, 15
        %v1216 = vsub.s32 0, %v1215
        %v1217 = vsel %vm1211, %v1216, %v1215
        %vm1218 = vcmp.lt.s32.totalorder %v771, 0
        %v1219 = vsub.s32 0, %v771
        %v1220 = vsel %vm1218, %v1219, %v771
        %v1221 = vshrl.u32 %v1220, 4
        %v1222 = vand.u32 %v1220, 15
        %v1223 = vsub.s32 0, %v1222
        %v1224 = vsel %vm1218, %v1223, %v1222
        %vm1225 = vcmp.lt.s32.totalorder %v772, 0
        %v1226 = vsub.s32 0, %v772
        %v1227 = vsel %vm1225, %v1226, %v772
        %v1228 = vshrl.u32 %v1227, 4
        %v1229 = vand.u32 %v1227, 15
        %v1230 = vsub.s32 0, %v1229
        %v1231 = vsel %vm1225, %v1230, %v1229
        %vm1232 = vcmp.lt.s32.totalorder %v773, 0
        %v1233 = vsub.s32 0, %v773
        %v1234 = vsel %vm1232, %v1233, %v773
        %v1235 = vshrl.u32 %v1234, 4
        %v1236 = vand.u32 %v1234, 15
        %v1237 = vsub.s32 0, %v1236
        %v1238 = vsel %vm1232, %v1237, %v1236
        %vm1239 = vcmp.lt.s32.totalorder %v774, 0
        %v1240 = vsub.s32 0, %v774
        %v1241 = vsel %vm1239, %v1240, %v774
        %v1242 = vshrl.u32 %v1241, 4
        %v1243 = vand.u32 %v1241, 15
        %v1244 = vsub.s32 0, %v1243
        %v1245 = vsel %vm1239, %v1244, %v1243
        %vm1246 = vcmp.lt.s32.totalorder %v775, 0
        %v1247 = vsub.s32 0, %v775
        %v1248 = vsel %vm1246, %v1247, %v775
        %v1249 = vshrl.u32 %v1248, 4
        %v1250 = vand.u32 %v1248, 15
        %v1251 = vsub.s32 0, %v1250
        %v1252 = vsel %vm1246, %v1251, %v1250
        %vm1253 = vcmp.lt.s32.totalorder %v776, 0
        %v1254 = vsub.s32 0, %v776
        %v1255 = vsel %vm1253, %v1254, %v776
        %v1256 = vshrl.u32 %v1255, 4
        %v1257 = vand.u32 %v1255, 15
        %v1258 = vsub.s32 0, %v1257
        %v1259 = vsel %vm1253, %v1258, %v1257
        %vm1260 = vcmp.lt.s32.totalorder %v777, 0
        %v1261 = vsub.s32 0, %v777
        %v1262 = vsel %vm1260, %v1261, %v777
        %v1263 = vshrl.u32 %v1262, 4
        %v1264 = vand.u32 %v1262, 15
        %v1265 = vsub.s32 0, %v1264
        %v1266 = vsel %vm1260, %v1265, %v1264
        %vm1267 = vcmp.lt.s32.totalorder %v778, 0
        %v1268 = vsub.s32 0, %v778
        %v1269 = vsel %vm1267, %v1268, %v778
        %v1270 = vshrl.u32 %v1269, 4
        %v1271 = vand.u32 %v1269, 15
        %v1272 = vsub.s32 0, %v1271
        %v1273 = vsel %vm1267, %v1272, %v1271
        %vm1274 = vcmp.lt.s32.totalorder %v779, 0
        %v1275 = vsub.s32 0, %v779
        %v1276 = vsel %vm1274, %v1275, %v779
        %v1277 = vshrl.u32 %v1276, 4
        %v1278 = vand.u32 %v1276, 15
        %v1279 = vsub.s32 0, %v1278
        %v1280 = vsel %vm1274, %v1279, %v1278
        %vm1281 = vcmp.lt.s32.totalorder %v780, 0
        %v1282 = vsub.s32 0, %v780
        %v1283 = vsel %vm1281, %v1282, %v780
        %v1284 = vshrl.u32 %v1283, 4
        %v1285 = vand.u32 %v1283, 15
        %v1286 = vsub.s32 0, %v1285
        %v1287 = vsel %vm1281, %v1286, %v1285
        %vm1288 = vcmp.lt.s32.totalorder %v781, 0
        %v1289 = vsub.s32 0, %v781
        %v1290 = vsel %vm1288, %v1289, %v781
        %v1291 = vshrl.u32 %v1290, 4
        %v1292 = vand.u32 %v1290, 15
        %v1293 = vsub.s32 0, %v1292
        %v1294 = vsel %vm1288, %v1293, %v1292
        %vm1295 = vcmp.lt.s32.totalorder %v782, 0
        %v1296 = vsub.s32 0, %v782
        %v1297 = vsel %vm1295, %v1296, %v782
        %v1298 = vshrl.u32 %v1297, 4
        %v1299 = vand.u32 %v1297, 15
        %v1300 = vsub.s32 0, %v1299
        %v1301 = vsel %vm1295, %v1300, %v1299
        %vm1302 = vcmp.lt.s32.totalorder %v783, 0
        %v1303 = vsub.s32 0, %v783
        %v1304 = vsel %vm1302, %v1303, %v783
        %v1305 = vshrl.u32 %v1304, 4
        %v1306 = vand.u32 %v1304, 15
        %v1307 = vsub.s32 0, %v1306
        %v1308 = vsel %vm1302, %v1307, %v1306
        %vm1309 = vcmp.lt.s32.totalorder %v784, 0
        %v1310 = vsub.s32 0, %v784
        %v1311 = vsel %vm1309, %v1310, %v784
        %v1312 = vshrl.u32 %v1311, 4
        %v1313 = vand.u32 %v1311, 15
        %v1314 = vsub.s32 0, %v1313
        %v1315 = vsel %vm1309, %v1314, %v1313
        %vm1316 = vcmp.lt.s32.totalorder %v785, 0
        %v1317 = vsub.s32 0, %v785
        %v1318 = vsel %vm1316, %v1317, %v785
        %v1319 = vshrl.u32 %v1318, 4
        %v1320 = vand.u32 %v1318, 15
        %v1321 = vsub.s32 0, %v1320
        %v1322 = vsel %vm1316, %v1321, %v1320
        %vm1323 = vcmp.lt.s32.totalorder %v786, 0
        %v1324 = vsub.s32 0, %v786
        %v1325 = vsel %vm1323, %v1324, %v786
        %v1326 = vshrl.u32 %v1325, 4
        %v1327 = vand.u32 %v1325, 15
        %v1328 = vsub.s32 0, %v1327
        %v1329 = vsel %vm1323, %v1328, %v1327
        %vm1330 = vcmp.lt.s32.totalorder %v787, 0
        %v1331 = vsub.s32 0, %v787
        %v1332 = vsel %vm1330, %v1331, %v787
        %v1333 = vshrl.u32 %v1332, 4
        %v1334 = vand.u32 %v1332, 15
        %v1335 = vsub.s32 0, %v1334
        %v1336 = vsel %vm1330, %v1335, %v1334
        %vm1337 = vcmp.lt.s32.totalorder %v788, 0
        %v1338 = vsub.s32 0, %v788
        %v1339 = vsel %vm1337, %v1338, %v788
        %v1340 = vshrl.u32 %v1339, 4
        %v1341 = vand.u32 %v1339, 15
        %v1342 = vsub.s32 0, %v1341
        %v1343 = vsel %vm1337, %v1342, %v1341
        %vm1344 = vcmp.lt.s32.totalorder %v789, 0
        %v1345 = vsub.s32 0, %v789
        %v1346 = vsel %vm1344, %v1345, %v789
        %v1347 = vshrl.u32 %v1346, 4
        %v1348 = vand.u32 %v1346, 15
        %v1349 = vsub.s32 0, %v1348
        %v1350 = vsel %vm1344, %v1349, %v1348
        %vm1351 = vcmp.ne.s32.totalorder %v1133, 0
        %vm1352 = vcmp.ne.s32.totalorder %v1140, 0
        %vm1353 = vcmp.ne.s32.totalorder %v1147, 0
        %vm1354 = vcmp.ne.s32.totalorder %v1154, 0
        %vm1355 = vcmp.ne.s32.totalorder %v1161, 0
        %vm1356 = vcmp.ne.s32.totalorder %v1168, 0
        %vm1357 = vcmp.ne.s32.totalorder %v1175, 0
        %vm1358 = vcmp.ne.s32.totalorder %v1182, 0
        %vm1359 = vcmp.ne.s32.totalorder %v1189, 0
        %vm1360 = vcmp.ne.s32.totalorder %v1196, 0
        %vm1361 = vcmp.ne.s32.totalorder %v1203, 0
        %vm1362 = vcmp.ne.s32.totalorder %v1210, 0
        %vm1363 = vcmp.ne.s32.totalorder %v1217, 0
        %vm1364 = vcmp.ne.s32.totalorder %v1224, 0
        %vm1365 = vcmp.ne.s32.totalorder %v1231, 0
        %vm1366 = vcmp.ne.s32.totalorder %v1238, 0
        %vm1367 = vcmp.ne.s32.totalorder %v1245, 0
        %vm1368 = vcmp.ne.s32.totalorder %v1252, 0
        %vm1369 = vcmp.ne.s32.totalorder %v1259, 0
        %vm1370 = vcmp.ne.s32.totalorder %v1266, 0
        %vm1371 = vcmp.ne.s32.totalorder %v1273, 0
        %vm1372 = vcmp.ne.s32.totalorder %v1280, 0
        %vm1373 = vcmp.ne.s32.totalorder %v1287, 0
        %vm1374 = vcmp.ne.s32.totalorder %v1294, 0
        %vm1375 = vcmp.ne.s32.totalorder %v1301, 0
        %vm1376 = vcmp.ne.s32.totalorder %v1308, 0
        %vm1377 = vcmp.ne.s32.totalorder %v1315, 0
        %vm1378 = vcmp.ne.s32.totalorder %v1322, 0
        %vm1379 = vcmp.ne.s32.totalorder %v1329, 0
        %vm1380 = vcmp.ne.s32.totalorder %v1336, 0
        %vm1381 = vcmp.ne.s32.totalorder %v1343, 0
        %vm1382 = vcmp.ne.s32.totalorder %v1350, 0
        %vm1383 = vcmp.lt.s32.totalorder %v1133, 0
        %vm1384 = vcmp.lt.s32.totalorder %v1140, 0
        %vm1385 = vcmp.lt.s32.totalorder %v1147, 0
        %vm1386 = vcmp.lt.s32.totalorder %v1154, 0
        %vm1387 = vcmp.lt.s32.totalorder %v1161, 0
        %vm1388 = vcmp.lt.s32.totalorder %v1168, 0
        %vm1389 = vcmp.lt.s32.totalorder %v1175, 0
        %vm1390 = vcmp.lt.s32.totalorder %v1182, 0
        %vm1391 = vcmp.lt.s32.totalorder %v1189, 0
        %vm1392 = vcmp.lt.s32.totalorder %v1196, 0
        %vm1393 = vcmp.lt.s32.totalorder %v1203, 0
        %vm1394 = vcmp.lt.s32.totalorder %v1210, 0
        %vm1395 = vcmp.lt.s32.totalorder %v1217, 0
        %vm1396 = vcmp.lt.s32.totalorder %v1224, 0
        %vm1397 = vcmp.lt.s32.totalorder %v1231, 0
        %vm1398 = vcmp.lt.s32.totalorder %v1238, 0
        %vm1399 = vcmp.lt.s32.totalorder %v1245, 0
        %vm1400 = vcmp.lt.s32.totalorder %v1252, 0
        %vm1401 = vcmp.lt.s32.totalorder %v1259, 0
        %vm1402 = vcmp.lt.s32.totalorder %v1266, 0
        %vm1403 = vcmp.lt.s32.totalorder %v1273, 0
        %vm1404 = vcmp.lt.s32.totalorder %v1280, 0
        %vm1405 = vcmp.lt.s32.totalorder %v1287, 0
        %vm1406 = vcmp.lt.s32.totalorder %v1294, 0
        %vm1407 = vcmp.lt.s32.totalorder %v1301, 0
        %vm1408 = vcmp.lt.s32.totalorder %v1308, 0
        %vm1409 = vcmp.lt.s32.totalorder %v1315, 0
        %vm1410 = vcmp.lt.s32.totalorder %v1322, 0
        %vm1411 = vcmp.lt.s32.totalorder %v1329, 0
        %vm1412 = vcmp.lt.s32.totalorder %v1336, 0
        %vm1413 = vcmp.lt.s32.totalorder %v1343, 0
        %vm1414 = vcmp.lt.s32.totalorder %v1350, 0
        %vm1415 = vmand %vm1383, %vm1351
        %vm1416 = vmand %vm1384, %vm1352
        %vm1417 = vmand %vm1385, %vm1353
        %vm1418 = vmand %vm1386, %vm1354
        %vm1419 = vmand %vm1387, %vm1355
        %vm1420 = vmand %vm1388, %vm1356
        %vm1421 = vmand %vm1389, %vm1357
        %vm1422 = vmand %vm1390, %vm1358
        %vm1423 = vmand %vm1391, %vm1359
        %vm1424 = vmand %vm1392, %vm1360
        %vm1425 = vmand %vm1393, %vm1361
        %vm1426 = vmand %vm1394, %vm1362
        %vm1427 = vmand %vm1395, %vm1363
        %vm1428 = vmand %vm1396, %vm1364
        %vm1429 = vmand %vm1397, %vm1365
        %vm1430 = vmand %vm1398, %vm1366
        %vm1431 = vmand %vm1399, %vm1367
        %vm1432 = vmand %vm1400, %vm1368
        %vm1433 = vmand %vm1401, %vm1369
        %vm1434 = vmand %vm1402, %vm1370
        %vm1435 = vmand %vm1403, %vm1371
        %vm1436 = vmand %vm1404, %vm1372
        %vm1437 = vmand %vm1405, %vm1373
        %vm1438 = vmand %vm1406, %vm1374
        %vm1439 = vmand %vm1407, %vm1375
        %vm1440 = vmand %vm1408, %vm1376
        %vm1441 = vmand %vm1409, %vm1377
        %vm1442 = vmand %vm1410, %vm1378
        %vm1443 = vmand %vm1411, %vm1379
        %vm1444 = vmand %vm1412, %vm1380
        %vm1445 = vmand %vm1413, %vm1381
        %vm1446 = vmand %vm1414, %vm1382
        %v1447 = vadd.s32 %v1133, 16
        %v1448 = vadd.s32 %v1140, 16
        %v1449 = vadd.s32 %v1147, 16
        %v1450 = vadd.s32 %v1154, 16
        %v1451 = vadd.s32 %v1161, 16
        %v1452 = vadd.s32 %v1168, 16
        %v1453 = vadd.s32 %v1175, 16
        %v1454 = vadd.s32 %v1182, 16
        %v1455 = vadd.s32 %v1189, 16
        %v1456 = vadd.s32 %v1196, 16
        %v1457 = vadd.s32 %v1203, 16
        %v1458 = vadd.s32 %v1210, 16
        %v1459 = vadd.s32 %v1217, 16
        %v1460 = vadd.s32 %v1224, 16
        %v1461 = vadd.s32 %v1231, 16
        %v1462 = vadd.s32 %v1238, 16
        %v1463 = vadd.s32 %v1245, 16
        %v1464 = vadd.s32 %v1252, 16
        %v1465 = vadd.s32 %v1259, 16
        %v1466 = vadd.s32 %v1266, 16
        %v1467 = vadd.s32 %v1273, 16
        %v1468 = vadd.s32 %v1280, 16
        %v1469 = vadd.s32 %v1287, 16
        %v1470 = vadd.s32 %v1294, 16
        %v1471 = vadd.s32 %v1301, 16
        %v1472 = vadd.s32 %v1308, 16
        %v1473 = vadd.s32 %v1315, 16
        %v1474 = vadd.s32 %v1322, 16
        %v1475 = vadd.s32 %v1329, 16
        %v1476 = vadd.s32 %v1336, 16
        %v1477 = vadd.s32 %v1343, 16
        %v1478 = vadd.s32 %v1350, 16
        %v1479 = vsel %vm1415, %v1447, %v1133
        %v1480 = vsel %vm1416, %v1448, %v1140
        %v1481 = vsel %vm1417, %v1449, %v1147
        %v1482 = vsel %vm1418, %v1450, %v1154
        %v1483 = vsel %vm1419, %v1451, %v1161
        %v1484 = vsel %vm1420, %v1452, %v1168
        %v1485 = vsel %vm1421, %v1453, %v1175
        %v1486 = vsel %vm1422, %v1454, %v1182
        %v1487 = vsel %vm1423, %v1455, %v1189
        %v1488 = vsel %vm1424, %v1456, %v1196
        %v1489 = vsel %vm1425, %v1457, %v1203
        %v1490 = vsel %vm1426, %v1458, %v1210
        %v1491 = vsel %vm1427, %v1459, %v1217
        %v1492 = vsel %vm1428, %v1460, %v1224
        %v1493 = vsel %vm1429, %v1461, %v1231
        %v1494 = vsel %vm1430, %v1462, %v1238
        %v1495 = vsel %vm1431, %v1463, %v1245
        %v1496 = vsel %vm1432, %v1464, %v1252
        %v1497 = vsel %vm1433, %v1465, %v1259
        %v1498 = vsel %vm1434, %v1466, %v1266
        %v1499 = vsel %vm1435, %v1467, %v1273
        %v1500 = vsel %vm1436, %v1468, %v1280
        %v1501 = vsel %vm1437, %v1469, %v1287
        %v1502 = vsel %vm1438, %v1470, %v1294
        %v1503 = vsel %vm1439, %v1471, %v1301
        %v1504 = vsel %vm1440, %v1472, %v1308
        %v1505 = vsel %vm1441, %v1473, %v1315
        %v1506 = vsel %vm1442, %v1474, %v1322
        %v1507 = vsel %vm1443, %v1475, %v1329
        %v1508 = vsel %vm1444, %v1476, %v1336
        %v1509 = vsel %vm1445, %v1477, %v1343
        %v1510 = vsel %vm1446, %v1478, %v1350
        %v1511 = vld [vmem:[#allocation2 + $0x7] sm:$0xff]
        %v1512 = vld [vmem:[#allocation2 + $0xf] sm:$0xff]
        %v1513 = vld [vmem:[#allocation2 + $0x17] sm:$0xff]
        %v1514 = vld [vmem:[#allocation2 + $0x1f] sm:$0xff]
        %v1515 = vld [vmem:[#allocation2 + $0x27] sm:$0xff]
        %v1516 = vld [vmem:[#allocation2 + $0x2f] sm:$0xff]
        %v1517 = vld [vmem:[#allocation2 + $0x37] sm:$0xff]
        %v1518 = vld [vmem:[#allocation2 + $0x3f] sm:$0xff]
        %v1519 = vld [vmem:[#allocation2 + $0x47] sm:$0xff]
        %v1520 = vld [vmem:[#allocation2 + $0x4f] sm:$0xff]
        %v1521 = vld [vmem:[#allocation2 + $0x57] sm:$0xff]
        %v1522 = vld [vmem:[#allocation2 + $0x5f] sm:$0xff]
        %v1523 = vld [vmem:[#allocation2 + $0x67] sm:$0xff]
        %v1524 = vld [vmem:[#allocation2 + $0x6f] sm:$0xff]
        %v1525 = vld [vmem:[#allocation2 + $0x77] sm:$0xff]
        %v1526 = vld [vmem:[#allocation2 + $0x7f] sm:$0xff]
        %v1527 = vld [vmem:[#allocation2 + $0x87] sm:$0xff]
        %v1528 = vld [vmem:[#allocation2 + $0x8f] sm:$0xff]
        %v1529 = vld [vmem:[#allocation2 + $0x97] sm:$0xff]
        %v1530 = vld [vmem:[#allocation2 + $0x9f] sm:$0xff]
        %v1531 = vld [vmem:[#allocation2 + $0xa7] sm:$0xff]
        %v1532 = vld [vmem:[#allocation2 + $0xaf] sm:$0xff]
        %v1533 = vld [vmem:[#allocation2 + $0xb7] sm:$0xff]
        %v1534 = vld [vmem:[#allocation2 + $0xbf] sm:$0xff]
        %v1535 = vld [vmem:[#allocation2 + $0xc7] sm:$0xff]
        %v1536 = vld [vmem:[#allocation2 + $0xcf] sm:$0xff]
        %v1537 = vld [vmem:[#allocation2 + $0xd7] sm:$0xff]
        %v1538 = vld [vmem:[#allocation2 + $0xdf] sm:$0xff]
        %v1539 = vld [vmem:[#allocation2 + $0xe7] sm:$0xff]
        %v1540 = vld [vmem:[#allocation2 + $0xef] sm:$0xff]
        %v1541 = vld [vmem:[#allocation2 + $0xf7] sm:$0xff]
        %v1542 = vld [vmem:[#allocation2 + $0xff] sm:$0xff]
        %vm1543 = vcmp.ge.s32.totalorder %v1479, 1
        %vm1544 = vcmp.ge.s32.totalorder %v1480, 1
        %vm1545 = vcmp.ge.s32.totalorder %v1481, 1
        %vm1546 = vcmp.ge.s32.totalorder %v1482, 1
        %vm1547 = vcmp.ge.s32.totalorder %v1483, 1
        %vm1548 = vcmp.ge.s32.totalorder %v1484, 1
        %vm1549 = vcmp.ge.s32.totalorder %v1485, 1
        %vm1550 = vcmp.ge.s32.totalorder %v1486, 1
        %vm1551 = vcmp.ge.s32.totalorder %v1487, 1
        %vm1552 = vcmp.ge.s32.totalorder %v1488, 1
        %vm1553 = vcmp.ge.s32.totalorder %v1489, 1
        %vm1554 = vcmp.ge.s32.totalorder %v1490, 1
        %vm1555 = vcmp.ge.s32.totalorder %v1491, 1
        %vm1556 = vcmp.ge.s32.totalorder %v1492, 1
        %vm1557 = vcmp.ge.s32.totalorder %v1493, 1
        %vm1558 = vcmp.ge.s32.totalorder %v1494, 1
        %vm1559 = vcmp.ge.s32.totalorder %v1495, 1
        %vm1560 = vcmp.ge.s32.totalorder %v1496, 1
        %vm1561 = vcmp.ge.s32.totalorder %v1497, 1
        %vm1562 = vcmp.ge.s32.totalorder %v1498, 1
        %vm1563 = vcmp.ge.s32.totalorder %v1499, 1
        %vm1564 = vcmp.ge.s32.totalorder %v1500, 1
        %vm1565 = vcmp.ge.s32.totalorder %v1501, 1
        %vm1566 = vcmp.ge.s32.totalorder %v1502, 1
        %vm1567 = vcmp.ge.s32.totalorder %v1503, 1
        %vm1568 = vcmp.ge.s32.totalorder %v1504, 1
        %vm1569 = vcmp.ge.s32.totalorder %v1505, 1
        %vm1570 = vcmp.ge.s32.totalorder %v1506, 1
        %vm1571 = vcmp.ge.s32.totalorder %v1507, 1
        %vm1572 = vcmp.ge.s32.totalorder %v1508, 1
        %vm1573 = vcmp.ge.s32.totalorder %v1509, 1
        %vm1574 = vcmp.ge.s32.totalorder %v1510, 1
        %v1575 = vsel %vm1543, 1, 0
        %v1576 = vsel %vm1544, 1, 0
        %v1577 = vsel %vm1545, 1, 0
        %v1578 = vsel %vm1546, 1, 0
        %v1579 = vsel %vm1547, 1, 0
        %v1580 = vsel %vm1548, 1, 0
        %v1581 = vsel %vm1549, 1, 0
        %v1582 = vsel %vm1550, 1, 0
        %v1583 = vsel %vm1551, 1, 0
        %v1584 = vsel %vm1552, 1, 0
        %v1585 = vsel %vm1553, 1, 0
        %v1586 = vsel %vm1554, 1, 0
        %v1587 = vsel %vm1555, 1, 0
        %v1588 = vsel %vm1556, 1, 0
        %v1589 = vsel %vm1557, 1, 0
        %v1590 = vsel %vm1558, 1, 0
        %v1591 = vsel %vm1559, 1, 0
        %v1592 = vsel %vm1560, 1, 0
        %v1593 = vsel %vm1561, 1, 0
        %v1594 = vsel %vm1562, 1, 0
        %v1595 = vsel %vm1563, 1, 0
        %v1596 = vsel %vm1564, 1, 0
        %v1597 = vsel %vm1565, 1, 0
        %v1598 = vsel %vm1566, 1, 0
        %v1599 = vsel %vm1567, 1, 0
        %v1600 = vsel %vm1568, 1, 0
        %v1601 = vsel %vm1569, 1, 0
        %v1602 = vsel %vm1570, 1, 0
        %v1603 = vsel %vm1571, 1, 0
        %v1604 = vsel %vm1572, 1, 0
        %v1605 = vsel %vm1573, 1, 0
        %v1606 = vsel %vm1574, 1, 0
        %vm1607 = vcmp.eq.s32.totalorder %v1575, 1
        %vm1608 = vcmp.eq.s32.totalorder %v1576, 1
        %vm1609 = vcmp.eq.s32.totalorder %v1577, 1
        %vm1610 = vcmp.eq.s32.totalorder %v1578, 1
        %vm1611 = vcmp.eq.s32.totalorder %v1579, 1
        %vm1612 = vcmp.eq.s32.totalorder %v1580, 1
        %vm1613 = vcmp.eq.s32.totalorder %v1581, 1
        %vm1614 = vcmp.eq.s32.totalorder %v1582, 1
        %vm1615 = vcmp.eq.s32.totalorder %v1583, 1
        %vm1616 = vcmp.eq.s32.totalorder %v1584, 1
        %vm1617 = vcmp.eq.s32.totalorder %v1585, 1
        %vm1618 = vcmp.eq.s32.totalorder %v1586, 1
        %vm1619 = vcmp.eq.s32.totalorder %v1587, 1
        %vm1620 = vcmp.eq.s32.totalorder %v1588, 1
        %vm1621 = vcmp.eq.s32.totalorder %v1589, 1
        %vm1622 = vcmp.eq.s32.totalorder %v1590, 1
        %vm1623 = vcmp.eq.s32.totalorder %v1591, 1
        %vm1624 = vcmp.eq.s32.totalorder %v1592, 1
        %vm1625 = vcmp.eq.s32.totalorder %v1593, 1
        %vm1626 = vcmp.eq.s32.totalorder %v1594, 1
        %vm1627 = vcmp.eq.s32.totalorder %v1595, 1
        %vm1628 = vcmp.eq.s32.totalorder %v1596, 1
        %vm1629 = vcmp.eq.s32.totalorder %v1597, 1
        %vm1630 = vcmp.eq.s32.totalorder %v1598, 1
        %vm1631 = vcmp.eq.s32.totalorder %v1599, 1
        %vm1632 = vcmp.eq.s32.totalorder %v1600, 1
        %vm1633 = vcmp.eq.s32.totalorder %v1601, 1
        %vm1634 = vcmp.eq.s32.totalorder %v1602, 1
        %vm1635 = vcmp.eq.s32.totalorder %v1603, 1
        %vm1636 = vcmp.eq.s32.totalorder %v1604, 1
        %vm1637 = vcmp.eq.s32.totalorder %v1605, 1
        %vm1638 = vcmp.eq.s32.totalorder %v1606, 1
        %v1639 = vsel %vm1607, %v1511, 0.0
        %v1640 = vsel %vm1608, %v1512, 0.0
        %v1641 = vsel %vm1609, %v1513, 0.0
        %v1642 = vsel %vm1610, %v1514, 0.0
        %v1643 = vsel %vm1611, %v1515, 0.0
        %v1644 = vsel %vm1612, %v1516, 0.0
        %v1645 = vsel %vm1613, %v1517, 0.0
        %v1646 = vsel %vm1614, %v1518, 0.0
        %v1647 = vsel %vm1615, %v1519, 0.0
        %v1648 = vsel %vm1616, %v1520, 0.0
        %v1649 = vsel %vm1617, %v1521, 0.0
        %v1650 = vsel %vm1618, %v1522, 0.0
        %v1651 = vsel %vm1619, %v1523, 0.0
        %v1652 = vsel %vm1620, %v1524, 0.0
        %v1653 = vsel %vm1621, %v1525, 0.0
        %v1654 = vsel %vm1622, %v1526, 0.0
        %v1655 = vsel %vm1623, %v1527, 0.0
        %v1656 = vsel %vm1624, %v1528, 0.0
        %v1657 = vsel %vm1625, %v1529, 0.0
        %v1658 = vsel %vm1626, %v1530, 0.0
        %v1659 = vsel %vm1627, %v1531, 0.0
        %v1660 = vsel %vm1628, %v1532, 0.0
        %v1661 = vsel %vm1629, %v1533, 0.0
        %v1662 = vsel %vm1630, %v1534, 0.0
        %v1663 = vsel %vm1631, %v1535, 0.0
        %v1664 = vsel %vm1632, %v1536, 0.0
        %v1665 = vsel %vm1633, %v1537, 0.0
        %v1666 = vsel %vm1634, %v1538, 0.0
        %v1667 = vsel %vm1635, %v1539, 0.0
        %v1668 = vsel %vm1636, %v1540, 0.0
        %v1669 = vsel %vm1637, %v1541, 0.0
        %v1670 = vsel %vm1638, %v1542, 0.0
        %v1671 = vld [vmem:[#allocation2 + $0x8] sm:$0xff]
        %v1672 = vld [vmem:[#allocation2 + $0x10] sm:$0xff]
        %v1673 = vld [vmem:[#allocation2 + $0x18] sm:$0xff]
        %v1674 = vld [vmem:[#allocation2 + $0x20] sm:$0xff]
        %v1675 = vld [vmem:[#allocation2 + $0x28] sm:$0xff]
        %v1676 = vld [vmem:[#allocation2 + $0x30] sm:$0xff]
        %v1677 = vld [vmem:[#allocation2 + $0x38] sm:$0xff]
        %v1678 = vld [vmem:[#allocation2 + $0x40] sm:$0xff]
        %v1679 = vld [vmem:[#allocation2 + $0x48] sm:$0xff]
        %v1680 = vld [vmem:[#allocation2 + $0x50] sm:$0xff]
        %v1681 = vld [vmem:[#allocation2 + $0x58] sm:$0xff]
        %v1682 = vld [vmem:[#allocation2 + $0x60] sm:$0xff]
        %v1683 = vld [vmem:[#allocation2 + $0x68] sm:$0xff]
        %v1684 = vld [vmem:[#allocation2 + $0x70] sm:$0xff]
        %v1685 = vld [vmem:[#allocation2 + $0x78] sm:$0xff]
        %v1686 = vld [vmem:[#allocation2 + $0x80] sm:$0xff]
        %v1687 = vld [vmem:[#allocation2 + $0x88] sm:$0xff]
        %v1688 = vld [vmem:[#allocation2 + $0x90] sm:$0xff]
        %v1689 = vld [vmem:[#allocation2 + $0x98] sm:$0xff]
        %v1690 = vld [vmem:[#allocation2 + $0xa0] sm:$0xff]
        %v1691 = vld [vmem:[#allocation2 + $0xa8] sm:$0xff]
        %v1692 = vld [vmem:[#allocation2 + $0xb0] sm:$0xff]
        %v1693 = vld [vmem:[#allocation2 + $0xb8] sm:$0xff]
        %v1694 = vld [vmem:[#allocation2 + $0xc0] sm:$0xff]
        %v1695 = vld [vmem:[#allocation2 + $0xc8] sm:$0xff]
        %v1696 = vld [vmem:[#allocation2 + $0xd0] sm:$0xff]
        %v1697 = vld [vmem:[#allocation2 + $0xd8] sm:$0xff]
        %v1698 = vld [vmem:[#allocation2 + $0xe0] sm:$0xff]
        %v1699 = vld [vmem:[#allocation2 + $0xe8] sm:$0xff]
        %v1700 = vld [vmem:[#allocation2 + $0xf0] sm:$0xff]
        %v1701 = vld [vmem:[#allocation2 + $0xf8] sm:$0xff]
        %v1702 = vld [vmem:[#allocation2 + $0x100] sm:$0xff]
        %v1703 = vld [vmem:[#allocation2 + $0x9] sm:$0xff]
        %v1704 = vld [vmem:[#allocation2 + $0x11] sm:$0xff]
        %v1705 = vld [vmem:[#allocation2 + $0x19] sm:$0xff]
        %v1706 = vld [vmem:[#allocation2 + $0x21] sm:$0xff]
        %v1707 = vld [vmem:[#allocation2 + $0x29] sm:$0xff]
        %v1708 = vld [vmem:[#allocation2 + $0x31] sm:$0xff]
        %v1709 = vld [vmem:[#allocation2 + $0x39] sm:$0xff]
        %v1710 = vld [vmem:[#allocation2 + $0x41] sm:$0xff]
        %v1711 = vld [vmem:[#allocation2 + $0x49] sm:$0xff]
        %v1712 = vld [vmem:[#allocation2 + $0x51] sm:$0xff]
        %v1713 = vld [vmem:[#allocation2 + $0x59] sm:$0xff]
        %v1714 = vld [vmem:[#allocation2 + $0x61] sm:$0xff]
        %v1715 = vld [vmem:[#allocation2 + $0x69] sm:$0xff]
        %v1716 = vld [vmem:[#allocation2 + $0x71] sm:$0xff]
        %v1717 = vld [vmem:[#allocation2 + $0x79] sm:$0xff]
        %v1718 = vld [vmem:[#allocation2 + $0x81] sm:$0xff]
        %v1719 = vld [vmem:[#allocation2 + $0x89] sm:$0xff]
        %v1720 = vld [vmem:[#allocation2 + $0x91] sm:$0xff]
        %v1721 = vld [vmem:[#allocation2 + $0x99] sm:$0xff]
        %v1722 = vld [vmem:[#allocation2 + $0xa1] sm:$0xff]
        %v1723 = vld [vmem:[#allocation2 + $0xa9] sm:$0xff]
        %v1724 = vld [vmem:[#allocation2 + $0xb1] sm:$0xff]
        %v1725 = vld [vmem:[#allocation2 + $0xb9] sm:$0xff]
        %v1726 = vld [vmem:[#allocation2 + $0xc1] sm:$0xff]
        %v1727 = vld [vmem:[#allocation2 + $0xc9] sm:$0xff]
        %v1728 = vld [vmem:[#allocation2 + $0xd1] sm:$0xff]
        %v1729 = vld [vmem:[#allocation2 + $0xd9] sm:$0xff]
        %v1730 = vld [vmem:[#allocation2 + $0xe1] sm:$0xff]
        %v1731 = vld [vmem:[#allocation2 + $0xe9] sm:$0xff]
        %v1732 = vld [vmem:[#allocation2 + $0xf1] sm:$0xff]
        %v1733 = vld [vmem:[#allocation2 + $0xf9] sm:$0xff]
        %v1734 = vld [vmem:[#allocation2 + $0x101] sm:$0xff]
        %vm1735 = vcmp.le.s32.totalorder %v1479, 14
        %vm1736 = vcmp.le.s32.totalorder %v1480, 14
        %vm1737 = vcmp.le.s32.totalorder %v1481, 14
        %vm1738 = vcmp.le.s32.totalorder %v1482, 14
        %vm1739 = vcmp.le.s32.totalorder %v1483, 14
        %vm1740 = vcmp.le.s32.totalorder %v1484, 14
        %vm1741 = vcmp.le.s32.totalorder %v1485, 14
        %vm1742 = vcmp.le.s32.totalorder %v1486, 14
        %vm1743 = vcmp.le.s32.totalorder %v1487, 14
        %vm1744 = vcmp.le.s32.totalorder %v1488, 14
        %vm1745 = vcmp.le.s32.totalorder %v1489, 14
        %vm1746 = vcmp.le.s32.totalorder %v1490, 14
        %vm1747 = vcmp.le.s32.totalorder %v1491, 14
        %vm1748 = vcmp.le.s32.totalorder %v1492, 14
        %vm1749 = vcmp.le.s32.totalorder %v1493, 14
        %vm1750 = vcmp.le.s32.totalorder %v1494, 14
        %vm1751 = vcmp.le.s32.totalorder %v1495, 14
        %vm1752 = vcmp.le.s32.totalorder %v1496, 14
        %vm1753 = vcmp.le.s32.totalorder %v1497, 14
        %vm1754 = vcmp.le.s32.totalorder %v1498, 14
        %vm1755 = vcmp.le.s32.totalorder %v1499, 14
        %vm1756 = vcmp.le.s32.totalorder %v1500, 14
        %vm1757 = vcmp.le.s32.totalorder %v1501, 14
        %vm1758 = vcmp.le.s32.totalorder %v1502, 14
        %vm1759 = vcmp.le.s32.totalorder %v1503, 14
        %vm1760 = vcmp.le.s32.totalorder %v1504, 14
        %vm1761 = vcmp.le.s32.totalorder %v1505, 14
        %vm1762 = vcmp.le.s32.totalorder %v1506, 14
        %vm1763 = vcmp.le.s32.totalorder %v1507, 14
        %vm1764 = vcmp.le.s32.totalorder %v1508, 14
        %vm1765 = vcmp.le.s32.totalorder %v1509, 14
        %vm1766 = vcmp.le.s32.totalorder %v1510, 14
        %v1767 = vsel %vm1735, 1, 0
        %v1768 = vsel %vm1736, 1, 0
        %v1769 = vsel %vm1737, 1, 0
        %v1770 = vsel %vm1738, 1, 0
        %v1771 = vsel %vm1739, 1, 0
        %v1772 = vsel %vm1740, 1, 0
        %v1773 = vsel %vm1741, 1, 0
        %v1774 = vsel %vm1742, 1, 0
        %v1775 = vsel %vm1743, 1, 0
        %v1776 = vsel %vm1744, 1, 0
        %v1777 = vsel %vm1745, 1, 0
        %v1778 = vsel %vm1746, 1, 0
        %v1779 = vsel %vm1747, 1, 0
        %v1780 = vsel %vm1748, 1, 0
        %v1781 = vsel %vm1749, 1, 0
        %v1782 = vsel %vm1750, 1, 0
        %v1783 = vsel %vm1751, 1, 0
        %v1784 = vsel %vm1752, 1, 0
        %v1785 = vsel %vm1753, 1, 0
        %v1786 = vsel %vm1754, 1, 0
        %v1787 = vsel %vm1755, 1, 0
        %v1788 = vsel %vm1756, 1, 0
        %v1789 = vsel %vm1757, 1, 0
        %v1790 = vsel %vm1758, 1, 0
        %v1791 = vsel %vm1759, 1, 0
        %v1792 = vsel %vm1760, 1, 0
        %v1793 = vsel %vm1761, 1, 0
        %v1794 = vsel %vm1762, 1, 0
        %v1795 = vsel %vm1763, 1, 0
        %v1796 = vsel %vm1764, 1, 0
        %v1797 = vsel %vm1765, 1, 0
        %v1798 = vsel %vm1766, 1, 0
        %vm1799 = vcmp.eq.s32.totalorder %v1767, 1
        %vm1800 = vcmp.eq.s32.totalorder %v1768, 1
        %vm1801 = vcmp.eq.s32.totalorder %v1769, 1
        %vm1802 = vcmp.eq.s32.totalorder %v1770, 1
        %vm1803 = vcmp.eq.s32.totalorder %v1771, 1
        %vm1804 = vcmp.eq.s32.totalorder %v1772, 1
        %vm1805 = vcmp.eq.s32.totalorder %v1773, 1
        %vm1806 = vcmp.eq.s32.totalorder %v1774, 1
        %vm1807 = vcmp.eq.s32.totalorder %v1775, 1
        %vm1808 = vcmp.eq.s32.totalorder %v1776, 1
        %vm1809 = vcmp.eq.s32.totalorder %v1777, 1
        %vm1810 = vcmp.eq.s32.totalorder %v1778, 1
        %vm1811 = vcmp.eq.s32.totalorder %v1779, 1
        %vm1812 = vcmp.eq.s32.totalorder %v1780, 1
        %vm1813 = vcmp.eq.s32.totalorder %v1781, 1
        %vm1814 = vcmp.eq.s32.totalorder %v1782, 1
        %vm1815 = vcmp.eq.s32.totalorder %v1783, 1
        %vm1816 = vcmp.eq.s32.totalorder %v1784, 1
        %vm1817 = vcmp.eq.s32.totalorder %v1785, 1
        %vm1818 = vcmp.eq.s32.totalorder %v1786, 1
        %vm1819 = vcmp.eq.s32.totalorder %v1787, 1
        %vm1820 = vcmp.eq.s32.totalorder %v1788, 1
        %vm1821 = vcmp.eq.s32.totalorder %v1789, 1
        %vm1822 = vcmp.eq.s32.totalorder %v1790, 1
        %vm1823 = vcmp.eq.s32.totalorder %v1791, 1
        %vm1824 = vcmp.eq.s32.totalorder %v1792, 1
        %vm1825 = vcmp.eq.s32.totalorder %v1793, 1
        %vm1826 = vcmp.eq.s32.totalorder %v1794, 1
        %vm1827 = vcmp.eq.s32.totalorder %v1795, 1
        %vm1828 = vcmp.eq.s32.totalorder %v1796, 1
        %vm1829 = vcmp.eq.s32.totalorder %v1797, 1
        %vm1830 = vcmp.eq.s32.totalorder %v1798, 1
        %v1831 = vsel %vm1799, %v1703, 0.0
        %v1832 = vsel %vm1800, %v1704, 0.0
        %v1833 = vsel %vm1801, %v1705, 0.0
        %v1834 = vsel %vm1802, %v1706, 0.0
        %v1835 = vsel %vm1803, %v1707, 0.0
        %v1836 = vsel %vm1804, %v1708, 0.0
        %v1837 = vsel %vm1805, %v1709, 0.0
        %v1838 = vsel %vm1806, %v1710, 0.0
        %v1839 = vsel %vm1807, %v1711, 0.0
        %v1840 = vsel %vm1808, %v1712, 0.0
        %v1841 = vsel %vm1809, %v1713, 0.0
        %v1842 = vsel %vm1810, %v1714, 0.0
        %v1843 = vsel %vm1811, %v1715, 0.0
        %v1844 = vsel %vm1812, %v1716, 0.0
        %v1845 = vsel %vm1813, %v1717, 0.0
        %v1846 = vsel %vm1814, %v1718, 0.0
        %v1847 = vsel %vm1815, %v1719, 0.0
        %v1848 = vsel %vm1816, %v1720, 0.0
        %v1849 = vsel %vm1817, %v1721, 0.0
        %v1850 = vsel %vm1818, %v1722, 0.0
        %v1851 = vsel %vm1819, %v1723, 0.0
        %v1852 = vsel %vm1820, %v1724, 0.0
        %v1853 = vsel %vm1821, %v1725, 0.0
        %v1854 = vsel %vm1822, %v1726, 0.0
        %v1855 = vsel %vm1823, %v1727, 0.0
        %v1856 = vsel %vm1824, %v1728, 0.0
        %v1857 = vsel %vm1825, %v1729, 0.0
        %v1858 = vsel %vm1826, %v1730, 0.0
        %v1859 = vsel %vm1827, %v1731, 0.0
        %v1860 = vsel %vm1828, %v1732, 0.0
        %v1861 = vsel %vm1829, %v1733, 0.0
        %v1862 = vsel %vm1830, %v1734, 0.0
        %v1863 = vld [vmem:[#allocation2 + $0x107] sm:$0xff]
        %v1864 = vld [vmem:[#allocation2 + $0x10f] sm:$0xff]
        %v1865 = vsel %vm1607, %v1513, 0.0
        %v1866 = vsel %vm1608, %v1514, 0.0
        %v1867 = vsel %vm1609, %v1515, 0.0
        %v1868 = vsel %vm1610, %v1516, 0.0
        %v1869 = vsel %vm1611, %v1517, 0.0
        %v1870 = vsel %vm1612, %v1518, 0.0
        %v1871 = vsel %vm1613, %v1519, 0.0
        %v1872 = vsel %vm1614, %v1520, 0.0
        %v1873 = vsel %vm1615, %v1521, 0.0
        %v1874 = vsel %vm1616, %v1522, 0.0
        %v1875 = vsel %vm1617, %v1523, 0.0
        %v1876 = vsel %vm1618, %v1524, 0.0
        %v1877 = vsel %vm1619, %v1525, 0.0
        %v1878 = vsel %vm1620, %v1526, 0.0
        %v1879 = vsel %vm1621, %v1527, 0.0
        %v1880 = vsel %vm1622, %v1528, 0.0
        %v1881 = vsel %vm1623, %v1529, 0.0
        %v1882 = vsel %vm1624, %v1530, 0.0
        %v1883 = vsel %vm1625, %v1531, 0.0
        %v1884 = vsel %vm1626, %v1532, 0.0
        %v1885 = vsel %vm1627, %v1533, 0.0
        %v1886 = vsel %vm1628, %v1534, 0.0
        %v1887 = vsel %vm1629, %v1535, 0.0
        %v1888 = vsel %vm1630, %v1536, 0.0
        %v1889 = vsel %vm1631, %v1537, 0.0
        %v1890 = vsel %vm1632, %v1538, 0.0
        %v1891 = vsel %vm1633, %v1539, 0.0
        %v1892 = vsel %vm1634, %v1540, 0.0
        %v1893 = vsel %vm1635, %v1541, 0.0
        %v1894 = vsel %vm1636, %v1542, 0.0
        %v1895 = vsel %vm1637, %v1863, 0.0
        %v1896 = vsel %vm1638, %v1864, 0.0
        %v1897 = vld [vmem:[#allocation2 + $0x108] sm:$0xff]
        %v1898 = vld [vmem:[#allocation2 + $0x110] sm:$0xff]
        %v1899 = vld [vmem:[#allocation2 + $0x109] sm:$0xff]
        %v1900 = vld [vmem:[#allocation2 + $0x111] sm:$0xff]
        %v1901 = vsel %vm1799, %v1705, 0.0
        %v1902 = vsel %vm1800, %v1706, 0.0
        %v1903 = vsel %vm1801, %v1707, 0.0
        %v1904 = vsel %vm1802, %v1708, 0.0
        %v1905 = vsel %vm1803, %v1709, 0.0
        %v1906 = vsel %vm1804, %v1710, 0.0
        %v1907 = vsel %vm1805, %v1711, 0.0
        %v1908 = vsel %vm1806, %v1712, 0.0
        %v1909 = vsel %vm1807, %v1713, 0.0
        %v1910 = vsel %vm1808, %v1714, 0.0
        %v1911 = vsel %vm1809, %v1715, 0.0
        %v1912 = vsel %vm1810, %v1716, 0.0
        %v1913 = vsel %vm1811, %v1717, 0.0
        %v1914 = vsel %vm1812, %v1718, 0.0
        %v1915 = vsel %vm1813, %v1719, 0.0
        %v1916 = vsel %vm1814, %v1720, 0.0
        %v1917 = vsel %vm1815, %v1721, 0.0
        %v1918 = vsel %vm1816, %v1722, 0.0
        %v1919 = vsel %vm1817, %v1723, 0.0
        %v1920 = vsel %vm1818, %v1724, 0.0
        %v1921 = vsel %vm1819, %v1725, 0.0
        %v1922 = vsel %vm1820, %v1726, 0.0
        %v1923 = vsel %vm1821, %v1727, 0.0
        %v1924 = vsel %vm1822, %v1728, 0.0
        %v1925 = vsel %vm1823, %v1729, 0.0
        %v1926 = vsel %vm1824, %v1730, 0.0
        %v1927 = vsel %vm1825, %v1731, 0.0
        %v1928 = vsel %vm1826, %v1732, 0.0
        %v1929 = vsel %vm1827, %v1733, 0.0
        %v1930 = vsel %vm1828, %v1734, 0.0
        %v1931 = vsel %vm1829, %v1899, 0.0
        %v1932 = vsel %vm1830, %v1900, 0.0
        %v1933 = vld [vmem:[#allocation2 + $0x117] sm:$0xff]
        %v1934 = vld [vmem:[#allocation2 + $0x11f] sm:$0xff]
        %v1935 = vsel %vm1607, %v1515, 0.0
        %v1936 = vsel %vm1608, %v1516, 0.0
        %v1937 = vsel %vm1609, %v1517, 0.0
        %v1938 = vsel %vm1610, %v1518, 0.0
        %v1939 = vsel %vm1611, %v1519, 0.0
        %v1940 = vsel %vm1612, %v1520, 0.0
        %v1941 = vsel %vm1613, %v1521, 0.0
        %v1942 = vsel %vm1614, %v1522, 0.0
        %v1943 = vsel %vm1615, %v1523, 0.0
        %v1944 = vsel %vm1616, %v1524, 0.0
        %v1945 = vsel %vm1617, %v1525, 0.0
        %v1946 = vsel %vm1618, %v1526, 0.0
        %v1947 = vsel %vm1619, %v1527, 0.0
        %v1948 = vsel %vm1620, %v1528, 0.0
        %v1949 = vsel %vm1621, %v1529, 0.0
        %v1950 = vsel %vm1622, %v1530, 0.0
        %v1951 = vsel %vm1623, %v1531, 0.0
        %v1952 = vsel %vm1624, %v1532, 0.0
        %v1953 = vsel %vm1625, %v1533, 0.0
        %v1954 = vsel %vm1626, %v1534, 0.0
        %v1955 = vsel %vm1627, %v1535, 0.0
        %v1956 = vsel %vm1628, %v1536, 0.0
        %v1957 = vsel %vm1629, %v1537, 0.0
        %v1958 = vsel %vm1630, %v1538, 0.0
        %v1959 = vsel %vm1631, %v1539, 0.0
        %v1960 = vsel %vm1632, %v1540, 0.0
        %v1961 = vsel %vm1633, %v1541, 0.0
        %v1962 = vsel %vm1634, %v1542, 0.0
        %v1963 = vsel %vm1635, %v1863, 0.0
        %v1964 = vsel %vm1636, %v1864, 0.0
        %v1965 = vsel %vm1637, %v1933, 0.0
        %v1966 = vsel %vm1638, %v1934, 0.0
        %v1967 = vld [vmem:[#allocation2 + $0x118] sm:$0xff]
        %v1968 = vld [vmem:[#allocation2 + $0x120] sm:$0xff]
        %v1969 = vld [vmem:[#allocation2 + $0x119] sm:$0xff]
        %v1970 = vld [vmem:[#allocation2 + $0x121] sm:$0xff]
        %v1971 = vsel %vm1799, %v1707, 0.0
        %v1972 = vsel %vm1800, %v1708, 0.0
        %v1973 = vsel %vm1801, %v1709, 0.0
        %v1974 = vsel %vm1802, %v1710, 0.0
        %v1975 = vsel %vm1803, %v1711, 0.0
        %v1976 = vsel %vm1804, %v1712, 0.0
        %v1977 = vsel %vm1805, %v1713, 0.0
        %v1978 = vsel %vm1806, %v1714, 0.0
        %v1979 = vsel %vm1807, %v1715, 0.0
        %v1980 = vsel %vm1808, %v1716, 0.0
        %v1981 = vsel %vm1809, %v1717, 0.0
        %v1982 = vsel %vm1810, %v1718, 0.0
        %v1983 = vsel %vm1811, %v1719, 0.0
        %v1984 = vsel %vm1812, %v1720, 0.0
        %v1985 = vsel %vm1813, %v1721, 0.0
        %v1986 = vsel %vm1814, %v1722, 0.0
        %v1987 = vsel %vm1815, %v1723, 0.0
        %v1988 = vsel %vm1816, %v1724, 0.0
        %v1989 = vsel %vm1817, %v1725, 0.0
        %v1990 = vsel %vm1818, %v1726, 0.0
        %v1991 = vsel %vm1819, %v1727, 0.0
        %v1992 = vsel %vm1820, %v1728, 0.0
        %v1993 = vsel %vm1821, %v1729, 0.0
        %v1994 = vsel %vm1822, %v1730, 0.0
        %v1995 = vsel %vm1823, %v1731, 0.0
        %v1996 = vsel %vm1824, %v1732, 0.0
        %v1997 = vsel %vm1825, %v1733, 0.0
        %v1998 = vsel %vm1826, %v1734, 0.0
        %v1999 = vsel %vm1827, %v1899, 0.0
        %v2000 = vsel %vm1828, %v1900, 0.0
        %v2001 = vsel %vm1829, %v1969, 0.0
        %v2002 = vsel %vm1830, %v1970, 0.0
        %2035 = vrot.lane.b32.xlu0 %v1671, 32
        %v2036 = vpop.permute.xlu0 %2035
        %2037 = vrot.lane.b32.xlu0 %v1672, 32
        %v2038 = vpop.permute.xlu0 %2037
        %2039 = vrot.lane.b32.xlu0 %v1673, 32
        %v2040 = vpop.permute.xlu0 %2039
        %2041 = vrot.lane.b32.xlu0 %v1674, 32
        %v2042 = vpop.permute.xlu0 %2041
        %2043 = vrot.lane.b32.xlu0 %v1675, 32
        %v2044 = vpop.permute.xlu0 %2043
        %2045 = vrot.lane.b32.xlu0 %v1676, 32
        %v2046 = vpop.permute.xlu0 %2045
        %2047 = vrot.lane.b32.xlu0 %v1677, 32
        %v2048 = vpop.permute.xlu0 %2047
        %2049 = vrot.lane.b32.xlu0 %v1678, 32
        %v2050 = vpop.permute.xlu0 %2049
        %2051 = vrot.lane.b32.xlu0 %v1679, 32
        %v2052 = vpop.permute.xlu0 %2051
        %2053 = vrot.lane.b32.xlu0 %v1680, 32
        %v2054 = vpop.permute.xlu0 %2053
        %2055 = vrot.lane.b32.xlu0 %v1681, 32
        %v2056 = vpop.permute.xlu0 %2055
        %2057 = vrot.lane.b32.xlu0 %v1682, 32
        %v2058 = vpop.permute.xlu0 %2057
        %2059 = vrot.lane.b32.xlu0 %v1683, 32
        %v2060 = vpop.permute.xlu0 %2059
        %2061 = vrot.lane.b32.xlu0 %v1684, 32
        %v2062 = vpop.permute.xlu0 %2061
        %2063 = vrot.lane.b32.xlu0 %v1685, 32
        %v2064 = vpop.permute.xlu0 %2063
        %2065 = vrot.lane.b32.xlu0 %v1686, 32
        %v2066 = vpop.permute.xlu0 %2065
        %2067 = vrot.lane.b32.xlu0 %v1687, 32
        %v2068 = vpop.permute.xlu0 %2067
        %2069 = vrot.lane.b32.xlu0 %v1688, 32
        %v2070 = vpop.permute.xlu0 %2069
        %2071 = vrot.lane.b32.xlu0 %v1689, 32
        %v2072 = vpop.permute.xlu0 %2071
        %2073 = vrot.lane.b32.xlu0 %v1690, 32
        %v2074 = vpop.permute.xlu0 %2073
        %2075 = vrot.lane.b32.xlu0 %v1691, 32
        %v2076 = vpop.permute.xlu0 %2075
        %2077 = vrot.lane.b32.xlu0 %v1692, 32
        %v2078 = vpop.permute.xlu0 %2077
        %2079 = vrot.lane.b32.xlu0 %v1693, 32
        %v2080 = vpop.permute.xlu0 %2079
        %2081 = vrot.lane.b32.xlu0 %v1694, 32
        %v2082 = vpop.permute.xlu0 %2081
        %2083 = vrot.lane.b32.xlu0 %v1695, 32
        %v2084 = vpop.permute.xlu0 %2083
        %2085 = vrot.lane.b32.xlu0 %v1696, 32
        %v2086 = vpop.permute.xlu0 %2085
        %2087 = vrot.lane.b32.xlu0 %v1697, 32
        %v2088 = vpop.permute.xlu0 %2087
        %2089 = vrot.lane.b32.xlu0 %v1698, 32
        %v2090 = vpop.permute.xlu0 %2089
        %2091 = vrot.lane.b32.xlu0 %v1699, 32
        %v2092 = vpop.permute.xlu0 %2091
        %2093 = vrot.lane.b32.xlu0 %v1700, 32
        %v2094 = vpop.permute.xlu0 %2093
        %2095 = vrot.lane.b32.xlu0 %v1701, 32
        %v2096 = vpop.permute.xlu0 %2095
        %2097 = vrot.lane.b32.xlu0 %v1702, 32
        %v2098 = vpop.permute.xlu0 %2097
        %2163 = vrot.lane.b32.xlu0 %v1831, 64
        %v2164 = vpop.permute.xlu0 %2163
        %2165 = vrot.lane.b32.xlu0 %v1832, 64
        %v2166 = vpop.permute.xlu0 %2165
        %2167 = vrot.lane.b32.xlu0 %v1833, 64
        %v2168 = vpop.permute.xlu0 %2167
        %2169 = vrot.lane.b32.xlu0 %v1834, 64
        %v2170 = vpop.permute.xlu0 %2169
        %2171 = vrot.lane.b32.xlu0 %v1835, 64
        %v2172 = vpop.permute.xlu0 %2171
        %2173 = vrot.lane.b32.xlu0 %v1836, 64
        %v2174 = vpop.permute.xlu0 %2173
        %2175 = vrot.lane.b32.xlu0 %v1837, 64
        %v2176 = vpop.permute.xlu0 %2175
        %2177 = vrot.lane.b32.xlu0 %v1838, 64
        %v2178 = vpop.permute.xlu0 %2177
        %2179 = vrot.lane.b32.xlu0 %v1839, 64
        %v2180 = vpop.permute.xlu0 %2179
        %2181 = vrot.lane.b32.xlu0 %v1840, 64
        %v2182 = vpop.permute.xlu0 %2181
        %2183 = vrot.lane.b32.xlu0 %v1841, 64
        %v2184 = vpop.permute.xlu0 %2183
        %2185 = vrot.lane.b32.xlu0 %v1842, 64
        %v2186 = vpop.permute.xlu0 %2185
        %2187 = vrot.lane.b32.xlu0 %v1843, 64
        %v2188 = vpop.permute.xlu0 %2187
        %2189 = vrot.lane.b32.xlu0 %v1844, 64
        %v2190 = vpop.permute.xlu0 %2189
        %2191 = vrot.lane.b32.xlu0 %v1845, 64
        %v2192 = vpop.permute.xlu0 %2191
        %2193 = vrot.lane.b32.xlu0 %v1846, 64
        %v2194 = vpop.permute.xlu0 %2193
        %2195 = vrot.lane.b32.xlu0 %v1847, 64
        %v2196 = vpop.permute.xlu0 %2195
        %2197 = vrot.lane.b32.xlu0 %v1848, 64
        %v2198 = vpop.permute.xlu0 %2197
        %2199 = vrot.lane.b32.xlu0 %v1849, 64
        %v2200 = vpop.permute.xlu0 %2199
        %2201 = vrot.lane.b32.xlu0 %v1850, 64
        %v2202 = vpop.permute.xlu0 %2201
        %2203 = vrot.lane.b32.xlu0 %v1851, 64
        %v2204 = vpop.permute.xlu0 %2203
        %2205 = vrot.lane.b32.xlu0 %v1852, 64
        %v2206 = vpop.permute.xlu0 %2205
        %2207 = vrot.lane.b32.xlu0 %v1853, 64
        %v2208 = vpop.permute.xlu0 %2207
        %2209 = vrot.lane.b32.xlu0 %v1854, 64
        %v2210 = vpop.permute.xlu0 %2209
        %2211 = vrot.lane.b32.xlu0 %v1855, 64
        %v2212 = vpop.permute.xlu0 %2211
        %2213 = vrot.lane.b32.xlu0 %v1856, 64
        %v2214 = vpop.permute.xlu0 %2213
        %2215 = vrot.lane.b32.xlu0 %v1857, 64
        %v2216 = vpop.permute.xlu0 %2215
        %2217 = vrot.lane.b32.xlu0 %v1858, 64
        %v2218 = vpop.permute.xlu0 %2217
        %2219 = vrot.lane.b32.xlu0 %v1859, 64
        %v2220 = vpop.permute.xlu0 %2219
        %2221 = vrot.lane.b32.xlu0 %v1860, 64
        %v2222 = vpop.permute.xlu0 %2221
        %2223 = vrot.lane.b32.xlu0 %v1861, 64
        %v2224 = vpop.permute.xlu0 %2223
        %2225 = vrot.lane.b32.xlu0 %v1862, 64
        %v2226 = vpop.permute.xlu0 %2225
        %2291 = vrot.lane.b32.xlu0 %v1865, 96
        %v2292 = vpop.permute.xlu0 %2291
        %2293 = vrot.lane.b32.xlu0 %v1866, 96
        %v2294 = vpop.permute.xlu0 %2293
        %2295 = vrot.lane.b32.xlu0 %v1867, 96
        %v2296 = vpop.permute.xlu0 %2295
        %2297 = vrot.lane.b32.xlu0 %v1868, 96
        %v2298 = vpop.permute.xlu0 %2297
        %2299 = vrot.lane.b32.xlu0 %v1869, 96
        %v2300 = vpop.permute.xlu0 %2299
        %2301 = vrot.lane.b32.xlu0 %v1870, 96
        %v2302 = vpop.permute.xlu0 %2301
        %2303 = vrot.lane.b32.xlu0 %v1871, 96
        %v2304 = vpop.permute.xlu0 %2303
        %2305 = vrot.lane.b32.xlu0 %v1872, 96
        %v2306 = vpop.permute.xlu0 %2305
        %2307 = vrot.lane.b32.xlu0 %v1873, 96
        %v2308 = vpop.permute.xlu0 %2307
        %2309 = vrot.lane.b32.xlu0 %v1874, 96
        %v2310 = vpop.permute.xlu0 %2309
        %2311 = vrot.lane.b32.xlu0 %v1875, 96
        %v2312 = vpop.permute.xlu0 %2311
        %2313 = vrot.lane.b32.xlu0 %v1876, 96
        %v2314 = vpop.permute.xlu0 %2313
        %2315 = vrot.lane.b32.xlu0 %v1877, 96
        %v2316 = vpop.permute.xlu0 %2315
        %2317 = vrot.lane.b32.xlu0 %v1878, 96
        %v2318 = vpop.permute.xlu0 %2317
        %2319 = vrot.lane.b32.xlu0 %v1879, 96
        %v2320 = vpop.permute.xlu0 %2319
        %2321 = vrot.lane.b32.xlu0 %v1880, 96
        %v2322 = vpop.permute.xlu0 %2321
        %2323 = vrot.lane.b32.xlu0 %v1881, 96
        %v2324 = vpop.permute.xlu0 %2323
        %2325 = vrot.lane.b32.xlu0 %v1882, 96
        %v2326 = vpop.permute.xlu0 %2325
        %2327 = vrot.lane.b32.xlu0 %v1883, 96
        %v2328 = vpop.permute.xlu0 %2327
        %2329 = vrot.lane.b32.xlu0 %v1884, 96
        %v2330 = vpop.permute.xlu0 %2329
        %2331 = vrot.lane.b32.xlu0 %v1885, 96
        %v2332 = vpop.permute.xlu0 %2331
        %2333 = vrot.lane.b32.xlu0 %v1886, 96
        %v2334 = vpop.permute.xlu0 %2333
        %2335 = vrot.lane.b32.xlu0 %v1887, 96
        %v2336 = vpop.permute.xlu0 %2335
        %2337 = vrot.lane.b32.xlu0 %v1888, 96
        %v2338 = vpop.permute.xlu0 %2337
        %2339 = vrot.lane.b32.xlu0 %v1889, 96
        %v2340 = vpop.permute.xlu0 %2339
        %2341 = vrot.lane.b32.xlu0 %v1890, 96
        %v2342 = vpop.permute.xlu0 %2341
        %2343 = vrot.lane.b32.xlu0 %v1891, 96
        %v2344 = vpop.permute.xlu0 %2343
        %2345 = vrot.lane.b32.xlu0 %v1892, 96
        %v2346 = vpop.permute.xlu0 %2345
        %2347 = vrot.lane.b32.xlu0 %v1893, 96
        %v2348 = vpop.permute.xlu0 %2347
        %2349 = vrot.lane.b32.xlu0 %v1894, 96
        %v2350 = vpop.permute.xlu0 %2349
        %2351 = vrot.lane.b32.xlu0 %v1895, 96
        %v2352 = vpop.permute.xlu0 %2351
        %2353 = vrot.lane.b32.xlu0 %v1896, 96
        %v2354 = vpop.permute.xlu0 %2353
        %2419 = vrot.lane.b32.xlu0 %v1901, 32
        %v2420 = vpop.permute.xlu0 %2419
        %2421 = vrot.lane.b32.xlu0 %v1902, 32
        %v2422 = vpop.permute.xlu0 %2421
        %2423 = vrot.lane.b32.xlu0 %v1903, 32
        %v2424 = vpop.permute.xlu0 %2423
        %2425 = vrot.lane.b32.xlu0 %v1904, 32
        %v2426 = vpop.permute.xlu0 %2425
        %2427 = vrot.lane.b32.xlu0 %v1905, 32
        %v2428 = vpop.permute.xlu0 %2427
        %2429 = vrot.lane.b32.xlu0 %v1906, 32
        %v2430 = vpop.permute.xlu0 %2429
        %2431 = vrot.lane.b32.xlu0 %v1907, 32
        %v2432 = vpop.permute.xlu0 %2431
        %2433 = vrot.lane.b32.xlu0 %v1908, 32
        %v2434 = vpop.permute.xlu0 %2433
        %2435 = vrot.lane.b32.xlu0 %v1909, 32
        %v2436 = vpop.permute.xlu0 %2435
        %2437 = vrot.lane.b32.xlu0 %v1910, 32
        %v2438 = vpop.permute.xlu0 %2437
        %2439 = vrot.lane.b32.xlu0 %v1911, 32
        %v2440 = vpop.permute.xlu0 %2439
        %2441 = vrot.lane.b32.xlu0 %v1912, 32
        %v2442 = vpop.permute.xlu0 %2441
        %2443 = vrot.lane.b32.xlu0 %v1913, 32
        %v2444 = vpop.permute.xlu0 %2443
        %2445 = vrot.lane.b32.xlu0 %v1914, 32
        %v2446 = vpop.permute.xlu0 %2445
        %2447 = vrot.lane.b32.xlu0 %v1915, 32
        %v2448 = vpop.permute.xlu0 %2447
        %2449 = vrot.lane.b32.xlu0 %v1916, 32
        %v2450 = vpop.permute.xlu0 %2449
        %2451 = vrot.lane.b32.xlu0 %v1917, 32
        %v2452 = vpop.permute.xlu0 %2451
        %2453 = vrot.lane.b32.xlu0 %v1918, 32
        %v2454 = vpop.permute.xlu0 %2453
        %2455 = vrot.lane.b32.xlu0 %v1919, 32
        %v2456 = vpop.permute.xlu0 %2455
        %2457 = vrot.lane.b32.xlu0 %v1920, 32
        %v2458 = vpop.permute.xlu0 %2457
        %2459 = vrot.lane.b32.xlu0 %v1921, 32
        %v2460 = vpop.permute.xlu0 %2459
        %2461 = vrot.lane.b32.xlu0 %v1922, 32
        %v2462 = vpop.permute.xlu0 %2461
        %2463 = vrot.lane.b32.xlu0 %v1923, 32
        %v2464 = vpop.permute.xlu0 %2463
        %2465 = vrot.lane.b32.xlu0 %v1924, 32
        %v2466 = vpop.permute.xlu0 %2465
        %2467 = vrot.lane.b32.xlu0 %v1925, 32
        %v2468 = vpop.permute.xlu0 %2467
        %2469 = vrot.lane.b32.xlu0 %v1926, 32
        %v2470 = vpop.permute.xlu0 %2469
        %2471 = vrot.lane.b32.xlu0 %v1927, 32
        %v2472 = vpop.permute.xlu0 %2471
        %2473 = vrot.lane.b32.xlu0 %v1928, 32
        %v2474 = vpop.permute.xlu0 %2473
        %2475 = vrot.lane.b32.xlu0 %v1929, 32
        %v2476 = vpop.permute.xlu0 %2475
        %2477 = vrot.lane.b32.xlu0 %v1930, 32
        %v2478 = vpop.permute.xlu0 %2477
        %2479 = vrot.lane.b32.xlu0 %v1931, 32
        %v2480 = vpop.permute.xlu0 %2479
        %2481 = vrot.lane.b32.xlu0 %v1932, 32
        %v2482 = vpop.permute.xlu0 %2481
        %2547 = vrot.lane.b32.xlu0 %v1935, 64
        %v2548 = vpop.permute.xlu0 %2547
        %2549 = vrot.lane.b32.xlu0 %v1936, 64
        %v2550 = vpop.permute.xlu0 %2549
        %2551 = vrot.lane.b32.xlu0 %v1937, 64
        %v2552 = vpop.permute.xlu0 %2551
        %2553 = vrot.lane.b32.xlu0 %v1938, 64
        %v2554 = vpop.permute.xlu0 %2553
        %2555 = vrot.lane.b32.xlu0 %v1939, 64
        %v2556 = vpop.permute.xlu0 %2555
        %2557 = vrot.lane.b32.xlu0 %v1940, 64
        %v2558 = vpop.permute.xlu0 %2557
        %2559 = vrot.lane.b32.xlu0 %v1941, 64
        %v2560 = vpop.permute.xlu0 %2559
        %2561 = vrot.lane.b32.xlu0 %v1942, 64
        %v2562 = vpop.permute.xlu0 %2561
        %2563 = vrot.lane.b32.xlu0 %v1943, 64
        %v2564 = vpop.permute.xlu0 %2563
        %2565 = vrot.lane.b32.xlu0 %v1944, 64
        %v2566 = vpop.permute.xlu0 %2565
        %2567 = vrot.lane.b32.xlu0 %v1945, 64
        %v2568 = vpop.permute.xlu0 %2567
        %2569 = vrot.lane.b32.xlu0 %v1946, 64
        %v2570 = vpop.permute.xlu0 %2569
        %2571 = vrot.lane.b32.xlu0 %v1947, 64
        %v2572 = vpop.permute.xlu0 %2571
        %2573 = vrot.lane.b32.xlu0 %v1948, 64
        %v2574 = vpop.permute.xlu0 %2573
        %2575 = vrot.lane.b32.xlu0 %v1949, 64
        %v2576 = vpop.permute.xlu0 %2575
        %2577 = vrot.lane.b32.xlu0 %v1950, 64
        %v2578 = vpop.permute.xlu0 %2577
        %2579 = vrot.lane.b32.xlu0 %v1951, 64
        %v2580 = vpop.permute.xlu0 %2579
        %2581 = vrot.lane.b32.xlu0 %v1952, 64
        %v2582 = vpop.permute.xlu0 %2581
        %2583 = vrot.lane.b32.xlu0 %v1953, 64
        %v2584 = vpop.permute.xlu0 %2583
        %2585 = vrot.lane.b32.xlu0 %v1954, 64
        %v2586 = vpop.permute.xlu0 %2585
        %2587 = vrot.lane.b32.xlu0 %v1955, 64
        %v2588 = vpop.permute.xlu0 %2587
        %2589 = vrot.lane.b32.xlu0 %v1956, 64
        %v2590 = vpop.permute.xlu0 %2589
        %2591 = vrot.lane.b32.xlu0 %v1957, 64
        %v2592 = vpop.permute.xlu0 %2591
        %2593 = vrot.lane.b32.xlu0 %v1958, 64
        %v2594 = vpop.permute.xlu0 %2593
        %2595 = vrot.lane.b32.xlu0 %v1959, 64
        %v2596 = vpop.permute.xlu0 %2595
        %2597 = vrot.lane.b32.xlu0 %v1960, 64
        %v2598 = vpop.permute.xlu0 %2597
        %2599 = vrot.lane.b32.xlu0 %v1961, 64
        %v2600 = vpop.permute.xlu0 %2599
        %2601 = vrot.lane.b32.xlu0 %v1962, 64
        %v2602 = vpop.permute.xlu0 %2601
        %2603 = vrot.lane.b32.xlu0 %v1963, 64
        %v2604 = vpop.permute.xlu0 %2603
        %2605 = vrot.lane.b32.xlu0 %v1964, 64
        %v2606 = vpop.permute.xlu0 %2605
        %2607 = vrot.lane.b32.xlu0 %v1965, 64
        %v2608 = vpop.permute.xlu0 %2607
        %2609 = vrot.lane.b32.xlu0 %v1966, 64
        %v2610 = vpop.permute.xlu0 %2609
        %2647 = vrot.lane.b32.xlu0 %v1675, 96
        %v2648 = vpop.permute.xlu0 %2647
        %2649 = vrot.lane.b32.xlu0 %v1676, 96
        %v2650 = vpop.permute.xlu0 %2649
        %2651 = vrot.lane.b32.xlu0 %v1677, 96
        %v2652 = vpop.permute.xlu0 %2651
        %2653 = vrot.lane.b32.xlu0 %v1678, 96
        %v2654 = vpop.permute.xlu0 %2653
        %2655 = vrot.lane.b32.xlu0 %v1679, 96
        %v2656 = vpop.permute.xlu0 %2655
        %2657 = vrot.lane.b32.xlu0 %v1680, 96
        %v2658 = vpop.permute.xlu0 %2657
        %2659 = vrot.lane.b32.xlu0 %v1681, 96
        %v2660 = vpop.permute.xlu0 %2659
        %2661 = vrot.lane.b32.xlu0 %v1682, 96
        %v2662 = vpop.permute.xlu0 %2661
        %2663 = vrot.lane.b32.xlu0 %v1683, 96
        %v2664 = vpop.permute.xlu0 %2663
        %2665 = vrot.lane.b32.xlu0 %v1684, 96
        %v2666 = vpop.permute.xlu0 %2665
        %2667 = vrot.lane.b32.xlu0 %v1685, 96
        %v2668 = vpop.permute.xlu0 %2667
        %2669 = vrot.lane.b32.xlu0 %v1686, 96
        %v2670 = vpop.permute.xlu0 %2669
        %2671 = vrot.lane.b32.xlu0 %v1687, 96
        %v2672 = vpop.permute.xlu0 %2671
        %2673 = vrot.lane.b32.xlu0 %v1688, 96
        %v2674 = vpop.permute.xlu0 %2673
        %2675 = vrot.lane.b32.xlu0 %v1689, 96
        %v2676 = vpop.permute.xlu0 %2675
        %2677 = vrot.lane.b32.xlu0 %v1690, 96
        %v2678 = vpop.permute.xlu0 %2677
        %2679 = vrot.lane.b32.xlu0 %v1691, 96
        %v2680 = vpop.permute.xlu0 %2679
        %2681 = vrot.lane.b32.xlu0 %v1692, 96
        %v2682 = vpop.permute.xlu0 %2681
        %2683 = vrot.lane.b32.xlu0 %v1693, 96
        %v2684 = vpop.permute.xlu0 %2683
        %2685 = vrot.lane.b32.xlu0 %v1694, 96
        %v2686 = vpop.permute.xlu0 %2685
        %2687 = vrot.lane.b32.xlu0 %v1695, 96
        %v2688 = vpop.permute.xlu0 %2687
        %2689 = vrot.lane.b32.xlu0 %v1696, 96
        %v2690 = vpop.permute.xlu0 %2689
        %2691 = vrot.lane.b32.xlu0 %v1697, 96
        %v2692 = vpop.permute.xlu0 %2691
        %2693 = vrot.lane.b32.xlu0 %v1698, 96
        %v2694 = vpop.permute.xlu0 %2693
        %2695 = vrot.lane.b32.xlu0 %v1699, 96
        %v2696 = vpop.permute.xlu0 %2695
        %2697 = vrot.lane.b32.xlu0 %v1700, 96
        %v2698 = vpop.permute.xlu0 %2697
        %2699 = vrot.lane.b32.xlu0 %v1701, 96
        %v2700 = vpop.permute.xlu0 %2699
        %2701 = vrot.lane.b32.xlu0 %v1702, 96
        %v2702 = vpop.permute.xlu0 %2701
        %2703 = vrot.lane.b32.xlu0 %v1897, 96
        %v2704 = vpop.permute.xlu0 %2703
        %2705 = vrot.lane.b32.xlu0 %v1898, 96
        %v2706 = vpop.permute.xlu0 %2705
        %2707 = vrot.lane.b32.xlu0 %v1967, 96
        %v2708 = vpop.permute.xlu0 %2707
        %2709 = vrot.lane.b32.xlu0 %v1968, 96
        %v2710 = vpop.permute.xlu0 %2709
        %v2743 = vsel %vm1090, %v1639, %v2036
        %v2744 = vsel %vm1090, %v1640, %v2038
        %v2745 = vsel %vm1090, %v1641, %v2040
        %v2746 = vsel %vm1090, %v1642, %v2042
        %v2747 = vsel %vm1090, %v1643, %v2044
        %v2748 = vsel %vm1090, %v1644, %v2046
        %v2749 = vsel %vm1090, %v1645, %v2048
        %v2750 = vsel %vm1090, %v1646, %v2050
        %v2751 = vsel %vm1090, %v1647, %v2052
        %v2752 = vsel %vm1090, %v1648, %v2054
        %v2753 = vsel %vm1090, %v1649, %v2056
        %v2754 = vsel %vm1090, %v1650, %v2058
        %v2755 = vsel %vm1090, %v1651, %v2060
        %v2756 = vsel %vm1090, %v1652, %v2062
        %v2757 = vsel %vm1090, %v1653, %v2064
        %v2758 = vsel %vm1090, %v1654, %v2066
        %v2759 = vsel %vm1090, %v1655, %v2068
        %v2760 = vsel %vm1090, %v1656, %v2070
        %v2761 = vsel %vm1090, %v1657, %v2072
        %v2762 = vsel %vm1090, %v1658, %v2074
        %v2763 = vsel %vm1090, %v1659, %v2076
        %v2764 = vsel %vm1090, %v1660, %v2078
        %v2765 = vsel %vm1090, %v1661, %v2080
        %v2766 = vsel %vm1090, %v1662, %v2082
        %v2767 = vsel %vm1090, %v1663, %v2084
        %v2768 = vsel %vm1090, %v1664, %v2086
        %v2769 = vsel %vm1090, %v1665, %v2088
        %v2770 = vsel %vm1090, %v1666, %v2090
        %v2771 = vsel %vm1090, %v1667, %v2092
        %v2772 = vsel %vm1090, %v1668, %v2094
        %v2773 = vsel %vm1090, %v1669, %v2096
        %v2774 = vsel %vm1090, %v1670, %v2098
        %vm2775 = vcmask 523264
        %v2776 = vsel %vm2775, %v2743, %v2164
        %v2777 = vsel %vm2775, %v2744, %v2166
        %v2778 = vsel %vm2775, %v2745, %v2168
        %v2779 = vsel %vm2775, %v2746, %v2170
        %v2780 = vsel %vm2775, %v2747, %v2172
        %v2781 = vsel %vm2775, %v2748, %v2174
        %v2782 = vsel %vm2775, %v2749, %v2176
        %v2783 = vsel %vm2775, %v2750, %v2178
        %v2784 = vsel %vm2775, %v2751, %v2180
        %v2785 = vsel %vm2775, %v2752, %v2182
        %v2786 = vsel %vm2775, %v2753, %v2184
        %v2787 = vsel %vm2775, %v2754, %v2186
        %v2788 = vsel %vm2775, %v2755, %v2188
        %v2789 = vsel %vm2775, %v2756, %v2190
        %v2790 = vsel %vm2775, %v2757, %v2192
        %v2791 = vsel %vm2775, %v2758, %v2194
        %v2792 = vsel %vm2775, %v2759, %v2196
        %v2793 = vsel %vm2775, %v2760, %v2198
        %v2794 = vsel %vm2775, %v2761, %v2200
        %v2795 = vsel %vm2775, %v2762, %v2202
        %v2796 = vsel %vm2775, %v2763, %v2204
        %v2797 = vsel %vm2775, %v2764, %v2206
        %v2798 = vsel %vm2775, %v2765, %v2208
        %v2799 = vsel %vm2775, %v2766, %v2210
        %v2800 = vsel %vm2775, %v2767, %v2212
        %v2801 = vsel %vm2775, %v2768, %v2214
        %v2802 = vsel %vm2775, %v2769, %v2216
        %v2803 = vsel %vm2775, %v2770, %v2218
        %v2804 = vsel %vm2775, %v2771, %v2220
        %v2805 = vsel %vm2775, %v2772, %v2222
        %v2806 = vsel %vm2775, %v2773, %v2224
        %v2807 = vsel %vm2775, %v2774, %v2226
        %vm2808 = vcmask 785408
        %v2809 = vsel %vm2808, %v2776, %v2292
        %v2810 = vsel %vm2808, %v2777, %v2294
        %v2811 = vsel %vm2808, %v2778, %v2296
        %v2812 = vsel %vm2808, %v2779, %v2298
        %v2813 = vsel %vm2808, %v2780, %v2300
        %v2814 = vsel %vm2808, %v2781, %v2302
        %v2815 = vsel %vm2808, %v2782, %v2304
        %v2816 = vsel %vm2808, %v2783, %v2306
        %v2817 = vsel %vm2808, %v2784, %v2308
        %v2818 = vsel %vm2808, %v2785, %v2310
        %v2819 = vsel %vm2808, %v2786, %v2312
        %v2820 = vsel %vm2808, %v2787, %v2314
        %v2821 = vsel %vm2808, %v2788, %v2316
        %v2822 = vsel %vm2808, %v2789, %v2318
        %v2823 = vsel %vm2808, %v2790, %v2320
        %v2824 = vsel %vm2808, %v2791, %v2322
        %v2825 = vsel %vm2808, %v2792, %v2324
        %v2826 = vsel %vm2808, %v2793, %v2326
        %v2827 = vsel %vm2808, %v2794, %v2328
        %v2828 = vsel %vm2808, %v2795, %v2330
        %v2829 = vsel %vm2808, %v2796, %v2332
        %v2830 = vsel %vm2808, %v2797, %v2334
        %v2831 = vsel %vm2808, %v2798, %v2336
        %v2832 = vsel %vm2808, %v2799, %v2338
        %v2833 = vsel %vm2808, %v2800, %v2340
        %v2834 = vsel %vm2808, %v2801, %v2342
        %v2835 = vsel %vm2808, %v2802, %v2344
        %v2836 = vsel %vm2808, %v2803, %v2346
        %v2837 = vsel %vm2808, %v2804, %v2348
        %v2838 = vsel %vm2808, %v2805, %v2350
        %v2839 = vsel %vm2808, %v2806, %v2352
        %v2840 = vsel %vm2808, %v2807, %v2354
        %v2841 = vsel %vm1090, %v1673, %v2420
        %v2842 = vsel %vm1090, %v1674, %v2422
        %v2843 = vsel %vm1090, %v1675, %v2424
        %v2844 = vsel %vm1090, %v1676, %v2426
        %v2845 = vsel %vm1090, %v1677, %v2428
        %v2846 = vsel %vm1090, %v1678, %v2430
        %v2847 = vsel %vm1090, %v1679, %v2432
        %v2848 = vsel %vm1090, %v1680, %v2434
        %v2849 = vsel %vm1090, %v1681, %v2436
        %v2850 = vsel %vm1090, %v1682, %v2438
        %v2851 = vsel %vm1090, %v1683, %v2440
        %v2852 = vsel %vm1090, %v1684, %v2442
        %v2853 = vsel %vm1090, %v1685, %v2444
        %v2854 = vsel %vm1090, %v1686, %v2446
        %v2855 = vsel %vm1090, %v1687, %v2448
        %v2856 = vsel %vm1090, %v1688, %v2450
        %v2857 = vsel %vm1090, %v1689, %v2452
        %v2858 = vsel %vm1090, %v1690, %v2454
        %v2859 = vsel %vm1090, %v1691, %v2456
        %v2860 = vsel %vm1090, %v1692, %v2458
        %v2861 = vsel %vm1090, %v1693, %v2460
        %v2862 = vsel %vm1090, %v1694, %v2462
        %v2863 = vsel %vm1090, %v1695, %v2464
        %v2864 = vsel %vm1090, %v1696, %v2466
        %v2865 = vsel %vm1090, %v1697, %v2468
        %v2866 = vsel %vm1090, %v1698, %v2470
        %v2867 = vsel %vm1090, %v1699, %v2472
        %v2868 = vsel %vm1090, %v1700, %v2474
        %v2869 = vsel %vm1090, %v1701, %v2476
        %v2870 = vsel %vm1090, %v1702, %v2478
        %v2871 = vsel %vm1090, %v1897, %v2480
        %v2872 = vsel %vm1090, %v1898, %v2482
        %v2873 = vsel %vm2775, %v2841, %v2548
        %v2874 = vsel %vm2775, %v2842, %v2550
        %v2875 = vsel %vm2775, %v2843, %v2552
        %v2876 = vsel %vm2775, %v2844, %v2554
        %v2877 = vsel %vm2775, %v2845, %v2556
        %v2878 = vsel %vm2775, %v2846, %v2558
        %v2879 = vsel %vm2775, %v2847, %v2560
        %v2880 = vsel %vm2775, %v2848, %v2562
        %v2881 = vsel %vm2775, %v2849, %v2564
        %v2882 = vsel %vm2775, %v2850, %v2566
        %v2883 = vsel %vm2775, %v2851, %v2568
        %v2884 = vsel %vm2775, %v2852, %v2570
        %v2885 = vsel %vm2775, %v2853, %v2572
        %v2886 = vsel %vm2775, %v2854, %v2574
        %v2887 = vsel %vm2775, %v2855, %v2576
        %v2888 = vsel %vm2775, %v2856, %v2578
        %v2889 = vsel %vm2775, %v2857, %v2580
        %v2890 = vsel %vm2775, %v2858, %v2582
        %v2891 = vsel %vm2775, %v2859, %v2584
        %v2892 = vsel %vm2775, %v2860, %v2586
        %v2893 = vsel %vm2775, %v2861, %v2588
        %v2894 = vsel %vm2775, %v2862, %v2590
        %v2895 = vsel %vm2775, %v2863, %v2592
        %v2896 = vsel %vm2775, %v2864, %v2594
        %v2897 = vsel %vm2775, %v2865, %v2596
        %v2898 = vsel %vm2775, %v2866, %v2598
        %v2899 = vsel %vm2775, %v2867, %v2600
        %v2900 = vsel %vm2775, %v2868, %v2602
        %v2901 = vsel %vm2775, %v2869, %v2604
        %v2902 = vsel %vm2775, %v2870, %v2606
        %v2903 = vsel %vm2775, %v2871, %v2608
        %v2904 = vsel %vm2775, %v2872, %v2610
        %v2905 = vsel %vm2808, %v2873, %v2648
        %v2906 = vsel %vm2808, %v2874, %v2650
        %v2907 = vsel %vm2808, %v2875, %v2652
        %v2908 = vsel %vm2808, %v2876, %v2654
        %v2909 = vsel %vm2808, %v2877, %v2656
        %v2910 = vsel %vm2808, %v2878, %v2658
        %v2911 = vsel %vm2808, %v2879, %v2660
        %v2912 = vsel %vm2808, %v2880, %v2662
        %v2913 = vsel %vm2808, %v2881, %v2664
        %v2914 = vsel %vm2808, %v2882, %v2666
        %v2915 = vsel %vm2808, %v2883, %v2668
        %v2916 = vsel %vm2808, %v2884, %v2670
        %v2917 = vsel %vm2808, %v2885, %v2672
        %v2918 = vsel %vm2808, %v2886, %v2674
        %v2919 = vsel %vm2808, %v2887, %v2676
        %v2920 = vsel %vm2808, %v2888, %v2678
        %v2921 = vsel %vm2808, %v2889, %v2680
        %v2922 = vsel %vm2808, %v2890, %v2682
        %v2923 = vsel %vm2808, %v2891, %v2684
        %v2924 = vsel %vm2808, %v2892, %v2686
        %v2925 = vsel %vm2808, %v2893, %v2688
        %v2926 = vsel %vm2808, %v2894, %v2690
        %v2927 = vsel %vm2808, %v2895, %v2692
        %v2928 = vsel %vm2808, %v2896, %v2694
        %v2929 = vsel %vm2808, %v2897, %v2696
        %v2930 = vsel %vm2808, %v2898, %v2698
        %v2931 = vsel %vm2808, %v2899, %v2700
        %v2932 = vsel %vm2808, %v2900, %v2702
        %v2933 = vsel %vm2808, %v2901, %v2704
        %v2934 = vsel %vm2808, %v2902, %v2706
        %v2935 = vsel %vm2808, %v2903, %v2708
        %v2936 = vsel %vm2808, %v2904, %v2710
        %v2937 = vpack.c.bf16 %v2810, %v2809
        %v2938 = vpack.c.bf16 %v2906, %v2905
        %v2939 = vpack.c.bf16 %v1972, %v1971
        %v2940 = vpack.c.bf16 %v2812, %v2811
        %v2941 = vpack.c.bf16 %v2908, %v2907
        %v2942 = vpack.c.bf16 %v1974, %v1973
        %v2943 = vpack.c.bf16 %v2814, %v2813
        %v2944 = vpack.c.bf16 %v2910, %v2909
        %v2945 = vpack.c.bf16 %v1976, %v1975
        %v2946 = vpack.c.bf16 %v2816, %v2815
        %v2947 = vpack.c.bf16 %v2912, %v2911
        %v2948 = vpack.c.bf16 %v1978, %v1977
        %v2949 = vpack.c.bf16 %v2818, %v2817
        %v2950 = vpack.c.bf16 %v2914, %v2913
        %v2951 = vpack.c.bf16 %v1980, %v1979
        %v2952 = vpack.c.bf16 %v2820, %v2819
        %v2953 = vpack.c.bf16 %v2916, %v2915
        %v2954 = vpack.c.bf16 %v1982, %v1981
        %v2955 = vpack.c.bf16 %v2822, %v2821
        %v2956 = vpack.c.bf16 %v2918, %v2917
        %v2957 = vpack.c.bf16 %v1984, %v1983
        %v2958 = vpack.c.bf16 %v2824, %v2823
        %v2959 = vpack.c.bf16 %v2920, %v2919
        %v2960 = vpack.c.bf16 %v1986, %v1985
        %v2961 = vpack.c.bf16 %v2826, %v2825
        %v2962 = vpack.c.bf16 %v2922, %v2921
        %v2963 = vpack.c.bf16 %v1988, %v1987
        %v2964 = vpack.c.bf16 %v2828, %v2827
        %v2965 = vpack.c.bf16 %v2924, %v2923
        %v2966 = vpack.c.bf16 %v1990, %v1989
        %v2967 = vpack.c.bf16 %v2830, %v2829
        %v2968 = vpack.c.bf16 %v2926, %v2925
        %v2969 = vpack.c.bf16 %v1992, %v1991
        %v2970 = vpack.c.bf16 %v2832, %v2831
        %v2971 = vpack.c.bf16 %v2928, %v2927
        %v2972 = vpack.c.bf16 %v1994, %v1993
        %v2973 = vpack.c.bf16 %v2834, %v2833
        %v2974 = vpack.c.bf16 %v2930, %v2929
        %v2975 = vpack.c.bf16 %v1996, %v1995
        %v2976 = vpack.c.bf16 %v2836, %v2835
        %v2977 = vpack.c.bf16 %v2932, %v2931
        %v2978 = vpack.c.bf16 %v1998, %v1997
        %v2979 = vpack.c.bf16 %v2838, %v2837
        %v2980 = vpack.c.bf16 %v2934, %v2933
        %v2981 = vpack.c.bf16 %v2000, %v1999
        %v2982 = vpack.c.bf16 %v2840, %v2839
        %v2983 = vpack.c.bf16 %v2936, %v2935
        %v2984 = vpack.c.bf16 %v2002, %v2001
        %v2985 = vld [vmem:[%s3] sm:$0xf]
        %v2986 = vld [vmem:[%s3 + $0x4] sm:$0xf]
        %v2987 = vld [vmem:[%s3 + $0x8] sm:$0xf]
        %v2988 = vld [vmem:[%s3 + $0xc] sm:$0xf]
        %v2989 = vld [vmem:[%s3 + $0x10] sm:$0xf]
        %v2990 = vld [vmem:[%s3 + $0x14] sm:$0xf]
        %v2991 = vld [vmem:[%s3 + $0x18] sm:$0xf]
        %v2992 = vld [vmem:[%s3 + $0x1c] sm:$0xf]
        %v2993 = vld [vmem:[%s3 + $0x20] sm:$0xf]
        %v2994 = vld [vmem:[%s3 + $0x24] sm:$0xf]
        %v2995 = vld [vmem:[%s3 + $0x28] sm:$0xf]
        %v2996 = vld [vmem:[%s3 + $0x2c] sm:$0xf]
        %v2997 = vld [vmem:[%s3 + $0x30] sm:$0xf]
        %v2998 = vld [vmem:[%s3 + $0x34] sm:$0xf]
        %v2999 = vld [vmem:[%s3 + $0x38] sm:$0xf]
        %v3000 = vld [vmem:[%s3 + $0x3c] sm:$0xf]
        %v3001 = vld [vmem:[%s3 + $0x40] sm:$0xf]
        %v3002 = vld [vmem:[%s3 + $0x44] sm:$0xf]
        %v3003 = vld [vmem:[%s3 + $0x48] sm:$0xf]
        %v3004 = vld [vmem:[%s3 + $0x4c] sm:$0xf]
        %v3005 = vld [vmem:[%s3 + $0x50] sm:$0xf]
        %v3006 = vld [vmem:[%s3 + $0x54] sm:$0xf]
        %v3007 = vld [vmem:[%s3 + $0x58] sm:$0xf]
        %v3008 = vld [vmem:[%s3 + $0x5c] sm:$0xf]
        %v3009 = vld [vmem:[%s3 + $0x60] sm:$0xf]
        %v3010 = vld [vmem:[%s3 + $0x64] sm:$0xf]
        %v3011 = vld [vmem:[%s3 + $0x68] sm:$0xf]
        %v3012 = vld [vmem:[%s3 + $0x6c] sm:$0xf]
        %v3013 = vld [vmem:[%s3 + $0x70] sm:$0xf]
        %v3014 = vld [vmem:[%s3 + $0x74] sm:$0xf]
        %v3015 = vld [vmem:[%s3 + $0x78] sm:$0xf]
        %v3016 = vld [vmem:[%s3 + $0x7c] sm:$0xf]
        %v3017 = vld [vmem:[%s3 + $0x80] sm:$0xf]
        %v3018 = vld [vmem:[%s3 + $0x84] sm:$0xf]
        %v3019 = vld [vmem:[%s3 + $0x88] sm:$0xf]
        %v3020 = vld [vmem:[%s3 + $0x8c] sm:$0xf]
        %v3021 = vld [vmem:[%s4] sm:$0x1]
        %v3023 = vlaneseq
        %v3024 = vshrl.u32 %v3023, 7
        %v3025 = vsub.s32 0, %v3024
        %v3026 = vrot.slane %v3021, %v3025
        %v3064 = vunpack.c.l.b16 %v2985
        %v3065 = vunpack.c.l.b16 %v2986
        %v3066 = vunpack.c.l.b16 %v2987
        %v3067 = vunpack.c.l.b16 %v2988
        %v3068 = vunpack.c.l.b16 %v2989
        %v3069 = vunpack.c.l.b16 %v2990
        %v3070 = vunpack.c.l.b16 %v2991
        %v3071 = vunpack.c.l.b16 %v2992
        %v3072 = vunpack.c.l.b16 %v2993
        %v3073 = vunpack.c.l.b16 %v2994
        %v3074 = vunpack.c.l.b16 %v2995
        %v3075 = vunpack.c.l.b16 %v2996
        %v3076 = vunpack.c.l.b16 %v2997
        %v3077 = vunpack.c.l.b16 %v2998
        %v3078 = vunpack.c.l.b16 %v2999
        %v3079 = vunpack.c.l.b16 %v3000
        %v3080 = vunpack.c.l.b16 %v3001
        %v3081 = vunpack.c.l.b16 %v3002
        %v3082 = vunpack.c.l.b16 %v3003
        %v3083 = vunpack.c.l.b16 %v3004
        %v3084 = vunpack.c.l.b16 %v3005
        %v3085 = vunpack.c.l.b16 %v3006
        %v3086 = vunpack.c.l.b16 %v3007
        %v3087 = vunpack.c.l.b16 %v3008
        %v3088 = vunpack.c.l.b16 %v3009
        %v3089 = vunpack.c.l.b16 %v3010
        %v3090 = vunpack.c.l.b16 %v3011
        %v3091 = vunpack.c.l.b16 %v3012
        %v3092 = vunpack.c.l.b16 %v3013
        %v3093 = vunpack.c.l.b16 %v3014
        %v3094 = vunpack.c.l.b16 %v3015
        %v3095 = vunpack.c.l.b16 %v3016
        %v3096 = vunpack.c.l.b16 %v3017
        %v3097 = vunpack.c.l.b16 %v3018
        %v3098 = vunpack.c.l.b16 %v3019
        %v3099 = vunpack.c.l.b16 %v3020
        %v3100 = vpack.c.b16 %v3065, %v3064
        %v3101 = vpack.c.b16 %v3067, %v3066
        %v3102 = vpack.c.b16 %v3069, %v3068
        %v3103 = vpack.c.b16 %v3071, %v3070
        %v3104 = vpack.c.b16 %v3073, %v3072
        %v3105 = vpack.c.b16 %v3075, %v3074
        %v3106 = vpack.c.b16 %v3077, %v3076
        %v3107 = vpack.c.b16 %v3079, %v3078
        %v3108 = vpack.c.b16 %v3081, %v3080
        %v3109 = vpack.c.b16 %v3083, %v3082
        %v3110 = vpack.c.b16 %v3085, %v3084
        %v3111 = vpack.c.b16 %v3087, %v3086
        %v3112 = vpack.c.b16 %v3089, %v3088
        %v3113 = vpack.c.b16 %v3091, %v3090
        %v3114 = vpack.c.b16 %v3093, %v3092
        %v3115 = vpack.c.b16 %v3095, %v3094
        %v3116 = vpack.c.b16 %v3097, %v3096
        %v3117 = vpack.c.b16 %v3099, %v3098
        %v3137 = vsel %vm1090, %v2939, 0
        %v3140 = vsel %vm1090, %v2942, 0
        %v3143 = vsel %vm1090, %v2945, 0
        %v3146 = vsel %vm1090, %v2948, 0
        %v3149 = vsel %vm1090, %v2951, 0
        %v3152 = vsel %vm1090, %v2954, 0
        %v3155 = vsel %vm1090, %v2957, 0
        %v3158 = vsel %vm1090, %v2960, 0
        %v3161 = vsel %vm1090, %v2963, 0
        %v3164 = vsel %vm1090, %v2966, 0
        %v3167 = vsel %vm1090, %v2969, 0
        %v3170 = vsel %vm1090, %v2972, 0
        %v3173 = vsel %vm1090, %v2975, 0
        %v3176 = vsel %vm1090, %v2978, 0
        %v3179 = vsel %vm1090, %v2981, 0
        %v3182 = vsel %vm1090, %v2984, 0
        %3184 = vmatprep.subr.bf16.mxu0 0
        %3185 = vmatpush1.bf16.msra.mxu0 %v3100
        %3186 = vmatprep.subr.bf16.mxu0 0
        %3187 = vmatpush1.bf16.msra.mxu0 %v3101
        %3188 = vmatprep.subr.bf16.mxu0 0
        %3189 = vmatpush1.bf16.msra.mxu0 %v3102
        %3190 = vmatprep.subr.bf16.mxu0 0
        %3191 = vmatpush1.bf16.msra.mxu0 %v3103
        %3192 = vmatprep.subr.bf16.mxu0 0
        %3193 = vmatpush1.bf16.msra.mxu0 %v3104
        %3194 = vmatprep.subr.bf16.mxu0 0
        %3195 = vmatpush1.bf16.msra.mxu0 %v3105
        %3196 = vmatprep.subr.bf16.mxu0 0
        %3197 = vmatpush1.bf16.msra.mxu0 %v3106
        %3198 = vmatprep.subr.bf16.mxu0 0
        %3199 = vmatpush1.bf16.msra.mxu0 %v3107
        %3200 = vmatprep.subr.bf16.mxu0 0
        %3201 = vmatpush1.bf16.msra.mxu0 %v3108
        %3202 = vmatprep.subr.bf16.mxu0 0
        %3203 = vmatpush1.bf16.msra.mxu0 %v3109
        %3204 = vmatprep.subr.bf16.mxu0 0
        %3205 = vmatpush1.bf16.msra.mxu0 %v3110
        %3206 = vmatprep.subr.bf16.mxu0 0
        %3207 = vmatpush1.bf16.msra.mxu0 %v3111
        %3208 = vmatprep.subr.bf16.mxu0 0
        %3209 = vmatpush1.bf16.msra.mxu0 %v3112
        %3210 = vmatprep.subr.bf16.mxu0 0
        %3211 = vmatpush1.bf16.msra.mxu0 %v3113
        %3212 = vmatprep.subr.bf16.mxu0 0
        %3213 = vmatpush1.bf16.msra.mxu0 %v3114
        %3214 = vmatprep.subr.bf16.mxu0 0
        %3215 = vmatpush1.bf16.msra.mxu0 %v3115
        %3216 = vmatprep.mubr.bf16.mxu0 %v2938
        %3217 = vmatmul.mubr.bf16.gmra.mrb[0].mxu0 %v2937
        %v3218 = vpop.f32.mrb[0].mxu0
        %v3219 = vadd.f32 %v3026, %v3218
        %v3220 = vpop.f32.mrb[0].mxu0
        %v3221 = vpop.f32.mrb[0].mxu0
        %v3222 = vadd.f32 %v3026, %v3221
        %v3223 = vpop.f32.mrb[0].mxu0
        %3224 = vmatprep.mubr.bf16.mxu0 %v2941
        %3225 = vmatmul.mubr.bf16.gmra.mrb[0].mxu0 %v2940
        %v3226 = vpop.f32.mrb[0].mxu0
        %v3227 = vadd.f32 %v3026, %v3226
        %v3228 = vpop.f32.mrb[0].mxu0
        %v3229 = vpop.f32.mrb[0].mxu0
        %v3230 = vadd.f32 %v3026, %v3229
        %v3231 = vpop.f32.mrb[0].mxu0
        %3232 = vmatprep.mubr.bf16.mxu0 %v2944
        %3233 = vmatmul.mubr.bf16.gmra.mrb[0].mxu0 %v2943
        %v3234 = vpop.f32.mrb[0].mxu0
        %v3235 = vadd.f32 %v3026, %v3234
        %v3236 = vpop.f32.mrb[0].mxu0
        %v3237 = vpop.f32.mrb[0].mxu0
        %v3238 = vadd.f32 %v3026, %v3237
        %v3239 = vpop.f32.mrb[0].mxu0
        %3240 = vmatprep.mubr.bf16.mxu0 %v2947
        %3241 = vmatmul.mubr.bf16.gmra.mrb[0].mxu0 %v2946
        %v3242 = vpop.f32.mrb[0].mxu0
        %v3243 = vadd.f32 %v3026, %v3242
        %v3244 = vpop.f32.mrb[0].mxu0
        %v3245 = vpop.f32.mrb[0].mxu0
        %v3246 = vadd.f32 %v3026, %v3245
        %v3247 = vpop.f32.mrb[0].mxu0
        %3248 = vmatprep.mubr.bf16.mxu0 %v2950
        %3249 = vmatmul.mubr.bf16.gmra.mrb[0].mxu0 %v2949
        %v3250 = vpop.f32.mrb[0].mxu0
        %v3251 = vadd.f32 %v3026, %v3250
        %v3252 = vpop.f32.mrb[0].mxu0
        %v3253 = vpop.f32.mrb[0].mxu0
        %v3254 = vadd.f32 %v3026, %v3253
        %v3255 = vpop.f32.mrb[0].mxu0
        %3256 = vmatprep.mubr.bf16.mxu0 %v2953
        %3257 = vmatmul.mubr.bf16.gmra.mrb[0].mxu0 %v2952
        %v3258 = vpop.f32.mrb[0].mxu0
        %v3259 = vadd.f32 %v3026, %v3258
        %v3260 = vpop.f32.mrb[0].mxu0
        %v3261 = vpop.f32.mrb[0].mxu0
        %v3262 = vadd.f32 %v3026, %v3261
        %v3263 = vpop.f32.mrb[0].mxu0
        %3264 = vmatprep.mubr.bf16.mxu0 %v2956
        %3265 = vmatmul.mubr.bf16.gmra.mrb[0].mxu0 %v2955
        %v3266 = vpop.f32.mrb[0].mxu0
        %v3267 = vadd.f32 %v3026, %v3266
        %v3268 = vpop.f32.mrb[0].mxu0
        %v3269 = vpop.f32.mrb[0].mxu0
        %v3270 = vadd.f32 %v3026, %v3269
        %v3271 = vpop.f32.mrb[0].mxu0
        %3272 = vmatprep.mubr.bf16.mxu0 %v2959
        %3273 = vmatmul.mubr.bf16.gmra.mrb[0].mxu0 %v2958
        %v3274 = vpop.f32.mrb[0].mxu0
        %v3275 = vadd.f32 %v3026, %v3274
        %v3276 = vpop.f32.mrb[0].mxu0
        %v3277 = vpop.f32.mrb[0].mxu0
        %v3278 = vadd.f32 %v3026, %v3277
        %v3279 = vpop.f32.mrb[0].mxu0
        %3280 = vmatprep.mubr.bf16.mxu0 %v2962
        %3281 = vmatmul.mubr.bf16.gmra.mrb[0].mxu0 %v2961
        %v3282 = vpop.f32.mrb[0].mxu0
        %v3283 = vadd.f32 %v3026, %v3282
        %v3284 = vpop.f32.mrb[0].mxu0
        %v3285 = vpop.f32.mrb[0].mxu0
        %v3286 = vadd.f32 %v3026, %v3285
        %v3287 = vpop.f32.mrb[0].mxu0
        %3288 = vmatprep.mubr.bf16.mxu0 %v2965
        %3289 = vmatmul.mubr.bf16.gmra.mrb[0].mxu0 %v2964
        %v3290 = vpop.f32.mrb[0].mxu0
        %v3291 = vadd.f32 %v3026, %v3290
        %v3292 = vpop.f32.mrb[0].mxu0
        %v3293 = vpop.f32.mrb[0].mxu0
        %v3294 = vadd.f32 %v3026, %v3293
        %v3295 = vpop.f32.mrb[0].mxu0
        %3296 = vmatprep.mubr.bf16.mxu0 %v2968
        %3297 = vmatmul.mubr.bf16.gmra.mrb[0].mxu0 %v2967
        %v3298 = vpop.f32.mrb[0].mxu0
        %v3299 = vadd.f32 %v3026, %v3298
        %v3300 = vpop.f32.mrb[0].mxu0
        %v3301 = vpop.f32.mrb[0].mxu0
        %v3302 = vadd.f32 %v3026, %v3301
        %v3303 = vpop.f32.mrb[0].mxu0
        %3304 = vmatprep.mubr.bf16.mxu0 %v2971
        %3305 = vmatmul.mubr.bf16.gmra.mrb[0].mxu0 %v2970
        %v3306 = vpop.f32.mrb[0].mxu0
        %v3307 = vadd.f32 %v3026, %v3306
        %v3308 = vpop.f32.mrb[0].mxu0
        %v3309 = vpop.f32.mrb[0].mxu0
        %v3310 = vadd.f32 %v3026, %v3309
        %v3311 = vpop.f32.mrb[0].mxu0
        %3312 = vmatprep.mubr.bf16.mxu0 %v2974
        %3313 = vmatmul.mubr.bf16.gmra.mrb[0].mxu0 %v2973
        %v3314 = vpop.f32.mrb[0].mxu0
        %v3315 = vadd.f32 %v3026, %v3314
        %v3316 = vpop.f32.mrb[0].mxu0
        %v3317 = vpop.f32.mrb[0].mxu0
        %v3318 = vadd.f32 %v3026, %v3317
        %v3319 = vpop.f32.mrb[0].mxu0
        %3320 = vmatprep.mubr.bf16.mxu0 %v2977
        %3321 = vmatmul.mubr.bf16.gmra.mrb[0].mxu0 %v2976
        %v3322 = vpop.f32.mrb[0].mxu0
        %v3323 = vadd.f32 %v3026, %v3322
        %v3324 = vpop.f32.mrb[0].mxu0
        %v3325 = vpop.f32.mrb[0].mxu0
        %v3326 = vadd.f32 %v3026, %v3325
        %v3327 = vpop.f32.mrb[0].mxu0
        %3328 = vmatprep.mubr.bf16.mxu0 %v2980
        %3329 = vmatmul.mubr.bf16.gmra.mrb[0].mxu0 %v2979
        %v3330 = vpop.f32.mrb[0].mxu0
        %v3331 = vadd.f32 %v3026, %v3330
        %v3332 = vpop.f32.mrb[0].mxu0
        %v3333 = vpop.f32.mrb[0].mxu0
        %v3334 = vadd.f32 %v3026, %v3333
        %v3335 = vpop.f32.mrb[0].mxu0
        %3336 = vmatprep.mubr.bf16.mxu0 %v2983
        %3337 = vmatmul.mubr.bf16.gmra.mrb[0].mxu0 %v2982
        %v3338 = vpop.f32.mrb[0].mxu0
        %v3339 = vadd.f32 %v3026, %v3338
        %v3340 = vpop.f32.mrb[0].mxu0
        %v3341 = vpop.f32.mrb[0].mxu0
        %v3342 = vadd.f32 %v3026, %v3341
        %v3343 = vpop.f32.mrb[0].mxu0
        %3344 = vdwg.mxu0
        %3345 = vmatprep.subr.bf16.mxu0 0
        %3346 = vmatpush1.bf16.msra.mxu0 %v3116
        %3347 = vmatprep.subr.bf16.mxu0 0
        %3348 = vmatpush1.bf16.msra.mxu0 %v3117
        %3349 = vmatprep.subr.bf16.mxu0 0
        %3350 = vmatpush1.bf16.msra.mxu0 0
        %3351 = vmatprep.subr.bf16.mxu0 0
        %3352 = vmatpush1.bf16.msra.mxu0 0
        %3353 = vmatprep.subr.bf16.mxu0 0
        %3354 = vmatpush1.bf16.msra.mxu0 0
        %3355 = vmatprep.subr.bf16.mxu0 0
        %3356 = vmatpush1.bf16.msra.mxu0 0
        %3357 = vmatprep.subr.bf16.mxu0 0
        %3358 = vmatpush1.bf16.msra.mxu0 0
        %3359 = vmatprep.subr.bf16.mxu0 0
        %3360 = vmatpush1.bf16.msra.mxu0 0
        %3361 = vmatprep.subr.bf16.mxu0 0
        %3362 = vmatpush1.bf16.msra.mxu0 0
        %3363 = vmatprep.subr.bf16.mxu0 0
        %3364 = vmatpush1.bf16.msra.mxu0 0
        %3365 = vmatprep.subr.bf16.mxu0 0
        %3366 = vmatpush1.bf16.msra.mxu0 0
        %3367 = vmatprep.subr.bf16.mxu0 0
        %3368 = vmatpush1.bf16.msra.mxu0 0
        %3369 = vmatprep.subr.bf16.mxu0 0
        %3370 = vmatpush1.bf16.msra.mxu0 0
        %3371 = vmatprep.subr.bf16.mxu0 0
        %3372 = vmatpush1.bf16.msra.mxu0 0
        %3373 = vmatprep.subr.bf16.mxu0 0
        %3374 = vmatpush1.bf16.msra.mxu0 0
        %3375 = vmatprep.subr.bf16.mxu0 0
        %3376 = vmatpush1.bf16.msra.mxu0 0
        %3377 = vmatprep.mubr.bf16.mxu0 0
        %3378 = vmatmul.mubr.bf16.gmra.mrb[0].mxu0 %v3137
        %v3379 = vpop.f32.mrb[0].mxu0
        %v3380 = vadd.f32 %v3219, %v3379
        %v3381 = vpop.f32.mrb[0].mxu0
        %v3382 = vpop.f32.mrb[0].mxu0
        %v3383 = vadd.f32 %v3222, %v3382
        %v3384 = vpop.f32.mrb[0].mxu0
        %3385 = vmatprep.mubr.bf16.mxu0 0
        %3386 = vmatmul.mubr.bf16.gmra.mrb[0].mxu0 %v3140
        %v3387 = vpop.f32.mrb[0].mxu0
        %v3388 = vadd.f32 %v3227, %v3387
        %v3389 = vpop.f32.mrb[0].mxu0
        %v3390 = vpop.f32.mrb[0].mxu0
        %v3391 = vadd.f32 %v3230, %v3390
        %v3392 = vpop.f32.mrb[0].mxu0
        %3393 = vmatprep.mubr.bf16.mxu0 0
        %3394 = vmatmul.mubr.bf16.gmra.mrb[0].mxu0 %v3143
        %v3395 = vpop.f32.mrb[0].mxu0
        %v3396 = vadd.f32 %v3235, %v3395
        %v3397 = vpop.f32.mrb[0].mxu0
        %v3398 = vpop.f32.mrb[0].mxu0
        %v3399 = vadd.f32 %v3238, %v3398
        %v3400 = vpop.f32.mrb[0].mxu0
        %3401 = vmatprep.mubr.bf16.mxu0 0
        %3402 = vmatmul.mubr.bf16.gmra.mrb[0].mxu0 %v3146
        %v3403 = vpop.f32.mrb[0].mxu0
        %v3404 = vadd.f32 %v3243, %v3403
        %v3405 = vpop.f32.mrb[0].mxu0
        %v3406 = vpop.f32.mrb[0].mxu0
        %v3407 = vadd.f32 %v3246, %v3406
        %v3408 = vpop.f32.mrb[0].mxu0
        %3409 = vmatprep.mubr.bf16.mxu0 0
        %3410 = vmatmul.mubr.bf16.gmra.mrb[0].mxu0 %v3149
        %v3411 = vpop.f32.mrb[0].mxu0
        %v3412 = vadd.f32 %v3251, %v3411
        %v3413 = vpop.f32.mrb[0].mxu0
        %v3414 = vpop.f32.mrb[0].mxu0
        %v3415 = vadd.f32 %v3254, %v3414
        %v3416 = vpop.f32.mrb[0].mxu0
        %3417 = vmatprep.mubr.bf16.mxu0 0
        %3418 = vmatmul.mubr.bf16.gmra.mrb[0].mxu0 %v3152
        %v3419 = vpop.f32.mrb[0].mxu0
        %v3420 = vadd.f32 %v3259, %v3419
        %v3421 = vpop.f32.mrb[0].mxu0
        %v3422 = vpop.f32.mrb[0].mxu0
        %v3423 = vadd.f32 %v3262, %v3422
        %v3424 = vpop.f32.mrb[0].mxu0
        %3425 = vmatprep.mubr.bf16.mxu0 0
        %3426 = vmatmul.mubr.bf16.gmra.mrb[0].mxu0 %v3155
        %v3427 = vpop.f32.mrb[0].mxu0
        %v3428 = vadd.f32 %v3267, %v3427
        %v3429 = vpop.f32.mrb[0].mxu0
        %v3430 = vpop.f32.mrb[0].mxu0
        %v3431 = vadd.f32 %v3270, %v3430
        %v3432 = vpop.f32.mrb[0].mxu0
        %3433 = vmatprep.mubr.bf16.mxu0 0
        %3434 = vmatmul.mubr.bf16.gmra.mrb[0].mxu0 %v3158
        %v3435 = vpop.f32.mrb[0].mxu0
        %v3436 = vadd.f32 %v3275, %v3435
        %v3437 = vpop.f32.mrb[0].mxu0
        %v3438 = vpop.f32.mrb[0].mxu0
        %v3439 = vadd.f32 %v3278, %v3438
        %v3440 = vpop.f32.mrb[0].mxu0
        %3441 = vmatprep.mubr.bf16.mxu0 0
        %3442 = vmatmul.mubr.bf16.gmra.mrb[0].mxu0 %v3161
        %v3443 = vpop.f32.mrb[0].mxu0
        %v3444 = vadd.f32 %v3283, %v3443
        %v3445 = vpop.f32.mrb[0].mxu0
        %v3446 = vpop.f32.mrb[0].mxu0
        %v3447 = vadd.f32 %v3286, %v3446
        %v3448 = vpop.f32.mrb[0].mxu0
        %3449 = vmatprep.mubr.bf16.mxu0 0
        %3450 = vmatmul.mubr.bf16.gmra.mrb[0].mxu0 %v3164
        %v3451 = vpop.f32.mrb[0].mxu0
        %v3452 = vadd.f32 %v3291, %v3451
        %v3453 = vpop.f32.mrb[0].mxu0
        %v3454 = vpop.f32.mrb[0].mxu0
        %v3455 = vadd.f32 %v3294, %v3454
        %v3456 = vpop.f32.mrb[0].mxu0
        %3457 = vmatprep.mubr.bf16.mxu0 0
        %3458 = vmatmul.mubr.bf16.gmra.mrb[0].mxu0 %v3167
        %v3459 = vpop.f32.mrb[0].mxu0
        %v3460 = vadd.f32 %v3299, %v3459
        %v3461 = vpop.f32.mrb[0].mxu0
        %v3462 = vpop.f32.mrb[0].mxu0
        %v3463 = vadd.f32 %v3302, %v3462
        %v3464 = vpop.f32.mrb[0].mxu0
        %3465 = vmatprep.mubr.bf16.mxu0 0
        %3466 = vmatmul.mubr.bf16.gmra.mrb[0].mxu0 %v3170
        %v3467 = vpop.f32.mrb[0].mxu0
        %v3468 = vadd.f32 %v3307, %v3467
        %v3469 = vpop.f32.mrb[0].mxu0
        %v3470 = vpop.f32.mrb[0].mxu0
        %v3471 = vadd.f32 %v3310, %v3470
        %v3472 = vpop.f32.mrb[0].mxu0
        %3473 = vmatprep.mubr.bf16.mxu0 0
        %3474 = vmatmul.mubr.bf16.gmra.mrb[0].mxu0 %v3173
        %v3475 = vpop.f32.mrb[0].mxu0
        %v3476 = vadd.f32 %v3315, %v3475
        %v3477 = vpop.f32.mrb[0].mxu0
        %v3478 = vpop.f32.mrb[0].mxu0
        %v3479 = vadd.f32 %v3318, %v3478
        %v3480 = vpop.f32.mrb[0].mxu0
        %3481 = vmatprep.mubr.bf16.mxu0 0
        %3482 = vmatmul.mubr.bf16.gmra.mrb[0].mxu0 %v3176
        %v3483 = vpop.f32.mrb[0].mxu0
        %v3484 = vadd.f32 %v3323, %v3483
        %v3485 = vpop.f32.mrb[0].mxu0
        %v3486 = vpop.f32.mrb[0].mxu0
        %v3487 = vadd.f32 %v3326, %v3486
        %v3488 = vpop.f32.mrb[0].mxu0
        %3489 = vmatprep.mubr.bf16.mxu0 0
        %3490 = vmatmul.mubr.bf16.gmra.mrb[0].mxu0 %v3179
        %v3491 = vpop.f32.mrb[0].mxu0
        %v3492 = vadd.f32 %v3331, %v3491
        %v3493 = vpop.f32.mrb[0].mxu0
        %v3494 = vpop.f32.mrb[0].mxu0
        %v3495 = vadd.f32 %v3334, %v3494
        %v3496 = vpop.f32.mrb[0].mxu0
        %3497 = vmatprep.mubr.bf16.mxu0 0
        %3498 = vmatmul.mubr.bf16.gmra.mrb[0].mxu0 %v3182
        %v3499 = vpop.f32.mrb[0].mxu0
        %v3500 = vadd.f32 %v3339, %v3499
        %v3501 = vpop.f32.mrb[0].mxu0
        %v3502 = vpop.f32.mrb[0].mxu0
        %v3503 = vadd.f32 %v3342, %v3502
        %v3504 = vpop.f32.mrb[0].mxu0
        %3505 = vdwg.mxu0
        %v3506 = vmax.f32 %v3380, 0.0
        %v3507 = vmax.f32 %v3383, 0.0
        %v3508 = vmax.f32 %v3388, 0.0
        %v3509 = vmax.f32 %v3391, 0.0
        %v3510 = vmax.f32 %v3396, 0.0
        %v3511 = vmax.f32 %v3399, 0.0
        %v3512 = vmax.f32 %v3404, 0.0
        %v3513 = vmax.f32 %v3407, 0.0
        %v3514 = vmax.f32 %v3412, 0.0
        %v3515 = vmax.f32 %v3415, 0.0
        %v3516 = vmax.f32 %v3420, 0.0
        %v3517 = vmax.f32 %v3423, 0.0
        %v3518 = vmax.f32 %v3428, 0.0
        %v3519 = vmax.f32 %v3431, 0.0
        %v3520 = vmax.f32 %v3436, 0.0
        %v3521 = vmax.f32 %v3439, 0.0
        %v3522 = vmax.f32 %v3444, 0.0
        %v3523 = vmax.f32 %v3447, 0.0
        %v3524 = vmax.f32 %v3452, 0.0
        %v3525 = vmax.f32 %v3455, 0.0
        %v3526 = vmax.f32 %v3460, 0.0
        %v3527 = vmax.f32 %v3463, 0.0
        %v3528 = vmax.f32 %v3468, 0.0
        %v3529 = vmax.f32 %v3471, 0.0
        %v3530 = vmax.f32 %v3476, 0.0
        %v3531 = vmax.f32 %v3479, 0.0
        %v3532 = vmax.f32 %v3484, 0.0
        %v3533 = vmax.f32 %v3487, 0.0
        %v3534 = vmax.f32 %v3492, 0.0
        %v3535 = vmax.f32 %v3495, 0.0
        %v3536 = vmax.f32 %v3500, 0.0
        %v3537 = vmax.f32 %v3503, 0.0
        %v3538 = vpack.c.bf16 %v3507, %v3506
        %v3539 = vpack.c.bf16 %v3509, %v3508
        %v3540 = vpack.c.bf16 %v3511, %v3510
        %v3541 = vpack.c.bf16 %v3513, %v3512
        %v3542 = vpack.c.bf16 %v3515, %v3514
        %v3543 = vpack.c.bf16 %v3517, %v3516
        %v3544 = vpack.c.bf16 %v3519, %v3518
        %v3545 = vpack.c.bf16 %v3521, %v3520
        %v3546 = vpack.c.bf16 %v3523, %v3522
        %v3547 = vpack.c.bf16 %v3525, %v3524
        %v3548 = vpack.c.bf16 %v3527, %v3526
        %v3549 = vpack.c.bf16 %v3529, %v3528
        %v3550 = vpack.c.bf16 %v3531, %v3530
        %v3551 = vpack.c.bf16 %v3533, %v3532
        %v3552 = vpack.c.bf16 %v3535, %v3534
        %v3553 = vpack.c.bf16 %v3537, %v3536
        %v3554 = vld [vmem:[%s5] sm:$0xf]
        %v3555 = vld [vmem:[%s5 + $0x4] sm:$0xf]
        %v3556 = vld [vmem:[%s5 + $0x8] sm:$0xf]
        %v3557 = vld [vmem:[%s5 + $0xc] sm:$0xf]
        %v3558 = vunpack.c.l.bf16 %v326
        %v3559 = vunpack.c.l.bf16 %v327
        %v3560 = vunpack.c.l.bf16 %v328
        %v3561 = vunpack.c.l.bf16 %v329
        %v3562 = vunpack.c.l.bf16 %v330
        %v3563 = vunpack.c.l.bf16 %v331
        %v3564 = vunpack.c.l.bf16 %v332
        %v3565 = vunpack.c.l.bf16 %v333
        %v3566 = vunpack.c.l.bf16 %v334
        %v3567 = vunpack.c.l.bf16 %v335
        %v3568 = vunpack.c.l.bf16 %v336
        %v3569 = vunpack.c.l.bf16 %v337
        %v3570 = vunpack.c.l.bf16 %v338
        %v3571 = vunpack.c.l.bf16 %v339
        %v3572 = vunpack.c.l.bf16 %v340
        %v3573 = vunpack.c.l.bf16 %v341
        %v3574 = vunpack.c.l.bf16 %v342
        %v3575 = vunpack.c.l.bf16 %v343
        %v3576 = vunpack.c.l.bf16 %v344
        %v3577 = vunpack.c.l.bf16 %v345
        %v3578 = vunpack.c.l.bf16 %v346
        %v3579 = vunpack.c.l.bf16 %v347
        %v3580 = vunpack.c.l.bf16 %v348
        %v3581 = vunpack.c.l.bf16 %v349
        %v3582 = vunpack.c.l.bf16 %v350
        %v3583 = vunpack.c.l.bf16 %v351
        %v3584 = vunpack.c.l.bf16 %v352
        %v3585 = vunpack.c.l.bf16 %v353
        %v3586 = vunpack.c.l.bf16 %v354
        %v3587 = vunpack.c.l.bf16 %v355
        %v3588 = vunpack.c.l.bf16 %v356
        %v3589 = vunpack.c.l.bf16 %v357
        %v3590 = vld [vmem:[%s6] sm:$0x1]
        %v3592 = vlaneseq
        %v3593 = vshrl.u32 %v3592, 7
        %v3594 = vsub.s32 0, %v3593
        %v3595 = vrot.slane %v3590, %v3594
        %v3601 = vunpack.c.l.b16 %v3554
        %v3602 = vunpack.c.l.b16 %v3555
        %v3603 = vunpack.c.l.b16 %v3556
        %v3604 = vunpack.c.l.b16 %v3557
        %v3605 = vpack.c.b16 %v3602, %v3601
        %v3606 = vpack.c.b16 %v3604, %v3603
        %v3610 = vsel %vm1090, %v3538, 0
        %v3613 = vsel %vm1090, %v3539, 0
        %v3616 = vsel %vm1090, %v3540, 0
        %v3619 = vsel %vm1090, %v3541, 0
        %v3622 = vsel %vm1090, %v3542, 0
        %v3625 = vsel %vm1090, %v3543, 0
        %v3628 = vsel %vm1090, %v3544, 0
        %v3631 = vsel %vm1090, %v3545, 0
        %v3634 = vsel %vm1090, %v3546, 0
        %v3637 = vsel %vm1090, %v3547, 0
        %v3640 = vsel %vm1090, %v3548, 0
        %v3643 = vsel %vm1090, %v3549, 0
        %v3646 = vsel %vm1090, %v3550, 0
        %v3649 = vsel %vm1090, %v3551, 0
        %v3652 = vsel %vm1090, %v3552, 0
        %v3655 = vsel %vm1090, %v3553, 0
        %3657 = vmatprep.subr.bf16.mxu0 0
        %3658 = vmatpush1.bf16.msra.mxu0 %v3605
        %3659 = vmatprep.subr.bf16.mxu0 0
        %3660 = vmatpush1.bf16.msra.mxu0 %v3606
        %3661 = vmatprep.subr.bf16.mxu0 0
        %3662 = vmatpush1.bf16.msra.mxu0 0
        %3663 = vmatprep.subr.bf16.mxu0 0
        %3664 = vmatpush1.bf16.msra.mxu0 0
        %3665 = vmatprep.subr.bf16.mxu0 0
        %3666 = vmatpush1.bf16.msra.mxu0 0
        %3667 = vmatprep.subr.bf16.mxu0 0
        %3668 = vmatpush1.bf16.msra.mxu0 0
        %3669 = vmatprep.subr.bf16.mxu0 0
        %3670 = vmatpush1.bf16.msra.mxu0 0
        %3671 = vmatprep.subr.bf16.mxu0 0
        %3672 = vmatpush1.bf16.msra.mxu0 0
        %3673 = vmatprep.subr.bf16.mxu0 0
        %3674 = vmatpush1.bf16.msra.mxu0 0
        %3675 = vmatprep.subr.bf16.mxu0 0
        %3676 = vmatpush1.bf16.msra.mxu0 0
        %3677 = vmatprep.subr.bf16.mxu0 0
        %3678 = vmatpush1.bf16.msra.mxu0 0
        %3679 = vmatprep.subr.bf16.mxu0 0
        %3680 = vmatpush1.bf16.msra.mxu0 0
        %3681 = vmatprep.subr.bf16.mxu0 0
        %3682 = vmatpush1.bf16.msra.mxu0 0
        %3683 = vmatprep.subr.bf16.mxu0 0
        %3684 = vmatpush1.bf16.msra.mxu0 0
        %3685 = vmatprep.subr.bf16.mxu0 0
        %3686 = vmatpush1.bf16.msra.mxu0 0
        %3687 = vmatprep.subr.bf16.mxu0 0
        %3688 = vmatpush1.bf16.msra.mxu0 0
        %3689 = vmatprep.mubr.bf16.mxu0 0
        %3690 = vmatmul.mubr.bf16.gmra.mrb[0].mxu0 %v3610
        %v3691 = vpop.f32.mrb[0].mxu0
        %v3692 = vadd.f32 %v3595, %v3691
        %v3693 = vpop.f32.mrb[0].mxu0
        %v3694 = vpop.f32.mrb[0].mxu0
        %v3695 = vadd.f32 %v3595, %v3694
        %v3696 = vpop.f32.mrb[0].mxu0
        %3697 = vmatprep.mubr.bf16.mxu0 0
        %3698 = vmatmul.mubr.bf16.gmra.mrb[0].mxu0 %v3613
        %v3699 = vpop.f32.mrb[0].mxu0
        %v3700 = vadd.f32 %v3595, %v3699
        %v3701 = vpop.f32.mrb[0].mxu0
        %v3702 = vpop.f32.mrb[0].mxu0
        %v3703 = vadd.f32 %v3595, %v3702
        %v3704 = vpop.f32.mrb[0].mxu0
        %3705 = vmatprep.mubr.bf16.mxu0 0
        %3706 = vmatmul.mubr.bf16.gmra.mrb[0].mxu0 %v3616
        %v3707 = vpop.f32.mrb[0].mxu0
        %v3708 = vadd.f32 %v3595, %v3707
        %v3709 = vpop.f32.mrb[0].mxu0
        %v3710 = vpop.f32.mrb[0].mxu0
        %v3711 = vadd.f32 %v3595, %v3710
        %v3712 = vpop.f32.mrb[0].mxu0
        %3713 = vmatprep.mubr.bf16.mxu0 0
        %3714 = vmatmul.mubr.bf16.gmra.mrb[0].mxu0 %v3619
        %v3715 = vpop.f32.mrb[0].mxu0
        %v3716 = vadd.f32 %v3595, %v3715
        %v3717 = vpop.f32.mrb[0].mxu0
        %v3718 = vpop.f32.mrb[0].mxu0
        %v3719 = vadd.f32 %v3595, %v3718
        %v3720 = vpop.f32.mrb[0].mxu0
        %3721 = vmatprep.mubr.bf16.mxu0 0
        %3722 = vmatmul.mubr.bf16.gmra.mrb[0].mxu0 %v3622
        %v3723 = vpop.f32.mrb[0].mxu0
        %v3724 = vadd.f32 %v3595, %v3723
        %v3725 = vpop.f32.mrb[0].mxu0
        %v3726 = vpop.f32.mrb[0].mxu0
        %v3727 = vadd.f32 %v3595, %v3726
        %v3728 = vpop.f32.mrb[0].mxu0
        %3729 = vmatprep.mubr.bf16.mxu0 0
        %3730 = vmatmul.mubr.bf16.gmra.mrb[0].mxu0 %v3625
        %v3731 = vpop.f32.mrb[0].mxu0
        %v3732 = vadd.f32 %v3595, %v3731
        %v3733 = vpop.f32.mrb[0].mxu0
        %v3734 = vpop.f32.mrb[0].mxu0
        %v3735 = vadd.f32 %v3595, %v3734
        %v3736 = vpop.f32.mrb[0].mxu0
        %3737 = vmatprep.mubr.bf16.mxu0 0
        %3738 = vmatmul.mubr.bf16.gmra.mrb[0].mxu0 %v3628
        %v3739 = vpop.f32.mrb[0].mxu0
        %v3740 = vadd.f32 %v3595, %v3739
        %v3741 = vpop.f32.mrb[0].mxu0
        %v3742 = vpop.f32.mrb[0].mxu0
        %v3743 = vadd.f32 %v3595, %v3742
        %v3744 = vpop.f32.mrb[0].mxu0
        %3745 = vmatprep.mubr.bf16.mxu0 0
        %3746 = vmatmul.mubr.bf16.gmra.mrb[0].mxu0 %v3631
        %v3747 = vpop.f32.mrb[0].mxu0
        %v3748 = vadd.f32 %v3595, %v3747
        %v3749 = vpop.f32.mrb[0].mxu0
        %v3750 = vpop.f32.mrb[0].mxu0
        %v3751 = vadd.f32 %v3595, %v3750
        %v3752 = vpop.f32.mrb[0].mxu0
        %3753 = vmatprep.mubr.bf16.mxu0 0
        %3754 = vmatmul.mubr.bf16.gmra.mrb[0].mxu0 %v3634
        %v3755 = vpop.f32.mrb[0].mxu0
        %v3756 = vadd.f32 %v3595, %v3755
        %v3757 = vpop.f32.mrb[0].mxu0
        %v3758 = vpop.f32.mrb[0].mxu0
        %v3759 = vadd.f32 %v3595, %v3758
        %v3760 = vpop.f32.mrb[0].mxu0
        %3761 = vmatprep.mubr.bf16.mxu0 0
        %3762 = vmatmul.mubr.bf16.gmra.mrb[0].mxu0 %v3637
        %v3763 = vpop.f32.mrb[0].mxu0
        %v3764 = vadd.f32 %v3595, %v3763
        %v3765 = vpop.f32.mrb[0].mxu0
        %v3766 = vpop.f32.mrb[0].mxu0
        %v3767 = vadd.f32 %v3595, %v3766
        %v3768 = vpop.f32.mrb[0].mxu0
        %3769 = vmatprep.mubr.bf16.mxu0 0
        %3770 = vmatmul.mubr.bf16.gmra.mrb[0].mxu0 %v3640
        %v3771 = vpop.f32.mrb[0].mxu0
        %v3772 = vadd.f32 %v3595, %v3771
        %v3773 = vpop.f32.mrb[0].mxu0
        %v3774 = vpop.f32.mrb[0].mxu0
        %v3775 = vadd.f32 %v3595, %v3774
        %v3776 = vpop.f32.mrb[0].mxu0
        %3777 = vmatprep.mubr.bf16.mxu0 0
        %3778 = vmatmul.mubr.bf16.gmra.mrb[0].mxu0 %v3643
        %v3779 = vpop.f32.mrb[0].mxu0
        %v3780 = vadd.f32 %v3595, %v3779
        %v3781 = vpop.f32.mrb[0].mxu0
        %v3782 = vpop.f32.mrb[0].mxu0
        %v3783 = vadd.f32 %v3595, %v3782
        %v3784 = vpop.f32.mrb[0].mxu0
        %3785 = vmatprep.mubr.bf16.mxu0 0
        %3786 = vmatmul.mubr.bf16.gmra.mrb[0].mxu0 %v3646
        %v3787 = vpop.f32.mrb[0].mxu0
        %v3788 = vadd.f32 %v3595, %v3787
        %v3789 = vpop.f32.mrb[0].mxu0
        %v3790 = vpop.f32.mrb[0].mxu0
        %v3791 = vadd.f32 %v3595, %v3790
        %v3792 = vpop.f32.mrb[0].mxu0
        %3793 = vmatprep.mubr.bf16.mxu0 0
        %3794 = vmatmul.mubr.bf16.gmra.mrb[0].mxu0 %v3649
        %v3795 = vpop.f32.mrb[0].mxu0
        %v3796 = vadd.f32 %v3595, %v3795
        %v3797 = vpop.f32.mrb[0].mxu0
        %v3798 = vpop.f32.mrb[0].mxu0
        %v3799 = vadd.f32 %v3595, %v3798
        %v3800 = vpop.f32.mrb[0].mxu0
        %3801 = vmatprep.mubr.bf16.mxu0 0
        %3802 = vmatmul.mubr.bf16.gmra.mrb[0].mxu0 %v3652
        %v3803 = vpop.f32.mrb[0].mxu0
        %v3804 = vadd.f32 %v3595, %v3803
        %v3805 = vpop.f32.mrb[0].mxu0
        %v3806 = vpop.f32.mrb[0].mxu0
        %v3807 = vadd.f32 %v3595, %v3806
        %v3808 = vpop.f32.mrb[0].mxu0
        %3809 = vmatprep.mubr.bf16.mxu0 0
        %3810 = vmatmul.mubr.bf16.gmra.mrb[0].mxu0 %v3655
        %v3811 = vpop.f32.mrb[0].mxu0
        %v3812 = vadd.f32 %v3595, %v3811
        %v3813 = vpop.f32.mrb[0].mxu0
        %v3814 = vpop.f32.mrb[0].mxu0
        %v3815 = vadd.f32 %v3595, %v3814
        %v3816 = vpop.f32.mrb[0].mxu0
        %3817 = vdwg.mxu0
        %v3818 = vadd.f32 %v3692, %v3558
        %v3819 = vadd.f32 %v3695, %v3559
        %v3820 = vadd.f32 %v3700, %v3560
        %v3821 = vadd.f32 %v3703, %v3561
        %v3822 = vadd.f32 %v3708, %v3562
        %v3823 = vadd.f32 %v3711, %v3563
        %v3824 = vadd.f32 %v3716, %v3564
        %v3825 = vadd.f32 %v3719, %v3565
        %v3826 = vadd.f32 %v3724, %v3566
        %v3827 = vadd.f32 %v3727, %v3567
        %v3828 = vadd.f32 %v3732, %v3568
        %v3829 = vadd.f32 %v3735, %v3569
        %v3830 = vadd.f32 %v3740, %v3570
        %v3831 = vadd.f32 %v3743, %v3571
        %v3832 = vadd.f32 %v3748, %v3572
        %v3833 = vadd.f32 %v3751, %v3573
        %v3834 = vadd.f32 %v3756, %v3574
        %v3835 = vadd.f32 %v3759, %v3575
        %v3836 = vadd.f32 %v3764, %v3576
        %v3837 = vadd.f32 %v3767, %v3577
        %v3838 = vadd.f32 %v3772, %v3578
        %v3839 = vadd.f32 %v3775, %v3579
        %v3840 = vadd.f32 %v3780, %v3580
        %v3841 = vadd.f32 %v3783, %v3581
        %v3842 = vadd.f32 %v3788, %v3582
        %v3843 = vadd.f32 %v3791, %v3583
        %v3844 = vadd.f32 %v3796, %v3584
        %v3845 = vadd.f32 %v3799, %v3585
        %v3846 = vadd.f32 %v3804, %v3586
        %v3847 = vadd.f32 %v3807, %v3587
        %v3848 = vadd.f32 %v3812, %v3588
        %v3849 = vadd.f32 %v3815, %v3589
        %v3850 = vmax.f32 %v3818, 0.0
        %v3851 = vmax.f32 %v3819, 0.0
        %v3852 = vmax.f32 %v3820, 0.0
        %v3853 = vmax.f32 %v3821, 0.0
        %v3854 = vmax.f32 %v3822, 0.0
        %v3855 = vmax.f32 %v3823, 0.0
        %v3856 = vmax.f32 %v3824, 0.0
        %v3857 = vmax.f32 %v3825, 0.0
        %v3858 = vmax.f32 %v3826, 0.0
        %v3859 = vmax.f32 %v3827, 0.0
        %v3860 = vmax.f32 %v3828, 0.0
        %v3861 = vmax.f32 %v3829, 0.0
        %v3862 = vmax.f32 %v3830, 0.0
        %v3863 = vmax.f32 %v3831, 0.0
        %v3864 = vmax.f32 %v3832, 0.0
        %v3865 = vmax.f32 %v3833, 0.0
        %v3866 = vmax.f32 %v3834, 0.0
        %v3867 = vmax.f32 %v3835, 0.0
        %v3868 = vmax.f32 %v3836, 0.0
        %v3869 = vmax.f32 %v3837, 0.0
        %v3870 = vmax.f32 %v3838, 0.0
        %v3871 = vmax.f32 %v3839, 0.0
        %v3872 = vmax.f32 %v3840, 0.0
        %v3873 = vmax.f32 %v3841, 0.0
        %v3874 = vmax.f32 %v3842, 0.0
        %v3875 = vmax.f32 %v3843, 0.0
        %v3876 = vmax.f32 %v3844, 0.0
        %v3877 = vmax.f32 %v3845, 0.0
        %v3878 = vmax.f32 %v3846, 0.0
        %v3879 = vmax.f32 %v3847, 0.0
        %v3880 = vmax.f32 %v3848, 0.0
        %v3881 = vmax.f32 %v3849, 0.0
        %3882 = vst [vmem:[%s310] sm:$0xff] %v3850
        %3883 = vst [vmem:[%s310 + $0x8] sm:$0xff] %v3851
        %3884 = vst [vmem:[%s310 + $0x10] sm:$0xff] %v3852
        %3885 = vst [vmem:[%s310 + $0x18] sm:$0xff] %v3853
        %3886 = vst [vmem:[%s310 + $0x20] sm:$0xff] %v3854
        %3887 = vst [vmem:[%s310 + $0x28] sm:$0xff] %v3855
        %3888 = vst [vmem:[%s310 + $0x30] sm:$0xff] %v3856
        %3889 = vst [vmem:[%s310 + $0x38] sm:$0xff] %v3857
        %3890 = vst [vmem:[%s310 + $0x40] sm:$0xff] %v3858
        %3891 = vst [vmem:[%s310 + $0x48] sm:$0xff] %v3859
        %3892 = vst [vmem:[%s310 + $0x50] sm:$0xff] %v3860
        %3893 = vst [vmem:[%s310 + $0x58] sm:$0xff] %v3861
        %3894 = vst [vmem:[%s310 + $0x60] sm:$0xff] %v3862
        %3895 = vst [vmem:[%s310 + $0x68] sm:$0xff] %v3863
        %3896 = vst [vmem:[%s310 + $0x70] sm:$0xff] %v3864
        %3897 = vst [vmem:[%s310 + $0x78] sm:$0xff] %v3865
        %3898 = vst [vmem:[%s310 + $0x80] sm:$0xff] %v3866
        %3899 = vst [vmem:[%s310 + $0x88] sm:$0xff] %v3867
        %3900 = vst [vmem:[%s310 + $0x90] sm:$0xff] %v3868
        %3901 = vst [vmem:[%s310 + $0x98] sm:$0xff] %v3869
        %3902 = vst [vmem:[%s310 + $0xa0] sm:$0xff] %v3870
        %3903 = vst [vmem:[%s310 + $0xa8] sm:$0xff] %v3871
        %3904 = vst [vmem:[%s310 + $0xb0] sm:$0xff] %v3872
        %3905 = vst [vmem:[%s310 + $0xb8] sm:$0xff] %v3873
        %3906 = vst [vmem:[%s310 + $0xc0] sm:$0xff] %v3874
        %3907 = vst [vmem:[%s310 + $0xc8] sm:$0xff] %v3875
        %3908 = vst [vmem:[%s310 + $0xd0] sm:$0xff] %v3876
        %3909 = vst [vmem:[%s310 + $0xd8] sm:$0xff] %v3877
        %3910 = vst [vmem:[%s310 + $0xe0] sm:$0xff] %v3878
        %3911 = vst [vmem:[%s310 + $0xe8] sm:$0xff] %v3879
        %3912 = vst [vmem:[%s310 + $0xf0] sm:$0xff] %v3880
        %3913 = vst [vmem:[%s310 + $0xf8] sm:$0xff] %v3881
        %s3914 = sand.u32 %s198, 1
        %s3915 = scalar_lea.sflag [#allocation5], %s3914
        %s3916 = sand.u32 %s198, 1
        %s3917 = smul.addr %s3916, 256
        %s3918 = scalar_lea.vmem [#allocation6], %s3917
        // Predicated region
        $region53: #{tpu_custom_call.1} parent=47 // pred_check
          %p3919 = pneg %p208
        $region54: #{tpu_custom_call.1} parent=47 // pred_check_branch
          %3921 = sbr.rel (%p3919) target = $region56
        $region55: #{tpu_custom_call.1} parent=47 // pred_region
          %s3922 = smul.u32 16, %s29
          %s3924 = ssub.s32 4096, 4096
          %3925 = vsyncadd %s3915, %s3924
          %s3926 = smul.addr %s3922, 2
          %s3927 = smul.addr %s28, 64
          %s3928 = sadd.s32 %s3926, %s3927
          %s3929 = smul.addr %s3928, 128
          %s3930 = scalar_lea.hbm %s7, %s3929
          %s3931 = sshll.u32 %s3918, 4
          %s3932 = int_to_ptr.vmem [resolvable:$true] %s3931
          %3937 = dma.vmem_to_hbm [thread:$0]  %s3932, 4096, %s3930, %s3915, 128, 128, 8
        $region56: #{tpu_custom_call.1} parent=47 // pred_fallthru
          _
      $region48: #{tpu_custom_call.1} parent=5 // pred_fallthru
        _
      %p3938 = scmp.le.s32.totalorder 2, %s19
      // Predicated region
      $region57: #{tpu_custom_call.1} parent=5 // pred_check
        %p3939 = pneg %p3938
      $region58: #{tpu_custom_call.1} parent=5 // pred_check_branch
        %3941 = sbr.rel (%p3939) target = $region60
      $region59: #{tpu_custom_call.1} parent=5 // pred_region
        %s3942 = ssub.s32 %s19, 2
        // Predicated region
        $region61: #{tpu_custom_call.1} parent=59 // pred_check
          %p3943 = pneg %p214
        $region62: #{tpu_custom_call.1} parent=59 // pred_check_branch
          %3945 = sbr.rel (%p3943) target = $region64
        $region63: #{tpu_custom_call.1} parent=59 // pred_region
          %s3946 = sand.u32 %s199, 1
          %s3947 = scalar_lea.sflag [#allocation5], %s3946
          %s3948 = sand.u32 %s199, 1
          %s3949 = smul.addr %s3948, 256
          %s3950 = scalar_lea.vmem [#allocation6], %s3949
          %3951 = dma.done %s3947, 4096
        $region64: #{tpu_custom_call.1} parent=59 // pred_fallthru
          _
      $region60: #{tpu_custom_call.1} parent=5 // pred_fallthru
        _
    $region6: #{tpu_custom_call.1} parent=1 // loop_footer
      %s23 = sadd.s32 1, %s19
    $region7: #{tpu_custom_call.1} parent=1 // loop_footer_branch
      %18 = sbr.rel target = $region3
    $region8: #{tpu_custom_call.1} parent=1 // loop_exit
      _
    %3952 = vsyncpa [#allocation4], 1
    %s3953 = scalar_lea.sflag [#allocation4], 1
    %3954 = vsyncpa %s3953, 1
    %3955 = vsyncpa [#allocation5], 1
    %s3956 = scalar_lea.sflag [#allocation5], 1
    %3957 = vsyncpa %s3956, 1

</llo_original>
